<compile_context>
chip_gen: v7x
topology: tpu7x:2x2x1
jax: 0.10.0
libtpu: 0.0.40
codegen_flags: <defaults>
</compile_context>

<pallas_src>
import functools

import numpy as np
import jax
import jax.numpy as jnp
from jax import lax
from jax.experimental import pallas as pl
from jax.experimental.pallas import tpu as pltpu


# ----------------------------- helpers -----------------------------

def _round_up(x, m):
    return (x + m - 1) // m * m


def _affine_compose(A, B):
    """C = A @ B for 3x4 affine transforms (implicit bottom row [0,0,0,1]).

    A, B are 3x4 nested lists; entries are (8,128) arrays or Python floats
    (compile-time constants).  Pure VPU FMAs, no cross-lane movement.
    """
    C = []
    for i in range(3):
        row = []
        for j in range(3):
            row.append(A[i][0] * B[0][j] + A[i][1] * B[1][j] + A[i][2] * B[2][j])
        row.append(A[i][0] * B[0][3] + A[i][1] * B[1][3] + A[i][2] * B[2][3]
                   + A[i][3])
        C.append(row)
    return C


# ------------------------------ kernel ------------------------------

def _fk_kernel(q_ref, out_ref, *, dof, global_transform, axes, trans, sub):
    """Forward kinematics for one batch tile.

    q_ref   : (1, qdim, SUB, 128)            joint config, batch on (sublane, lane)
    out_ref : (1, 1 + dof, 12, SUB, 128)     row-major top 3x4 of each world
                                             transform (link 0 = base_link/palm
                                             = global transform; constant
                                             bottom row appended by wrapper).
    axes / trans : tuples of Python floats (compile-time constants).
    """
    start = 6 if global_transform else 0
    nsl = sub // 8  # number of 8-sublane slices in this tile

    def slice_body(si, carry):
        # static index on the nsl == 1 fast path, traced index otherwise
        if isinstance(si, int):
            s0 = si * 8
        else:
            s0 = pl.multiple_of(si * 8, 8)
        sl = pl.ds(s0, 8)

        def q(j):
            return q_ref[0, j, sl, :]          # (8, 128) vreg

        if global_transform:
            # global transform from translation qpos[0:3] + axis-angle qpos[3:6]
            tx, ty, tz = q(0), q(1), q(2)
            ax, ay, az = q(3), q(4), q(5)
            theta2 = ax * ax + ay * ay + az * az
            small = theta2 < 1e-8
            safe_t2 = jnp.where(small, 1.0, theta2)
            inv_t = lax.rsqrt(safe_t2)
            theta = theta2 * inv_t
            # s = sin(t)/t ; c2 = (1-cos t)/t^2 = 2 sin^2(t/2)/t^2 (cancellation-free)
            s = jnp.where(small, 1.0 - theta2 * (1.0 / 6.0),
                          jnp.sin(theta) * inv_t)
            sh = jnp.sin(0.5 * theta)
            c2 = jnp.where(small, 0.5 - theta2 * (1.0 / 24.0),
                           2.0 * sh * sh * inv_t * inv_t)
            T = [
                [1.0 + c2 * (ax * ax - theta2), -s * az + c2 * ax * ay,
                 s * ay + c2 * ax * az, tx],
                [s * az + c2 * ax * ay, 1.0 + c2 * (ay * ay - theta2),
                 -s * ax + c2 * ay * az, ty],
                [-s * ay + c2 * ax * az, s * ax + c2 * ay * az,
                 1.0 + c2 * (az * az - theta2), tz],
            ]
        else:
            zeros = jnp.zeros((8, 128), jnp.float32)
            ones = zeros + 1.0
            T = [
                [ones, zeros, zeros, zeros],
                [zeros, ones, zeros, zeros],
                [zeros, zeros, ones, zeros],
            ]

        # link 0 (== base_link == palm): world transform is the global transform
        for i in range(3):
            for k in range(4):
                out_ref[0, 0, 4 * i + k, sl, :] = T[i][k]

        # W_j = W_{j-1} @ L_j with W_{-1} = G ; L_j = Offset_j @ R_j = [R_j | t_j]
        for j in range(dof):
            ang = q(start + j)
            c = jnp.cos(ang)                   # per-joint sin/cos (EUP has slack)
            s = jnp.sin(ang)
            oc = 1.0 - c
            ux, uy, uz = axes[j]               # Python-float constants
            tjx, tjy, tjz = trans[j]
            L = [
                [c + oc * (ux * ux), oc * (ux * uy) - s * uz,
                 oc * (ux * uz) + s * uy, tjx],
                [oc * (ux * uy) + s * uz, c + oc * (uy * uy),
                 oc * (uy * uz) - s * ux, tjy],
                [oc * (ux * uz) - s * uy, oc * (uy * uz) + s * ux,
                 c + oc * (uz * uz), tjz],
            ]
            T = _affine_compose(T, L)
            for i in range(3):
                for k in range(4):
                    out_ref[0, 1 + j, 4 * i + k, sl, :] = T[i][k]
        return carry

    if nsl == 1:
        slice_body(0, 0)
    else:
        # inner loop over 8-sublane slices: DMA tile size decoupled from the
        # vreg working set (stays ~45 vregs regardless of SUB)
        lax.fori_loop(0, nsl, slice_body, 0, unroll=True)


# --------------------------- jitted forward ---------------------------

def _forward_impl(qpos, *, dof, global_transform, axes, trans, max_tile):
    qpos = qpos.astype(jnp.float32)
    B, qdim = qpos.shape
    n_links_out = 1 + dof                      # base_link/palm deduped to slot 0

    # --- tile selection: big tiles to amortize grid-step overhead, but keep
    #     >=2 grid steps when possible so v7x megacore can split the batch ---
    B1 = _round_up(max(B, 1), 1024)
    num_tiles = max(1, -(-B1 // max_tile))
    if num_tiles == 1 and B1 >= 2048:
        num_tiles = 2
    tile = _round_up(-(-B1 // num_tiles), 1024)
    B_pad = num_tiles * tile
    SUB = tile // 128

    # lane/sublane-dense layout, contiguous per grid step:
    # batch b -> (b // tile, (b % tile) // 128, b % 128)
    qp = qpos
    if B_pad != B:
        qp = jnp.pad(qp, ((0, B_pad - B), (0, 0)))
    q_in = qp.reshape(num_tiles, SUB, 128, qdim).transpose(0, 3, 1, 2)

    kernel = functools.partial(
        _fk_kernel, dof=dof, global_transform=global_transform,
        axes=axes, trans=trans, sub=SUB)

    in_block = (1, qdim, SUB, 128)
    out_block = (1, n_links_out, 12, SUB, 128)
    need = 2 * 4 * (int(np.prod(in_block)) + int(np.prod(out_block)))  # 2 buffers
    vmem_limit = int(min(32 * 1024 * 1024,
                         max(16 * 1024 * 1024, need + (4 << 20))))

    out = pl.pallas_call(
        kernel,
        out_shape=jax.ShapeDtypeStruct(
            (num_tiles, n_links_out, 12, SUB, 128), jnp.float32),
        grid=(num_tiles,),
        in_specs=[pl.BlockSpec(in_block, lambda b: (b, 0, 0, 0))],
        out_specs=pl.BlockSpec(out_block, lambda b: (b, 0, 0, 0, 0)),
        compiler_params=pltpu.CompilerParams(
            dimension_semantics=("parallel",),
            vmem_limit_bytes=vmem_limit),
    )(q_in)

    # reassemble (n_links, B, 4, 4): one transpose/reshape/slice/concat fusion
    top = jnp.transpose(out, (1, 0, 3, 4, 2)).reshape(n_links_out, B_pad, 12)
    top = top[:, :B, :].reshape(n_links_out, B, 3, 4)
    bottom = jnp.broadcast_to(
        jnp.array([0.0, 0.0, 0.0, 1.0], jnp.float32), (n_links_out, B, 1, 4))
    mats = jnp.concatenate([top, bottom], axis=2)      # (n_links, B, 4, 4)

    tf = {"base_link": mats[0], "palm": mats[0]}       # palm aliases base_link
    for j in range(dof):
        tf[f"link_{j}"] = mats[1 + j]
    return tf


# ------------------------------ wrapper ------------------------------

class KinematicsLayer:
    """Synthetic serial revolute chain standing in for the URDF chain.

    __call__(qpos) -> dict {link_name: (B, 4, 4)} world-frame transforms.
    qpos is (B, 6 + dof) if global_transform else (B, dof).
    """

    def __init__(self, dof: int = 6, global_transform: bool = True,
                 max_batch_tile: int = 8192):
        assert max_batch_tile % 1024 == 0, \
            "max_batch_tile must be a multiple of 1024 (8 sublanes x 128 lanes)"
        self.dof = dof
        self.global_transform = global_transform
        self.max_batch_tile = max_batch_tile
        self.end_links = [f"link_{dof - 1}"]
        self.link_names = ["base_link", "palm"] + [f"link_{j}" for j in range(dof)]

        # deterministic joint axes (unit vectors) -- compile-time constants
        raw = np.stack([
            np.array([np.cos(0.7 * j), np.sin(0.9 * j + 0.3), 0.5 + 0.1 * j],
                     dtype=np.float32)
            for j in range(dof)])
        self.axes = (raw / np.linalg.norm(raw, axis=1, keepdims=True)
                     ).astype(np.float32)

        # deterministic fixed parent->joint offsets: identity rotation + translation
        self.trans = np.stack([
            np.array([0.05 + 0.02 * j, 0.01 * j, 0.10], dtype=np.float32)
            for j in range(dof)])

        self._axes_t = tuple(tuple(float(v) for v in a) for a in self.axes)
        self._trans_t = tuple(tuple(float(v) for v in t) for t in self.trans)

        self._forward = jax.jit(functools.partial(
            _forward_impl, dof=self.dof, global_transform=self.global_transform,
            axes=self._axes_t, trans=self._trans_t,
            max_tile=self.max_batch_tile))

    def __call__(self, qpos):
        return self._forward(jnp.asarray(qpos))


# ------------------------------ pure-JAX ref ------------------------------

def _reference_forward(qpos, axes, trans, global_transform=True):
    qpos = jnp.asarray(qpos, jnp.float32)
    B = qpos.shape[0]
    dof = axes.shape[0]
    start = 6 if global_transform else 0
    eye4 = jnp.tile(jnp.eye(4, dtype=jnp.float32)[None], (B, 1, 1))

    if global_transform:
        ax, ay, az = qpos[:, 3:4], qpos[:, 4:5], qpos[:, 5:6]
        theta2 = ax * ax + ay * ay + az * az
        small = theta2 < 1e-8
        safe = jnp.where(small, 1.0, theta2)
        theta = jnp.sqrt(safe)
        s = jnp.where(small, 1.0 - theta2 / 6.0, jnp.sin(theta) / theta)
        sh = jnp.sin(0.5 * theta)
        c2 = jnp.where(small, 0.5 - theta2 / 24.0, 2.0 * sh * sh / safe)
        R = jnp.concatenate(
            [1.0 + c2 * (ax * ax - theta2), -s * az + c2 * ax * ay,
             s * ay + c2 * ax * az,
             s * az + c2 * ax * ay, 1.0 + c2 * (ay * ay - theta2),
             -s * ax + c2 * ay * az,
             -s * ay + c2 * ax * az, s * ax + c2 * ay * az,
             1.0 + c2 * (az * az - theta2)],
            axis=1).reshape(B, 3, 3)
        G = eye4.at[:, :3, :3].set(R).at[:, :3, 3].set(qpos[:, 0:3])
    else:
        G = eye4

    T = eye4
    outs = [G, G]
    for j in range(dof):
        ang = qpos[:, start + j]
        c = jnp.cos(ang)[:, None, None]
        s = jnp.sin(ang)[:, None, None]
        u = axes[j]
        K = jnp.asarray([[0.0, -u[2], u[1]],
                         [u[2], 0.0, -u[0]],
                         [-u[1], u[0], 0.0]], dtype=jnp.float32)
        uu = jnp.asarray(np.outer(u, u), jnp.float32)
        I3 = jnp.eye(3, dtype=jnp.float32)
        Rj = c * I3 + (1.0 - c) * uu + s * K
        Lj = eye4.at[:, :3, :3].set(Rj).at[:, :3, 3].set(
            jnp.asarray(trans[j], jnp.float32))
        T = jnp.einsum('bij,bjk->bik', T, Lj, precision='highest')
        outs.append(jnp.einsum('bij,bjk->bik', G, T, precision='highest'))
    return jnp.stack(outs, axis=0)


# ---------------------------------- main ----------------------------------

if __name__ == "__main__":
    # Test 1: global-transform path, small batch (pads to one 1024 tile, SUB=8).
    B, DOF = 300, 6
    qpos = jax.random.normal(jax.random.PRNGKey(0), (B, 6 + DOF),
                             dtype=jnp.float32) * 0.5
    layer = KinematicsLayer(dof=DOF, global_transform=True)
    tf3ds = layer(qpos)
    jax.block_until_ready(tf3ds)

    ref = np.asarray(jax.block_until_ready(
        _reference_forward(qpos, layer.axes, layer.trans, global_transform=True)))
    for i, name in enumerate(layer.link_names):
        np.testing.assert_allclose(np.asarray(tf3ds[name]), ref[i],
                                   rtol=1e-4, atol=1e-4)

    # Test 2: no-global-transform path; batch big enough to exercise the
    # multi-tile grid (2 parallel steps), SUB=16 blocks and the in-kernel
    # sublane fori_loop.
    layer2 = KinematicsLayer(dof=4, global_transform=False)
    B2 = 2500
    q2 = jax.random.normal(jax.random.PRNGKey(0), (B2, 4), dtype=jnp.float32) * 0.5
    tf2 = layer2(q2)
    jax.block_until_ready(tf2)

    ref2 = np.asarray(jax.block_until_ready(
        _reference_forward(q2, layer2.axes, layer2.trans, global_transform=False)))
    for i, name in enumerate(layer2.link_names):
        np.testing.assert_allclose(np.asarray(tf2[name]), ref2[i],
                                   rtol=1e-4, atol=1e-4)

    print("KERNEL_OK")
</pallas_src>

<mosaic_0001>
module attributes {stable_mosaic.version = 11 : i64} {
  func.func @_fk_kernel(%arg0: i32, %arg1: memref<1x12x8x128xf32, #tpu.memory_space<vmem>>, %arg2: memref<1x7x12x8x128xf32, #tpu.memory_space<vmem>>) attributes {dimension_semantics = [#tpu.dimension_semantics<parallel>], iteration_bounds = array<i64: 1>, scalar_prefetch = 0 : i64, scratch_operands = 0 : i64, tpu.core_type = #tpu.core_type<tc>, window_params = [{transform_indices = @transform_0, window_bounds = array<i64: 1, 12, 8, 128>}, {transform_indices = @transform_1, window_bounds = array<i64: 1, 7, 12, 8, 128>}]} {
    %c0 = arith.constant 0 : index
    %c0_0 = arith.constant 0 : index
    %c0_1 = arith.constant 0 : index
    %c0_2 = arith.constant 0 : index
    %0 = vector.load %arg1[%c0, %c0_0, %c0_1, %c0_2] : memref<1x12x8x128xf32, #tpu.memory_space<vmem>>, vector<1x1x8x128xf32>
    %1 = vector.shape_cast %0 : vector<1x1x8x128xf32> to vector<8x128xf32>
    %c0_3 = arith.constant 0 : index
    %c1 = arith.constant 1 : index
    %c0_4 = arith.constant 0 : index
    %c0_5 = arith.constant 0 : index
    %2 = vector.load %arg1[%c0_3, %c1, %c0_4, %c0_5] : memref<1x12x8x128xf32, #tpu.memory_space<vmem>>, vector<1x1x8x128xf32>
    %3 = vector.shape_cast %2 : vector<1x1x8x128xf32> to vector<8x128xf32>
    %c0_6 = arith.constant 0 : index
    %c2 = arith.constant 2 : index
    %c0_7 = arith.constant 0 : index
    %c0_8 = arith.constant 0 : index
    %4 = vector.load %arg1[%c0_6, %c2, %c0_7, %c0_8] : memref<1x12x8x128xf32, #tpu.memory_space<vmem>>, vector<1x1x8x128xf32>
    %5 = vector.shape_cast %4 : vector<1x1x8x128xf32> to vector<8x128xf32>
    %c0_9 = arith.constant 0 : index
    %c3 = arith.constant 3 : index
    %c0_10 = arith.constant 0 : index
    %c0_11 = arith.constant 0 : index
    %6 = vector.load %arg1[%c0_9, %c3, %c0_10, %c0_11] : memref<1x12x8x128xf32, #tpu.memory_space<vmem>>, vector<1x1x8x128xf32>
    %7 = vector.shape_cast %6 : vector<1x1x8x128xf32> to vector<8x128xf32>
    %c0_12 = arith.constant 0 : index
    %c4 = arith.constant 4 : index
    %c0_13 = arith.constant 0 : index
    %c0_14 = arith.constant 0 : index
    %8 = vector.load %arg1[%c0_12, %c4, %c0_13, %c0_14] : memref<1x12x8x128xf32, #tpu.memory_space<vmem>>, vector<1x1x8x128xf32>
    %9 = vector.shape_cast %8 : vector<1x1x8x128xf32> to vector<8x128xf32>
    %c0_15 = arith.constant 0 : index
    %c5 = arith.constant 5 : index
    %c0_16 = arith.constant 0 : index
    %c0_17 = arith.constant 0 : index
    %10 = vector.load %arg1[%c0_15, %c5, %c0_16, %c0_17] : memref<1x12x8x128xf32, #tpu.memory_space<vmem>>, vector<1x1x8x128xf32>
    %11 = vector.shape_cast %10 : vector<1x1x8x128xf32> to vector<8x128xf32>
    %12 = arith.mulf %7, %7 : vector<8x128xf32>
    %13 = arith.mulf %9, %9 : vector<8x128xf32>
    %14 = arith.addf %12, %13 : vector<8x128xf32>
    %15 = arith.mulf %11, %11 : vector<8x128xf32>
    %16 = arith.addf %14, %15 : vector<8x128xf32>
    %cst = arith.constant 9.99999993E-9 : f32
    %17 = vector.broadcast %cst : f32 to vector<8x128xf32>
    %18 = arith.cmpf olt, %16, %17 : vector<8x128xf32>
    %cst_18 = arith.constant 1.000000e+00 : f32
    %19 = vector.broadcast %cst_18 : f32 to vector<8x128xf32>
    %20 = arith.select %18, %19, %16 : vector<8x128xi1>, vector<8x128xf32>
    %21 = math.rsqrt %20 : vector<8x128xf32>
    %22 = arith.mulf %16, %21 : vector<8x128xf32>
    %cst_19 = arith.constant 0.166666672 : f32
    %23 = vector.broadcast %cst_19 : f32 to vector<8x128xf32>
    %24 = arith.mulf %16, %23 : vector<8x128xf32>
    %cst_20 = arith.constant 1.000000e+00 : f32
    %25 = vector.broadcast %cst_20 : f32 to vector<8x128xf32>
    %26 = arith.subf %25, %24 : vector<8x128xf32>
    %27 = math.sin %22 : vector<8x128xf32>
    %28 = arith.mulf %27, %21 : vector<8x128xf32>
    %29 = arith.select %18, %26, %28 : vector<8x128xi1>, vector<8x128xf32>
    %cst_21 = arith.constant 5.000000e-01 : f32
    %30 = vector.broadcast %cst_21 : f32 to vector<8x128xf32>
    %31 = arith.mulf %30, %22 : vector<8x128xf32>
    %32 = math.sin %31 : vector<8x128xf32>
    %cst_22 = arith.constant 0.0416666679 : f32
    %33 = vector.broadcast %cst_22 : f32 to vector<8x128xf32>
    %34 = arith.mulf %16, %33 : vector<8x128xf32>
    %cst_23 = arith.constant 5.000000e-01 : f32
    %35 = vector.broadcast %cst_23 : f32 to vector<8x128xf32>
    %36 = arith.subf %35, %34 : vector<8x128xf32>
    %cst_24 = arith.constant 2.000000e+00 : f32
    %37 = vector.broadcast %cst_24 : f32 to vector<8x128xf32>
    %38 = arith.mulf %37, %32 : vector<8x128xf32>
    %39 = arith.mulf %38, %32 : vector<8x128xf32>
    %40 = arith.mulf %39, %21 : vector<8x128xf32>
    %41 = arith.mulf %40, %21 : vector<8x128xf32>
    %42 = arith.select %18, %36, %41 : vector<8x128xi1>, vector<8x128xf32>
    %43 = arith.mulf %7, %7 : vector<8x128xf32>
    %44 = arith.subf %43, %16 : vector<8x128xf32>
    %45 = arith.mulf %42, %44 : vector<8x128xf32>
    %cst_25 = arith.constant 1.000000e+00 : f32
    %46 = vector.broadcast %cst_25 : f32 to vector<8x128xf32>
    %47 = arith.addf %46, %45 : vector<8x128xf32>
    %cst_26 = arith.constant 0.000000e+00 : f32
    %48 = vector.broadcast %cst_26 : f32 to vector<8x128xf32>
    %49 = arith.subf %48, %29 : vector<8x128xf32>
    %50 = arith.mulf %49, %11 : vector<8x128xf32>
    %51 = arith.mulf %42, %7 : vector<8x128xf32>
    %52 = arith.mulf %51, %9 : vector<8x128xf32>
    %53 = arith.addf %50, %52 : vector<8x128xf32>
    %54 = arith.mulf %29, %9 : vector<8x128xf32>
    %55 = arith.mulf %42, %7 : vector<8x128xf32>
    %56 = arith.mulf %55, %11 : vector<8x128xf32>
    %57 = arith.addf %54, %56 : vector<8x128xf32>
    %58 = arith.mulf %29, %11 : vector<8x128xf32>
    %59 = arith.mulf %42, %7 : vector<8x128xf32>
    %60 = arith.mulf %59, %9 : vector<8x128xf32>
    %61 = arith.addf %58, %60 : vector<8x128xf32>
    %62 = arith.mulf %9, %9 : vector<8x128xf32>
    %63 = arith.subf %62, %16 : vector<8x128xf32>
    %64 = arith.mulf %42, %63 : vector<8x128xf32>
    %cst_27 = arith.constant 1.000000e+00 : f32
    %65 = vector.broadcast %cst_27 : f32 to vector<8x128xf32>
    %66 = arith.addf %65, %64 : vector<8x128xf32>
    %cst_28 = arith.constant 0.000000e+00 : f32
    %67 = vector.broadcast %cst_28 : f32 to vector<8x128xf32>
    %68 = arith.subf %67, %29 : vector<8x128xf32>
    %69 = arith.mulf %68, %7 : vector<8x128xf32>
    %70 = arith.mulf %42, %9 : vector<8x128xf32>
    %71 = arith.mulf %70, %11 : vector<8x128xf32>
    %72 = arith.addf %69, %71 : vector<8x128xf32>
    %cst_29 = arith.constant 0.000000e+00 : f32
    %73 = vector.broadcast %cst_29 : f32 to vector<8x128xf32>
    %74 = arith.subf %73, %29 : vector<8x128xf32>
    %75 = arith.mulf %74, %9 : vector<8x128xf32>
    %76 = arith.mulf %42, %7 : vector<8x128xf32>
    %77 = arith.mulf %76, %11 : vector<8x128xf32>
    %78 = arith.addf %75, %77 : vector<8x128xf32>
    %79 = arith.mulf %29, %7 : vector<8x128xf32>
    %80 = arith.mulf %42, %9 : vector<8x128xf32>
    %81 = arith.mulf %80, %11 : vector<8x128xf32>
    %82 = arith.addf %79, %81 : vector<8x128xf32>
    %83 = arith.mulf %11, %11 : vector<8x128xf32>
    %84 = arith.subf %83, %16 : vector<8x128xf32>
    %85 = arith.mulf %42, %84 : vector<8x128xf32>
    %cst_30 = arith.constant 1.000000e+00 : f32
    %86 = vector.broadcast %cst_30 : f32 to vector<8x128xf32>
    %87 = arith.addf %86, %85 : vector<8x128xf32>
    %c0_31 = arith.constant 0 : index
    %c0_32 = arith.constant 0 : index
    %c0_33 = arith.constant 0 : index
    %c0_34 = arith.constant 0 : index
    %c0_35 = arith.constant 0 : index
    %88 = vector.load %arg2[%c0_31, %c0_32, %c0_33, %c0_34, %c0_35] : memref<1x7x12x8x128xf32, #tpu.memory_space<vmem>>, vector<1x1x1x8x128xf32>
    %89 = vector.shape_cast %88 : vector<1x1x1x8x128xf32> to vector<8x128xf32>
    %90 = vector.shape_cast %47 : vector<8x128xf32> to vector<1x1x1x8x128xf32>
    tpu.vector_store %arg2[%c0_31, %c0_32, %c0_33, %c0_34, %c0_35], %90 {strides = array<i32>} : memref<1x7x12x8x128xf32, #tpu.memory_space<vmem>>, vector<1x1x1x8x128xf32>,
    %c0_36 = arith.constant 0 : index
    %c0_37 = arith.constant 0 : index
    %c1_38 = arith.constant 1 : index
    %c0_39 = arith.constant 0 : index
    %c0_40 = arith.constant 0 : index
    %91 = vector.load %arg2[%c0_36, %c0_37, %c1_38, %c0_39, %c0_40] : memref<1x7x12x8x128xf32, #tpu.memory_space<vmem>>, vector<1x1x1x8x128xf32>
    %92 = vector.shape_cast %91 : vector<1x1x1x8x128xf32> to vector<8x128xf32>
    %93 = vector.shape_cast %53 : vector<8x128xf32> to vector<1x1x1x8x128xf32>
    tpu.vector_store %arg2[%c0_36, %c0_37, %c1_38, %c0_39, %c0_40], %93 {strides = array<i32>} : memref<1x7x12x8x128xf32, #tpu.memory_space<vmem>>, vector<1x1x1x8x128xf32>,
    %c0_41 = arith.constant 0 : index
    %c0_42 = arith.constant 0 : index
    %c2_43 = arith.constant 2 : index
    %c0_44 = arith.constant 0 : index
    %c0_45 = arith.constant 0 : index
    %94 = vector.load %arg2[%c0_41, %c0_42, %c2_43, %c0_44, %c0_45] : memref<1x7x12x8x128xf32, #tpu.memory_space<vmem>>, vector<1x1x1x8x128xf32>
    %95 = vector.shape_cast %94 : vector<1x1x1x8x128xf32> to vector<8x128xf32>
    %96 = vector.shape_cast %57 : vector<8x128xf32> to vector<1x1x1x8x128xf32>
    tpu.vector_store %arg2[%c0_41, %c0_42, %c2_43, %c0_44, %c0_45], %96 {strides = array<i32>} : memref<1x7x12x8x128xf32, #tpu.memory_space<vmem>>, vector<1x1x1x8x128xf32>,
    %c0_46 = arith.constant 0 : index
    %c0_47 = arith.constant 0 : index
    %c3_48 = arith.constant 3 : index
    %c0_49 = arith.constant 0 : index
    %c0_50 = arith.constant 0 : index
    %97 = vector.load %arg2[%c0_46, %c0_47, %c3_48, %c0_49, %c0_50] : memref<1x7x12x8x128xf32, #tpu.memory_space<vmem>>, vector<1x1x1x8x128xf32>
    %98 = vector.shape_cast %97 : vector<1x1x1x8x128xf32> to vector<8x128xf32>
    %99 = vector.shape_cast %1 : vector<8x128xf32> to vector<1x1x1x8x128xf32>
    tpu.vector_store %arg2[%c0_46, %c0_47, %c3_48, %c0_49, %c0_50], %99 {strides = array<i32>} : memref<1x7x12x8x128xf32, #tpu.memory_space<vmem>>, vector<1x1x1x8x128xf32>,
    %c0_51 = arith.constant 0 : index
    %c0_52 = arith.constant 0 : index
    %c4_53 = arith.constant 4 : index
    %c0_54 = arith.constant 0 : index
    %c0_55 = arith.constant 0 : index
    %100 = vector.load %arg2[%c0_51, %c0_52, %c4_53, %c0_54, %c0_55] : memref<1x7x12x8x128xf32, #tpu.memory_space<vmem>>, vector<1x1x1x8x128xf32>
    %101 = vector.shape_cast %100 : vector<1x1x1x8x128xf32> to vector<8x128xf32>
    %102 = vector.shape_cast %61 : vector<8x128xf32> to vector<1x1x1x8x128xf32>
    tpu.vector_store %arg2[%c0_51, %c0_52, %c4_53, %c0_54, %c0_55], %102 {strides = array<i32>} : memref<1x7x12x8x128xf32, #tpu.memory_space<vmem>>, vector<1x1x1x8x128xf32>,
    %c0_56 = arith.constant 0 : index
    %c0_57 = arith.constant 0 : index
    %c5_58 = arith.constant 5 : index
    %c0_59 = arith.constant 0 : index
    %c0_60 = arith.constant 0 : index
    %103 = vector.load %arg2[%c0_56, %c0_57, %c5_58, %c0_59, %c0_60] : memref<1x7x12x8x128xf32, #tpu.memory_space<vmem>>, vector<1x1x1x8x128xf32>
    %104 = vector.shape_cast %103 : vector<1x1x1x8x128xf32> to vector<8x128xf32>
    %105 = vector.shape_cast %66 : vector<8x128xf32> to vector<1x1x1x8x128xf32>
    tpu.vector_store %arg2[%c0_56, %c0_57, %c5_58, %c0_59, %c0_60], %105 {strides = array<i32>} : memref<1x7x12x8x128xf32, #tpu.memory_space<vmem>>, vector<1x1x1x8x128xf32>,
    %c0_61 = arith.constant 0 : index
    %c0_62 = arith.constant 0 : index
    %c6 = arith.constant 6 : index
    %c0_63 = arith.constant 0 : index
    %c0_64 = arith.constant 0 : index
    %106 = vector.load %arg2[%c0_61, %c0_62, %c6, %c0_63, %c0_64] : memref<1x7x12x8x128xf32, #tpu.memory_space<vmem>>, vector<1x1x1x8x128xf32>
    %107 = vector.shape_cast %106 : vector<1x1x1x8x128xf32> to vector<8x128xf32>
    %108 = vector.shape_cast %72 : vector<8x128xf32> to vector<1x1x1x8x128xf32>
    tpu.vector_store %arg2[%c0_61, %c0_62, %c6, %c0_63, %c0_64], %108 {strides = array<i32>} : memref<1x7x12x8x128xf32, #tpu.memory_space<vmem>>, vector<1x1x1x8x128xf32>,
    %c0_65 = arith.constant 0 : index
    %c0_66 = arith.constant 0 : index
    %c7 = arith.constant 7 : index
    %c0_67 = arith.constant 0 : index
    %c0_68 = arith.constant 0 : index
    %109 = vector.load %arg2[%c0_65, %c0_66, %c7, %c0_67, %c0_68] : memref<1x7x12x8x128xf32, #tpu.memory_space<vmem>>, vector<1x1x1x8x128xf32>
    %110 = vector.shape_cast %109 : vector<1x1x1x8x128xf32> to vector<8x128xf32>
    %111 = vector.shape_cast %3 : vector<8x128xf32> to vector<1x1x1x8x128xf32>
    tpu.vector_store %arg2[%c0_65, %c0_66, %c7, %c0_67, %c0_68], %111 {strides = array<i32>} : memref<1x7x12x8x128xf32, #tpu.memory_space<vmem>>, vector<1x1x1x8x128xf32>,
    %c0_69 = arith.constant 0 : index
    %c0_70 = arith.constant 0 : index
    %c8 = arith.constant 8 : index
    %c0_71 = arith.constant 0 : index
    %c0_72 = arith.constant 0 : index
    %112 = vector.load %arg2[%c0_69, %c0_70, %c8, %c0_71, %c0_72] : memref<1x7x12x8x128xf32, #tpu.memory_space<vmem>>, vector<1x1x1x8x128xf32>
    %113 = vector.shape_cast %112 : vector<1x1x1x8x128xf32> to vector<8x128xf32>
    %114 = vector.shape_cast %78 : vector<8x128xf32> to vector<1x1x1x8x128xf32>
    tpu.vector_store %arg2[%c0_69, %c0_70, %c8, %c0_71, %c0_72], %114 {strides = array<i32>} : memref<1x7x12x8x128xf32, #tpu.memory_space<vmem>>, vector<1x1x1x8x128xf32>,
    %c0_73 = arith.constant 0 : index
    %c0_74 = arith.constant 0 : index
    %c9 = arith.constant 9 : index
    %c0_75 = arith.constant 0 : index
    %c0_76 = arith.constant 0 : index
    %115 = vector.load %arg2[%c0_73, %c0_74, %c9, %c0_75, %c0_76] : memref<1x7x12x8x128xf32, #tpu.memory_space<vmem>>, vector<1x1x1x8x128xf32>
    %116 = vector.shape_cast %115 : vector<1x1x1x8x128xf32> to vector<8x128xf32>
    %117 = vector.shape_cast %82 : vector<8x128xf32> to vector<1x1x1x8x128xf32>
    tpu.vector_store %arg2[%c0_73, %c0_74, %c9, %c0_75, %c0_76], %117 {strides = array<i32>} : memref<1x7x12x8x128xf32, #tpu.memory_space<vmem>>, vector<1x1x1x8x128xf32>,
    %c0_77 = arith.constant 0 : index
    %c0_78 = arith.constant 0 : index
    %c10 = arith.constant 10 : index
    %c0_79 = arith.constant 0 : index
    %c0_80 = arith.constant 0 : index
    %118 = vector.load %arg2[%c0_77, %c0_78, %c10, %c0_79, %c0_80] : memref<1x7x12x8x128xf32, #tpu.memory_space<vmem>>, vector<1x1x1x8x128xf32>
    %119 = vector.shape_cast %118 : vector<1x1x1x8x128xf32> to vector<8x128xf32>
    %120 = vector.shape_cast %87 : vector<8x128xf32> to vector<1x1x1x8x128xf32>
    tpu.vector_store %arg2[%c0_77, %c0_78, %c10, %c0_79, %c0_80], %120 {strides = array<i32>} : memref<1x7x12x8x128xf32, #tpu.memory_space<vmem>>, vector<1x1x1x8x128xf32>,
    %c0_81 = arith.constant 0 : index
    %c0_82 = arith.constant 0 : index
    %c11 = arith.constant 11 : index
    %c0_83 = arith.constant 0 : index
    %c0_84 = arith.constant 0 : index
    %121 = vector.load %arg2[%c0_81, %c0_82, %c11, %c0_83, %c0_84] : memref<1x7x12x8x128xf32, #tpu.memory_space<vmem>>, vector<1x1x1x8x128xf32>
    %122 = vector.shape_cast %121 : vector<1x1x1x8x128xf32> to vector<8x128xf32>
    %123 = vector.shape_cast %5 : vector<8x128xf32> to vector<1x1x1x8x128xf32>
    tpu.vector_store %arg2[%c0_81, %c0_82, %c11, %c0_83, %c0_84], %123 {strides = array<i32>} : memref<1x7x12x8x128xf32, #tpu.memory_space<vmem>>, vector<1x1x1x8x128xf32>,
    %c0_85 = arith.constant 0 : index
    %c6_86 = arith.constant 6 : index
    %c0_87 = arith.constant 0 : index
    %c0_88 = arith.constant 0 : index
    %124 = vector.load %arg1[%c0_85, %c6_86, %c0_87, %c0_88] : memref<1x12x8x128xf32, #tpu.memory_space<vmem>>, vector<1x1x8x128xf32>
    %125 = vector.shape_cast %124 : vector<1x1x8x128xf32> to vector<8x128xf32>
    %126 = math.cos %125 : vector<8x128xf32>
    %127 = math.sin %125 : vector<8x128xf32>
    %cst_89 = arith.constant 1.000000e+00 : f32
    %128 = vector.broadcast %cst_89 : f32 to vector<8x128xf32>
    %129 = arith.subf %128, %126 : vector<8x128xf32>
    %cst_90 = arith.constant 0.747757375 : f32
    %130 = vector.broadcast %cst_90 : f32 to vector<8x128xf32>
    %131 = arith.mulf %129, %130 : vector<8x128xf32>
    %132 = arith.addf %126, %131 : vector<8x128xf32>
    %cst_91 = arith.constant 0.220977411 : f32
    %133 = vector.broadcast %cst_91 : f32 to vector<8x128xf32>
    %134 = arith.mulf %129, %133 : vector<8x128xf32>
    %cst_92 = arith.constant 0.432364821 : f32
    %135 = vector.broadcast %cst_92 : f32 to vector<8x128xf32>
    %136 = arith.mulf %127, %135 : vector<8x128xf32>
    %137 = arith.subf %134, %136 : vector<8x128xf32>
    %cst_93 = arith.constant 0.373878688 : f32
    %138 = vector.broadcast %cst_93 : f32 to vector<8x128xf32>
    %139 = arith.mulf %129, %138 : vector<8x128xf32>
    %cst_94 = arith.constant 0.25554508 : f32
    %140 = vector.broadcast %cst_94 : f32 to vector<8x128xf32>
    %141 = arith.mulf %127, %140 : vector<8x128xf32>
    %142 = arith.addf %139, %141 : vector<8x128xf32>
    %cst_95 = arith.constant 0.220977411 : f32
    %143 = vector.broadcast %cst_95 : f32 to vector<8x128xf32>
    %144 = arith.mulf %129, %143 : vector<8x128xf32>
    %cst_96 = arith.constant 0.432364821 : f32
    %145 = vector.broadcast %cst_96 : f32 to vector<8x128xf32>
    %146 = arith.mulf %127, %145 : vector<8x128xf32>
    %147 = arith.addf %144, %146 : vector<8x128xf32>
    %cst_97 = arith.constant 0.0653032884 : f32
    %148 = vector.broadcast %cst_97 : f32 to vector<8x128xf32>
    %149 = arith.mulf %129, %148 : vector<8x128xf32>
    %150 = arith.addf %126, %149 : vector<8x128xf32>
    %cst_98 = arith.constant 0.110488705 : f32
    %151 = vector.broadcast %cst_98 : f32 to vector<8x128xf32>
    %152 = arith.mulf %129, %151 : vector<8x128xf32>
    %cst_99 = arith.constant 0.864729643 : f32
    %153 = vector.broadcast %cst_99 : f32 to vector<8x128xf32>
    %154 = arith.mulf %127, %153 : vector<8x128xf32>
    %155 = arith.subf %152, %154 : vector<8x128xf32>
    %cst_100 = arith.constant 0.373878688 : f32
    %156 = vector.broadcast %cst_100 : f32 to vector<8x128xf32>
    %157 = arith.mulf %129, %156 : vector<8x128xf32>
    %cst_101 = arith.constant 0.25554508 : f32
    %158 = vector.broadcast %cst_101 : f32 to vector<8x128xf32>
    %159 = arith.mulf %127, %158 : vector<8x128xf32>
    %160 = arith.subf %157, %159 : vector<8x128xf32>
    %cst_102 = arith.constant 0.110488705 : f32
    %161 = vector.broadcast %cst_102 : f32 to vector<8x128xf32>
    %162 = arith.mulf %129, %161 : vector<8x128xf32>
    %cst_103 = arith.constant 0.864729643 : f32
    %163 = vector.broadcast %cst_103 : f32 to vector<8x128xf32>
    %164 = arith.mulf %127, %163 : vector<8x128xf32>
    %165 = arith.addf %162, %164 : vector<8x128xf32>
    %cst_104 = arith.constant 0.186939344 : f32
    %166 = vector.broadcast %cst_104 : f32 to vector<8x128xf32>
    %167 = arith.mulf %129, %166 : vector<8x128xf32>
    %168 = arith.addf %126, %167 : vector<8x128xf32>
    %169 = arith.mulf %47, %132 : vector<8x128xf32>
    %170 = arith.mulf %53, %147 : vector<8x128xf32>
    %171 = arith.addf %169, %170 : vector<8x128xf32>
    %172 = arith.mulf %57, %160 : vector<8x128xf32>
    %173 = arith.addf %171, %172 : vector<8x128xf32>
    %174 = arith.mulf %47, %137 : vector<8x128xf32>
    %175 = arith.mulf %53, %150 : vector<8x128xf32>
    %176 = arith.addf %174, %175 : vector<8x128xf32>
    %177 = arith.mulf %57, %165 : vector<8x128xf32>
    %178 = arith.addf %176, %177 : vector<8x128xf32>
    %179 = arith.mulf %47, %142 : vector<8x128xf32>
    %180 = arith.mulf %53, %155 : vector<8x128xf32>
    %181 = arith.addf %179, %180 : vector<8x128xf32>
    %182 = arith.mulf %57, %168 : vector<8x128xf32>
    %183 = arith.addf %181, %182 : vector<8x128xf32>
    %cst_105 = arith.constant 5.000000e-02 : f32
    %184 = vector.broadcast %cst_105 : f32 to vector<8x128xf32>
    %185 = arith.mulf %47, %184 : vector<8x128xf32>
    %cst_106 = arith.constant 0.000000e+00 : f32
    %186 = vector.broadcast %cst_106 : f32 to vector<8x128xf32>
    %187 = arith.mulf %53, %186 : vector<8x128xf32>
    %188 = arith.addf %185, %187 : vector<8x128xf32>
    %cst_107 = arith.constant 1.000000e-01 : f32
    %189 = vector.broadcast %cst_107 : f32 to vector<8x128xf32>
    %190 = arith.mulf %57, %189 : vector<8x128xf32>
    %191 = arith.addf %188, %190 : vector<8x128xf32>
    %192 = arith.addf %191, %1 : vector<8x128xf32>
    %193 = arith.mulf %61, %132 : vector<8x128xf32>
    %194 = arith.mulf %66, %147 : vector<8x128xf32>
    %195 = arith.addf %193, %194 : vector<8x128xf32>
    %196 = arith.mulf %72, %160 : vector<8x128xf32>
    %197 = arith.addf %195, %196 : vector<8x128xf32>
    %198 = arith.mulf %61, %137 : vector<8x128xf32>
    %199 = arith.mulf %66, %150 : vector<8x128xf32>
    %200 = arith.addf %198, %199 : vector<8x128xf32>
    %201 = arith.mulf %72, %165 : vector<8x128xf32>
    %202 = arith.addf %200, %201 : vector<8x128xf32>
    %203 = arith.mulf %61, %142 : vector<8x128xf32>
    %204 = arith.mulf %66, %155 : vector<8x128xf32>
    %205 = arith.addf %203, %204 : vector<8x128xf32>
    %206 = arith.mulf %72, %168 : vector<8x128xf32>
    %207 = arith.addf %205, %206 : vector<8x128xf32>
    %cst_108 = arith.constant 5.000000e-02 : f32
    %208 = vector.broadcast %cst_108 : f32 to vector<8x128xf32>
    %209 = arith.mulf %61, %208 : vector<8x128xf32>
    %cst_109 = arith.constant 0.000000e+00 : f32
    %210 = vector.broadcast %cst_109 : f32 to vector<8x128xf32>
    %211 = arith.mulf %66, %210 : vector<8x128xf32>
    %212 = arith.addf %209, %211 : vector<8x128xf32>
    %cst_110 = arith.constant 1.000000e-01 : f32
    %213 = vector.broadcast %cst_110 : f32 to vector<8x128xf32>
    %214 = arith.mulf %72, %213 : vector<8x128xf32>
    %215 = arith.addf %212, %214 : vector<8x128xf32>
    %216 = arith.addf %215, %3 : vector<8x128xf32>
    %217 = arith.mulf %78, %132 : vector<8x128xf32>
    %218 = arith.mulf %82, %147 : vector<8x128xf32>
    %219 = arith.addf %217, %218 : vector<8x128xf32>
    %220 = arith.mulf %87, %160 : vector<8x128xf32>
    %221 = arith.addf %219, %220 : vector<8x128xf32>
    %222 = arith.mulf %78, %137 : vector<8x128xf32>
    %223 = arith.mulf %82, %150 : vector<8x128xf32>
    %224 = arith.addf %222, %223 : vector<8x128xf32>
    %225 = arith.mulf %87, %165 : vector<8x128xf32>
    %226 = arith.addf %224, %225 : vector<8x128xf32>
    %227 = arith.mulf %78, %142 : vector<8x128xf32>
    %228 = arith.mulf %82, %155 : vector<8x128xf32>
    %229 = arith.addf %227, %228 : vector<8x128xf32>
    %230 = arith.mulf %87, %168 : vector<8x128xf32>
    %231 = arith.addf %229, %230 : vector<8x128xf32>
    %cst_111 = arith.constant 5.000000e-02 : f32
    %232 = vector.broadcast %cst_111 : f32 to vector<8x128xf32>
    %233 = arith.mulf %78, %232 : vector<8x128xf32>
    %cst_112 = arith.constant 0.000000e+00 : f32
    %234 = vector.broadcast %cst_112 : f32 to vector<8x128xf32>
    %235 = arith.mulf %82, %234 : vector<8x128xf32>
    %236 = arith.addf %233, %235 : vector<8x128xf32>
    %cst_113 = arith.constant 1.000000e-01 : f32
    %237 = vector.broadcast %cst_113 : f32 to vector<8x128xf32>
    %238 = arith.mulf %87, %237 : vector<8x128xf32>
    %239 = arith.addf %236, %238 : vector<8x128xf32>
    %240 = arith.addf %239, %5 : vector<8x128xf32>
    %c0_114 = arith.constant 0 : index
    %c1_115 = arith.constant 1 : index
    %c0_116 = arith.constant 0 : index
    %c0_117 = arith.constant 0 : index
    %c0_118 = arith.constant 0 : index
    %241 = vector.load %arg2[%c0_114, %c1_115, %c0_116, %c0_117, %c0_118] : memref<1x7x12x8x128xf32, #tpu.memory_space<vmem>>, vector<1x1x1x8x128xf32>
    %242 = vector.shape_cast %241 : vector<1x1x1x8x128xf32> to vector<8x128xf32>
    %243 = vector.shape_cast %173 : vector<8x128xf32> to vector<1x1x1x8x128xf32>
    tpu.vector_store %arg2[%c0_114, %c1_115, %c0_116, %c0_117, %c0_118], %243 {strides = array<i32>} : memref<1x7x12x8x128xf32, #tpu.memory_space<vmem>>, vector<1x1x1x8x128xf32>,
    %c0_119 = arith.constant 0 : index
    %c1_120 = arith.constant 1 : index
    %c1_121 = arith.constant 1 : index
    %c0_122 = arith.constant 0 : index
    %c0_123 = arith.constant 0 : index
    %244 = vector.load %arg2[%c0_119, %c1_120, %c1_121, %c0_122, %c0_123] : memref<1x7x12x8x128xf32, #tpu.memory_space<vmem>>, vector<1x1x1x8x128xf32>
    %245 = vector.shape_cast %244 : vector<1x1x1x8x128xf32> to vector<8x128xf32>
    %246 = vector.shape_cast %178 : vector<8x128xf32> to vector<1x1x1x8x128xf32>
    tpu.vector_store %arg2[%c0_119, %c1_120, %c1_121, %c0_122, %c0_123], %246 {strides = array<i32>} : memref<1x7x12x8x128xf32, #tpu.memory_space<vmem>>, vector<1x1x1x8x128xf32>,
    %c0_124 = arith.constant 0 : index
    %c1_125 = arith.constant 1 : index
    %c2_126 = arith.constant 2 : index
    %c0_127 = arith.constant 0 : index
    %c0_128 = arith.constant 0 : index
    %247 = vector.load %arg2[%c0_124, %c1_125, %c2_126, %c0_127, %c0_128] : memref<1x7x12x8x128xf32, #tpu.memory_space<vmem>>, vector<1x1x1x8x128xf32>
    %248 = vector.shape_cast %247 : vector<1x1x1x8x128xf32> to vector<8x128xf32>
    %249 = vector.shape_cast %183 : vector<8x128xf32> to vector<1x1x1x8x128xf32>
    tpu.vector_store %arg2[%c0_124, %c1_125, %c2_126, %c0_127, %c0_128], %249 {strides = array<i32>} : memref<1x7x12x8x128xf32, #tpu.memory_space<vmem>>, vector<1x1x1x8x128xf32>,
    %c0_129 = arith.constant 0 : index
    %c1_130 = arith.constant 1 : index
    %c3_131 = arith.constant 3 : index
    %c0_132 = arith.constant 0 : index
    %c0_133 = arith.constant 0 : index
    %250 = vector.load %arg2[%c0_129, %c1_130, %c3_131, %c0_132, %c0_133] : memref<1x7x12x8x128xf32, #tpu.memory_space<vmem>>, vector<1x1x1x8x128xf32>
    %251 = vector.shape_cast %250 : vector<1x1x1x8x128xf32> to vector<8x128xf32>
    %252 = vector.shape_cast %192 : vector<8x128xf32> to vector<1x1x1x8x128xf32>
    tpu.vector_store %arg2[%c0_129, %c1_130, %c3_131, %c0_132, %c0_133], %252 {strides = array<i32>} : memref<1x7x12x8x128xf32, #tpu.memory_space<vmem>>, vector<1x1x1x8x128xf32>,
    %c0_134 = arith.constant 0 : index
    %c1_135 = arith.constant 1 : index
    %c4_136 = arith.constant 4 : index
    %c0_137 = arith.constant 0 : index
    %c0_138 = arith.constant 0 : index
    %253 = vector.load %arg2[%c0_134, %c1_135, %c4_136, %c0_137, %c0_138] : memref<1x7x12x8x128xf32, #tpu.memory_space<vmem>>, vector<1x1x1x8x128xf32>
    %254 = vector.shape_cast %253 : vector<1x1x1x8x128xf32> to vector<8x128xf32>
    %255 = vector.shape_cast %197 : vector<8x128xf32> to vector<1x1x1x8x128xf32>
    tpu.vector_store %arg2[%c0_134, %c1_135, %c4_136, %c0_137, %c0_138], %255 {strides = array<i32>} : memref<1x7x12x8x128xf32, #tpu.memory_space<vmem>>, vector<1x1x1x8x128xf32>,
    %c0_139 = arith.constant 0 : index
    %c1_140 = arith.constant 1 : index
    %c5_141 = arith.constant 5 : index
    %c0_142 = arith.constant 0 : index
    %c0_143 = arith.constant 0 : index
    %256 = vector.load %arg2[%c0_139, %c1_140, %c5_141, %c0_142, %c0_143] : memref<1x7x12x8x128xf32, #tpu.memory_space<vmem>>, vector<1x1x1x8x128xf32>
    %257 = vector.shape_cast %256 : vector<1x1x1x8x128xf32> to vector<8x128xf32>
    %258 = vector.shape_cast %202 : vector<8x128xf32> to vector<1x1x1x8x128xf32>
    tpu.vector_store %arg2[%c0_139, %c1_140, %c5_141, %c0_142, %c0_143], %258 {strides = array<i32>} : memref<1x7x12x8x128xf32, #tpu.memory_space<vmem>>, vector<1x1x1x8x128xf32>,
    %c0_144 = arith.constant 0 : index
    %c1_145 = arith.constant 1 : index
    %c6_146 = arith.constant 6 : index
    %c0_147 = arith.constant 0 : index
    %c0_148 = arith.constant 0 : index
    %259 = vector.load %arg2[%c0_144, %c1_145, %c6_146, %c0_147, %c0_148] : memref<1x7x12x8x128xf32, #tpu.memory_space<vmem>>, vector<1x1x1x8x128xf32>
    %260 = vector.shape_cast %259 : vector<1x1x1x8x128xf32> to vector<8x128xf32>
    %261 = vector.shape_cast %207 : vector<8x128xf32> to vector<1x1x1x8x128xf32>
    tpu.vector_store %arg2[%c0_144, %c1_145, %c6_146, %c0_147, %c0_148], %261 {strides = array<i32>} : memref<1x7x12x8x128xf32, #tpu.memory_space<vmem>>, vector<1x1x1x8x128xf32>,
    %c0_149 = arith.constant 0 : index
    %c1_150 = arith.constant 1 : index
    %c7_151 = arith.constant 7 : index
    %c0_152 = arith.constant 0 : index
    %c0_153 = arith.constant 0 : index
    %262 = vector.load %arg2[%c0_149, %c1_150, %c7_151, %c0_152, %c0_153] : memref<1x7x12x8x128xf32, #tpu.memory_space<vmem>>, vector<1x1x1x8x128xf32>
    %263 = vector.shape_cast %262 : vector<1x1x1x8x128xf32> to vector<8x128xf32>
    %264 = vector.shape_cast %216 : vector<8x128xf32> to vector<1x1x1x8x128xf32>
    tpu.vector_store %arg2[%c0_149, %c1_150, %c7_151, %c0_152, %c0_153], %264 {strides = array<i32>} : memref<1x7x12x8x128xf32, #tpu.memory_space<vmem>>, vector<1x1x1x8x128xf32>,
    %c0_154 = arith.constant 0 : index
    %c1_155 = arith.constant 1 : index
    %c8_156 = arith.constant 8 : index
    %c0_157 = arith.constant 0 : index
    %c0_158 = arith.constant 0 : index
    %265 = vector.load %arg2[%c0_154, %c1_155, %c8_156, %c0_157, %c0_158] : memref<1x7x12x8x128xf32, #tpu.memory_space<vmem>>, vector<1x1x1x8x128xf32>
    %266 = vector.shape_cast %265 : vector<1x1x1x8x128xf32> to vector<8x128xf32>
    %267 = vector.shape_cast %221 : vector<8x128xf32> to vector<1x1x1x8x128xf32>
    tpu.vector_store %arg2[%c0_154, %c1_155, %c8_156, %c0_157, %c0_158], %267 {strides = array<i32>} : memref<1x7x12x8x128xf32, #tpu.memory_space<vmem>>, vector<1x1x1x8x128xf32>,
    %c0_159 = arith.constant 0 : index
    %c1_160 = arith.constant 1 : index
    %c9_161 = arith.constant 9 : index
    %c0_162 = arith.constant 0 : index
    %c0_163 = arith.constant 0 : index
    %268 = vector.load %arg2[%c0_159, %c1_160, %c9_161, %c0_162, %c0_163] : memref<1x7x12x8x128xf32, #tpu.memory_space<vmem>>, vector<1x1x1x8x128xf32>
    %269 = vector.shape_cast %268 : vector<1x1x1x8x128xf32> to vector<8x128xf32>
    %270 = vector.shape_cast %226 : vector<8x128xf32> to vector<1x1x1x8x128xf32>
    tpu.vector_store %arg2[%c0_159, %c1_160, %c9_161, %c0_162, %c0_163], %270 {strides = array<i32>} : memref<1x7x12x8x128xf32, #tpu.memory_space<vmem>>, vector<1x1x1x8x128xf32>,
    %c0_164 = arith.constant 0 : index
    %c1_165 = arith.constant 1 : index
    %c10_166 = arith.constant 10 : index
    %c0_167 = arith.constant 0 : index
    %c0_168 = arith.constant 0 : index
    %271 = vector.load %arg2[%c0_164, %c1_165, %c10_166, %c0_167, %c0_168] : memref<1x7x12x8x128xf32, #tpu.memory_space<vmem>>, vector<1x1x1x8x128xf32>
    %272 = vector.shape_cast %271 : vector<1x1x1x8x128xf32> to vector<8x128xf32>
    %273 = vector.shape_cast %231 : vector<8x128xf32> to vector<1x1x1x8x128xf32>
    tpu.vector_store %arg2[%c0_164, %c1_165, %c10_166, %c0_167, %c0_168], %273 {strides = array<i32>} : memref<1x7x12x8x128xf32, #tpu.memory_space<vmem>>, vector<1x1x1x8x128xf32>,
    %c0_169 = arith.constant 0 : index
    %c1_170 = arith.constant 1 : index
    %c11_171 = arith.constant 11 : index
    %c0_172 = arith.constant 0 : index
    %c0_173 = arith.constant 0 : index
    %274 = vector.load %arg2[%c0_169, %c1_170, %c11_171, %c0_172, %c0_173] : memref<1x7x12x8x128xf32, #tpu.memory_space<vmem>>, vector<1x1x1x8x128xf32>
    %275 = vector.shape_cast %274 : vector<1x1x1x8x128xf32> to vector<8x128xf32>
    %276 = vector.shape_cast %240 : vector<8x128xf32> to vector<1x1x1x8x128xf32>
    tpu.vector_store %arg2[%c0_169, %c1_170, %c11_171, %c0_172, %c0_173], %276 {strides = array<i32>} : memref<1x7x12x8x128xf32, #tpu.memory_space<vmem>>, vector<1x1x1x8x128xf32>,
    %c0_174 = arith.constant 0 : index
    %c7_175 = arith.constant 7 : index
    %c0_176 = arith.constant 0 : index
    %c0_177 = arith.constant 0 : index
    %277 = vector.load %arg1[%c0_174, %c7_175, %c0_176, %c0_177] : memref<1x12x8x128xf32, #tpu.memory_space<vmem>>, vector<1x1x8x128xf32>
    %278 = vector.shape_cast %277 : vector<1x1x8x128xf32> to vector<8x128xf32>
    %279 = math.cos %278 : vector<8x128xf32>
    %280 = math.sin %278 : vector<8x128xf32>
    %cst_178 = arith.constant 1.000000e+00 : f32
    %281 = vector.broadcast %cst_178 : f32 to vector<8x128xf32>
    %282 = arith.subf %281, %279 : vector<8x128xf32>
    %cst_179 = arith.constant 0.322539538 : f32
    %283 = vector.broadcast %cst_179 : f32 to vector<8x128xf32>
    %284 = arith.mulf %282, %283 : vector<8x128xf32>
    %285 = arith.addf %279, %284 : vector<8x128xf32>
    %cst_180 = arith.constant 0.393047661 : f32
    %286 = vector.broadcast %cst_180 : f32 to vector<8x128xf32>
    %287 = arith.mulf %282, %286 : vector<8x128xf32>
    %cst_181 = arith.constant 0.445523769 : f32
    %288 = vector.broadcast %cst_181 : f32 to vector<8x128xf32>
    %289 = arith.mulf %280, %288 : vector<8x128xf32>
    %290 = arith.subf %287, %289 : vector<8x128xf32>
    %cst_182 = arith.constant 0.253024369 : f32
    %291 = vector.broadcast %cst_182 : f32 to vector<8x128xf32>
    %292 = arith.mulf %282, %291 : vector<8x128xf32>
    %cst_183 = arith.constant 0.692075908 : f32
    %293 = vector.broadcast %cst_183 : f32 to vector<8x128xf32>
    %294 = arith.mulf %280, %293 : vector<8x128xf32>
    %295 = arith.addf %292, %294 : vector<8x128xf32>
    %cst_184 = arith.constant 0.393047661 : f32
    %296 = vector.broadcast %cst_184 : f32 to vector<8x128xf32>
    %297 = arith.mulf %282, %296 : vector<8x128xf32>
    %cst_185 = arith.constant 0.445523769 : f32
    %298 = vector.broadcast %cst_185 : f32 to vector<8x128xf32>
    %299 = arith.mulf %280, %298 : vector<8x128xf32>
    %300 = arith.addf %297, %299 : vector<8x128xf32>
    %cst_186 = arith.constant 0.478969067 : f32
    %301 = vector.broadcast %cst_186 : f32 to vector<8x128xf32>
    %302 = arith.mulf %282, %301 : vector<8x128xf32>
    %303 = arith.addf %279, %302 : vector<8x128xf32>
    %cst_187 = arith.constant 0.308336258 : f32
    %304 = vector.broadcast %cst_187 : f32 to vector<8x128xf32>
    %305 = arith.mulf %282, %304 : vector<8x128xf32>
    %cst_188 = arith.constant 0.567925632 : f32
    %306 = vector.broadcast %cst_188 : f32 to vector<8x128xf32>
    %307 = arith.mulf %280, %306 : vector<8x128xf32>
    %308 = arith.subf %305, %307 : vector<8x128xf32>
    %cst_189 = arith.constant 0.253024369 : f32
    %309 = vector.broadcast %cst_189 : f32 to vector<8x128xf32>
    %310 = arith.mulf %282, %309 : vector<8x128xf32>
    %cst_190 = arith.constant 0.692075908 : f32
    %311 = vector.broadcast %cst_190 : f32 to vector<8x128xf32>
    %312 = arith.mulf %280, %311 : vector<8x128xf32>
    %313 = arith.subf %310, %312 : vector<8x128xf32>
    %cst_191 = arith.constant 0.308336258 : f32
    %314 = vector.broadcast %cst_191 : f32 to vector<8x128xf32>
    %315 = arith.mulf %282, %314 : vector<8x128xf32>
    %cst_192 = arith.constant 0.567925632 : f32
    %316 = vector.broadcast %cst_192 : f32 to vector<8x128xf32>
    %317 = arith.mulf %280, %316 : vector<8x128xf32>
    %318 = arith.addf %315, %317 : vector<8x128xf32>
    %cst_193 = arith.constant 0.198491424 : f32
    %319 = vector.broadcast %cst_193 : f32 to vector<8x128xf32>
    %320 = arith.mulf %282, %319 : vector<8x128xf32>
    %321 = arith.addf %279, %320 : vector<8x128xf32>
    %322 = arith.mulf %173, %285 : vector<8x128xf32>
    %323 = arith.mulf %178, %300 : vector<8x128xf32>
    %324 = arith.addf %322, %323 : vector<8x128xf32>
    %325 = arith.mulf %183, %313 : vector<8x128xf32>
    %326 = arith.addf %324, %325 : vector<8x128xf32>
    %327 = arith.mulf %173, %290 : vector<8x128xf32>
    %328 = arith.mulf %178, %303 : vector<8x128xf32>
    %329 = arith.addf %327, %328 : vector<8x128xf32>
    %330 = arith.mulf %183, %318 : vector<8x128xf32>
    %331 = arith.addf %329, %330 : vector<8x128xf32>
    %332 = arith.mulf %173, %295 : vector<8x128xf32>
    %333 = arith.mulf %178, %308 : vector<8x128xf32>
    %334 = arith.addf %332, %333 : vector<8x128xf32>
    %335 = arith.mulf %183, %321 : vector<8x128xf32>
    %336 = arith.addf %334, %335 : vector<8x128xf32>
    %cst_194 = arith.constant 7.000000e-02 : f32
    %337 = vector.broadcast %cst_194 : f32 to vector<8x128xf32>
    %338 = arith.mulf %173, %337 : vector<8x128xf32>
    %cst_195 = arith.constant 0.00999999977 : f32
    %339 = vector.broadcast %cst_195 : f32 to vector<8x128xf32>
    %340 = arith.mulf %178, %339 : vector<8x128xf32>
    %341 = arith.addf %338, %340 : vector<8x128xf32>
    %cst_196 = arith.constant 1.000000e-01 : f32
    %342 = vector.broadcast %cst_196 : f32 to vector<8x128xf32>
    %343 = arith.mulf %183, %342 : vector<8x128xf32>
    %344 = arith.addf %341, %343 : vector<8x128xf32>
    %345 = arith.addf %344, %192 : vector<8x128xf32>
    %346 = arith.mulf %197, %285 : vector<8x128xf32>
    %347 = arith.mulf %202, %300 : vector<8x128xf32>
    %348 = arith.addf %346, %347 : vector<8x128xf32>
    %349 = arith.mulf %207, %313 : vector<8x128xf32>
    %350 = arith.addf %348, %349 : vector<8x128xf32>
    %351 = arith.mulf %197, %290 : vector<8x128xf32>
    %352 = arith.mulf %202, %303 : vector<8x128xf32>
    %353 = arith.addf %351, %352 : vector<8x128xf32>
    %354 = arith.mulf %207, %318 : vector<8x128xf32>
    %355 = arith.addf %353, %354 : vector<8x128xf32>
    %356 = arith.mulf %197, %295 : vector<8x128xf32>
    %357 = arith.mulf %202, %308 : vector<8x128xf32>
    %358 = arith.addf %356, %357 : vector<8x128xf32>
    %359 = arith.mulf %207, %321 : vector<8x128xf32>
    %360 = arith.addf %358, %359 : vector<8x128xf32>
    %cst_197 = arith.constant 7.000000e-02 : f32
    %361 = vector.broadcast %cst_197 : f32 to vector<8x128xf32>
    %362 = arith.mulf %197, %361 : vector<8x128xf32>
    %cst_198 = arith.constant 0.00999999977 : f32
    %363 = vector.broadcast %cst_198 : f32 to vector<8x128xf32>
    %364 = arith.mulf %202, %363 : vector<8x128xf32>
    %365 = arith.addf %362, %364 : vector<8x128xf32>
    %cst_199 = arith.constant 1.000000e-01 : f32
    %366 = vector.broadcast %cst_199 : f32 to vector<8x128xf32>
    %367 = arith.mulf %207, %366 : vector<8x128xf32>
    %368 = arith.addf %365, %367 : vector<8x128xf32>
    %369 = arith.addf %368, %216 : vector<8x128xf32>
    %370 = arith.mulf %221, %285 : vector<8x128xf32>
    %371 = arith.mulf %226, %300 : vector<8x128xf32>
    %372 = arith.addf %370, %371 : vector<8x128xf32>
    %373 = arith.mulf %231, %313 : vector<8x128xf32>
    %374 = arith.addf %372, %373 : vector<8x128xf32>
    %375 = arith.mulf %221, %290 : vector<8x128xf32>
    %376 = arith.mulf %226, %303 : vector<8x128xf32>
    %377 = arith.addf %375, %376 : vector<8x128xf32>
    %378 = arith.mulf %231, %318 : vector<8x128xf32>
    %379 = arith.addf %377, %378 : vector<8x128xf32>
    %380 = arith.mulf %221, %295 : vector<8x128xf32>
    %381 = arith.mulf %226, %308 : vector<8x128xf32>
    %382 = arith.addf %380, %381 : vector<8x128xf32>
    %383 = arith.mulf %231, %321 : vector<8x128xf32>
    %384 = arith.addf %382, %383 : vector<8x128xf32>
    %cst_200 = arith.constant 7.000000e-02 : f32
    %385 = vector.broadcast %cst_200 : f32 to vector<8x128xf32>
    %386 = arith.mulf %221, %385 : vector<8x128xf32>
    %cst_201 = arith.constant 0.00999999977 : f32
    %387 = vector.broadcast %cst_201 : f32 to vector<8x128xf32>
    %388 = arith.mulf %226, %387 : vector<8x128xf32>
    %389 = arith.addf %386, %388 : vector<8x128xf32>
    %cst_202 = arith.constant 1.000000e-01 : f32
    %390 = vector.broadcast %cst_202 : f32 to vector<8x128xf32>
    %391 = arith.mulf %231, %390 : vector<8x128xf32>
    %392 = arith.addf %389, %391 : vector<8x128xf32>
    %393 = arith.addf %392, %240 : vector<8x128xf32>
    %c0_203 = arith.constant 0 : index
    %c2_204 = arith.constant 2 : index
    %c0_205 = arith.constant 0 : index
    %c0_206 = arith.constant 0 : index
    %c0_207 = arith.constant 0 : index
    %394 = vector.load %arg2[%c0_203, %c2_204, %c0_205, %c0_206, %c0_207] : memref<1x7x12x8x128xf32, #tpu.memory_space<vmem>>, vector<1x1x1x8x128xf32>
    %395 = vector.shape_cast %394 : vector<1x1x1x8x128xf32> to vector<8x128xf32>
    %396 = vector.shape_cast %326 : vector<8x128xf32> to vector<1x1x1x8x128xf32>
    tpu.vector_store %arg2[%c0_203, %c2_204, %c0_205, %c0_206, %c0_207], %396 {strides = array<i32>} : memref<1x7x12x8x128xf32, #tpu.memory_space<vmem>>, vector<1x1x1x8x128xf32>,
    %c0_208 = arith.constant 0 : index
    %c2_209 = arith.constant 2 : index
    %c1_210 = arith.constant 1 : index
    %c0_211 = arith.constant 0 : index
    %c0_212 = arith.constant 0 : index
    %397 = vector.load %arg2[%c0_208, %c2_209, %c1_210, %c0_211, %c0_212] : memref<1x7x12x8x128xf32, #tpu.memory_space<vmem>>, vector<1x1x1x8x128xf32>
    %398 = vector.shape_cast %397 : vector<1x1x1x8x128xf32> to vector<8x128xf32>
    %399 = vector.shape_cast %331 : vector<8x128xf32> to vector<1x1x1x8x128xf32>
    tpu.vector_store %arg2[%c0_208, %c2_209, %c1_210, %c0_211, %c0_212], %399 {strides = array<i32>} : memref<1x7x12x8x128xf32, #tpu.memory_space<vmem>>, vector<1x1x1x8x128xf32>,
    %c0_213 = arith.constant 0 : index
    %c2_214 = arith.constant 2 : index
    %c2_215 = arith.constant 2 : index
    %c0_216 = arith.constant 0 : index
    %c0_217 = arith.constant 0 : index
    %400 = vector.load %arg2[%c0_213, %c2_214, %c2_215, %c0_216, %c0_217] : memref<1x7x12x8x128xf32, #tpu.memory_space<vmem>>, vector<1x1x1x8x128xf32>
    %401 = vector.shape_cast %400 : vector<1x1x1x8x128xf32> to vector<8x128xf32>
    %402 = vector.shape_cast %336 : vector<8x128xf32> to vector<1x1x1x8x128xf32>
    tpu.vector_store %arg2[%c0_213, %c2_214, %c2_215, %c0_216, %c0_217], %402 {strides = array<i32>} : memref<1x7x12x8x128xf32, #tpu.memory_space<vmem>>, vector<1x1x1x8x128xf32>,
    %c0_218 = arith.constant 0 : index
    %c2_219 = arith.constant 2 : index
    %c3_220 = arith.constant 3 : index
    %c0_221 = arith.constant 0 : index
    %c0_222 = arith.constant 0 : index
    %403 = vector.load %arg2[%c0_218, %c2_219, %c3_220, %c0_221, %c0_222] : memref<1x7x12x8x128xf32, #tpu.memory_space<vmem>>, vector<1x1x1x8x128xf32>
    %404 = vector.shape_cast %403 : vector<1x1x1x8x128xf32> to vector<8x128xf32>
    %405 = vector.shape_cast %345 : vector<8x128xf32> to vector<1x1x1x8x128xf32>
    tpu.vector_store %arg2[%c0_218, %c2_219, %c3_220, %c0_221, %c0_222], %405 {strides = array<i32>} : memref<1x7x12x8x128xf32, #tpu.memory_space<vmem>>, vector<1x1x1x8x128xf32>,
    %c0_223 = arith.constant 0 : index
    %c2_224 = arith.constant 2 : index
    %c4_225 = arith.constant 4 : index
    %c0_226 = arith.constant 0 : index
    %c0_227 = arith.constant 0 : index
    %406 = vector.load %arg2[%c0_223, %c2_224, %c4_225, %c0_226, %c0_227] : memref<1x7x12x8x128xf32, #tpu.memory_space<vmem>>, vector<1x1x1x8x128xf32>
    %407 = vector.shape_cast %406 : vector<1x1x1x8x128xf32> to vector<8x128xf32>
    %408 = vector.shape_cast %350 : vector<8x128xf32> to vector<1x1x1x8x128xf32>
    tpu.vector_store %arg2[%c0_223, %c2_224, %c4_225, %c0_226, %c0_227], %408 {strides = array<i32>} : memref<1x7x12x8x128xf32, #tpu.memory_space<vmem>>, vector<1x1x1x8x128xf32>,
    %c0_228 = arith.constant 0 : index
    %c2_229 = arith.constant 2 : index
    %c5_230 = arith.constant 5 : index
    %c0_231 = arith.constant 0 : index
    %c0_232 = arith.constant 0 : index
    %409 = vector.load %arg2[%c0_228, %c2_229, %c5_230, %c0_231, %c0_232] : memref<1x7x12x8x128xf32, #tpu.memory_space<vmem>>, vector<1x1x1x8x128xf32>
    %410 = vector.shape_cast %409 : vector<1x1x1x8x128xf32> to vector<8x128xf32>
    %411 = vector.shape_cast %355 : vector<8x128xf32> to vector<1x1x1x8x128xf32>
    tpu.vector_store %arg2[%c0_228, %c2_229, %c5_230, %c0_231, %c0_232], %411 {strides = array<i32>} : memref<1x7x12x8x128xf32, #tpu.memory_space<vmem>>, vector<1x1x1x8x128xf32>,
    %c0_233 = arith.constant 0 : index
    %c2_234 = arith.constant 2 : index
    %c6_235 = arith.constant 6 : index
    %c0_236 = arith.constant 0 : index
    %c0_237 = arith.constant 0 : index
    %412 = vector.load %arg2[%c0_233, %c2_234, %c6_235, %c0_236, %c0_237] : memref<1x7x12x8x128xf32, #tpu.memory_space<vmem>>, vector<1x1x1x8x128xf32>
    %413 = vector.shape_cast %412 : vector<1x1x1x8x128xf32> to vector<8x128xf32>
    %414 = vector.shape_cast %360 : vector<8x128xf32> to vector<1x1x1x8x128xf32>
    tpu.vector_store %arg2[%c0_233, %c2_234, %c6_235, %c0_236, %c0_237], %414 {strides = array<i32>} : memref<1x7x12x8x128xf32, #tpu.memory_space<vmem>>, vector<1x1x1x8x128xf32>,
    %c0_238 = arith.constant 0 : index
    %c2_239 = arith.constant 2 : index
    %c7_240 = arith.constant 7 : index
    %c0_241 = arith.constant 0 : index
    %c0_242 = arith.constant 0 : index
    %415 = vector.load %arg2[%c0_238, %c2_239, %c7_240, %c0_241, %c0_242] : memref<1x7x12x8x128xf32, #tpu.memory_space<vmem>>, vector<1x1x1x8x128xf32>
    %416 = vector.shape_cast %415 : vector<1x1x1x8x128xf32> to vector<8x128xf32>
    %417 = vector.shape_cast %369 : vector<8x128xf32> to vector<1x1x1x8x128xf32>
    tpu.vector_store %arg2[%c0_238, %c2_239, %c7_240, %c0_241, %c0_242], %417 {strides = array<i32>} : memref<1x7x12x8x128xf32, #tpu.memory_space<vmem>>, vector<1x1x1x8x128xf32>,
    %c0_243 = arith.constant 0 : index
    %c2_244 = arith.constant 2 : index
    %c8_245 = arith.constant 8 : index
    %c0_246 = arith.constant 0 : index
    %c0_247 = arith.constant 0 : index
    %418 = vector.load %arg2[%c0_243, %c2_244, %c8_245, %c0_246, %c0_247] : memref<1x7x12x8x128xf32, #tpu.memory_space<vmem>>, vector<1x1x1x8x128xf32>
    %419 = vector.shape_cast %418 : vector<1x1x1x8x128xf32> to vector<8x128xf32>
    %420 = vector.shape_cast %374 : vector<8x128xf32> to vector<1x1x1x8x128xf32>
    tpu.vector_store %arg2[%c0_243, %c2_244, %c8_245, %c0_246, %c0_247], %420 {strides = array<i32>} : memref<1x7x12x8x128xf32, #tpu.memory_space<vmem>>, vector<1x1x1x8x128xf32>,
    %c0_248 = arith.constant 0 : index
    %c2_249 = arith.constant 2 : index
    %c9_250 = arith.constant 9 : index
    %c0_251 = arith.constant 0 : index
    %c0_252 = arith.constant 0 : index
    %421 = vector.load %arg2[%c0_248, %c2_249, %c9_250, %c0_251, %c0_252] : memref<1x7x12x8x128xf32, #tpu.memory_space<vmem>>, vector<1x1x1x8x128xf32>
    %422 = vector.shape_cast %421 : vector<1x1x1x8x128xf32> to vector<8x128xf32>
    %423 = vector.shape_cast %379 : vector<8x128xf32> to vector<1x1x1x8x128xf32>
    tpu.vector_store %arg2[%c0_248, %c2_249, %c9_250, %c0_251, %c0_252], %423 {strides = array<i32>} : memref<1x7x12x8x128xf32, #tpu.memory_space<vmem>>, vector<1x1x1x8x128xf32>,
    %c0_253 = arith.constant 0 : index
    %c2_254 = arith.constant 2 : index
    %c10_255 = arith.constant 10 : index
    %c0_256 = arith.constant 0 : index
    %c0_257 = arith.constant 0 : index
    %424 = vector.load %arg2[%c0_253, %c2_254, %c10_255, %c0_256, %c0_257] : memref<1x7x12x8x128xf32, #tpu.memory_space<vmem>>, vector<1x1x1x8x128xf32>
    %425 = vector.shape_cast %424 : vector<1x1x1x8x128xf32> to vector<8x128xf32>
    %426 = vector.shape_cast %384 : vector<8x128xf32> to vector<1x1x1x8x128xf32>
    tpu.vector_store %arg2[%c0_253, %c2_254, %c10_255, %c0_256, %c0_257], %426 {strides = array<i32>} : memref<1x7x12x8x128xf32, #tpu.memory_space<vmem>>, vector<1x1x1x8x128xf32>,
    %c0_258 = arith.constant 0 : index
    %c2_259 = arith.constant 2 : index
    %c11_260 = arith.constant 11 : index
    %c0_261 = arith.constant 0 : index
    %c0_262 = arith.constant 0 : index
    %427 = vector.load %arg2[%c0_258, %c2_259, %c11_260, %c0_261, %c0_262] : memref<1x7x12x8x128xf32, #tpu.memory_space<vmem>>, vector<1x1x1x8x128xf32>
    %428 = vector.shape_cast %427 : vector<1x1x1x8x128xf32> to vector<8x128xf32>
    %429 = vector.shape_cast %393 : vector<8x128xf32> to vector<1x1x1x8x128xf32>
    tpu.vector_store %arg2[%c0_258, %c2_259, %c11_260, %c0_261, %c0_262], %429 {strides = array<i32>} : memref<1x7x12x8x128xf32, #tpu.memory_space<vmem>>, vector<1x1x1x8x128xf32>,
    %c0_263 = arith.constant 0 : index
    %c8_264 = arith.constant 8 : index
    %c0_265 = arith.constant 0 : index
    %c0_266 = arith.constant 0 : index
    %430 = vector.load %arg1[%c0_263, %c8_264, %c0_265, %c0_266] : memref<1x12x8x128xf32, #tpu.memory_space<vmem>>, vector<1x1x8x128xf32>
    %431 = vector.shape_cast %430 : vector<1x1x8x128xf32> to vector<8x128xf32>
    %432 = math.cos %431 : vector<8x128xf32>
    %433 = math.sin %431 : vector<8x128xf32>
    %cst_267 = arith.constant 1.000000e+00 : f32
    %434 = vector.broadcast %cst_267 : f32 to vector<8x128xf32>
    %435 = arith.subf %434, %432 : vector<8x128xf32>
    %cst_268 = arith.constant 0.0228547435 : f32
    %436 = vector.broadcast %cst_268 : f32 to vector<8x128xf32>
    %437 = arith.mulf %435, %436 : vector<8x128xf32>
    %438 = arith.addf %432, %437 : vector<8x128xf32>
    %cst_269 = arith.constant 0.116072007 : f32
    %439 = vector.broadcast %cst_269 : f32 to vector<8x128xf32>
    %440 = arith.mulf %435, %439 : vector<8x128xf32>
    %cst_270 = arith.constant 0.622617364 : f32
    %441 = vector.broadcast %cst_270 : f32 to vector<8x128xf32>
    %442 = arith.mulf %433, %441 : vector<8x128xf32>
    %443 = arith.subf %440, %442 : vector<8x128xf32>
    %cst_271 = arith.constant 0.0941259562 : f32
    %444 = vector.broadcast %cst_271 : f32 to vector<8x128xf32>
    %445 = arith.mulf %435, %444 : vector<8x128xf32>
    %cst_272 = arith.constant 0.767784476 : f32
    %446 = vector.broadcast %cst_272 : f32 to vector<8x128xf32>
    %447 = arith.mulf %433, %446 : vector<8x128xf32>
    %448 = arith.addf %445, %447 : vector<8x128xf32>
    %cst_273 = arith.constant 0.116072007 : f32
    %449 = vector.broadcast %cst_273 : f32 to vector<8x128xf32>
    %450 = arith.mulf %435, %449 : vector<8x128xf32>
    %cst_274 = arith.constant 0.622617364 : f32
    %451 = vector.broadcast %cst_274 : f32 to vector<8x128xf32>
    %452 = arith.mulf %433, %451 : vector<8x128xf32>
    %453 = arith.addf %450, %452 : vector<8x128xf32>
    %cst_275 = arith.constant 5.894930e-01 : f32
    %454 = vector.broadcast %cst_275 : f32 to vector<8x128xf32>
    %455 = arith.mulf %435, %454 : vector<8x128xf32>
    %456 = arith.addf %432, %455 : vector<8x128xf32>
    %cst_276 = arith.constant 0.478035957 : f32
    %457 = vector.broadcast %cst_276 : f32 to vector<8x128xf32>
    %458 = arith.mulf %435, %457 : vector<8x128xf32>
    %cst_277 = arith.constant 0.151177853 : f32
    %459 = vector.broadcast %cst_277 : f32 to vector<8x128xf32>
    %460 = arith.mulf %433, %459 : vector<8x128xf32>
    %461 = arith.subf %458, %460 : vector<8x128xf32>
    %cst_278 = arith.constant 0.0941259562 : f32
    %462 = vector.broadcast %cst_278 : f32 to vector<8x128xf32>
    %463 = arith.mulf %435, %462 : vector<8x128xf32>
    %cst_279 = arith.constant 0.767784476 : f32
    %464 = vector.broadcast %cst_279 : f32 to vector<8x128xf32>
    %465 = arith.mulf %433, %464 : vector<8x128xf32>
    %466 = arith.subf %463, %465 : vector<8x128xf32>
    %cst_280 = arith.constant 0.478035957 : f32
    %467 = vector.broadcast %cst_280 : f32 to vector<8x128xf32>
    %468 = arith.mulf %435, %467 : vector<8x128xf32>
    %cst_281 = arith.constant 0.151177853 : f32
    %469 = vector.broadcast %cst_281 : f32 to vector<8x128xf32>
    %470 = arith.mulf %433, %469 : vector<8x128xf32>
    %471 = arith.addf %468, %470 : vector<8x128xf32>
    %cst_282 = arith.constant 0.387652367 : f32
    %472 = vector.broadcast %cst_282 : f32 to vector<8x128xf32>
    %473 = arith.mulf %435, %472 : vector<8x128xf32>
    %474 = arith.addf %432, %473 : vector<8x128xf32>
    %475 = arith.mulf %326, %438 : vector<8x128xf32>
    %476 = arith.mulf %331, %453 : vector<8x128xf32>
    %477 = arith.addf %475, %476 : vector<8x128xf32>
    %478 = arith.mulf %336, %466 : vector<8x128xf32>
    %479 = arith.addf %477, %478 : vector<8x128xf32>
    %480 = arith.mulf %326, %443 : vector<8x128xf32>
    %481 = arith.mulf %331, %456 : vector<8x128xf32>
    %482 = arith.addf %480, %481 : vector<8x128xf32>
    %483 = arith.mulf %336, %471 : vector<8x128xf32>
    %484 = arith.addf %482, %483 : vector<8x128xf32>
    %485 = arith.mulf %326, %448 : vector<8x128xf32>
    %486 = arith.mulf %331, %461 : vector<8x128xf32>
    %487 = arith.addf %485, %486 : vector<8x128xf32>
    %488 = arith.mulf %336, %474 : vector<8x128xf32>
    %489 = arith.addf %487, %488 : vector<8x128xf32>
    %cst_283 = arith.constant 9.000000e-02 : f32
    %490 = vector.broadcast %cst_283 : f32 to vector<8x128xf32>
    %491 = arith.mulf %326, %490 : vector<8x128xf32>
    %cst_284 = arith.constant 2.000000e-02 : f32
    %492 = vector.broadcast %cst_284 : f32 to vector<8x128xf32>
    %493 = arith.mulf %331, %492 : vector<8x128xf32>
    %494 = arith.addf %491, %493 : vector<8x128xf32>
    %cst_285 = arith.constant 1.000000e-01 : f32
    %495 = vector.broadcast %cst_285 : f32 to vector<8x128xf32>
    %496 = arith.mulf %336, %495 : vector<8x128xf32>
    %497 = arith.addf %494, %496 : vector<8x128xf32>
    %498 = arith.addf %497, %345 : vector<8x128xf32>
    %499 = arith.mulf %350, %438 : vector<8x128xf32>
    %500 = arith.mulf %355, %453 : vector<8x128xf32>
    %501 = arith.addf %499, %500 : vector<8x128xf32>
    %502 = arith.mulf %360, %466 : vector<8x128xf32>
    %503 = arith.addf %501, %502 : vector<8x128xf32>
    %504 = arith.mulf %350, %443 : vector<8x128xf32>
    %505 = arith.mulf %355, %456 : vector<8x128xf32>
    %506 = arith.addf %504, %505 : vector<8x128xf32>
    %507 = arith.mulf %360, %471 : vector<8x128xf32>
    %508 = arith.addf %506, %507 : vector<8x128xf32>
    %509 = arith.mulf %350, %448 : vector<8x128xf32>
    %510 = arith.mulf %355, %461 : vector<8x128xf32>
    %511 = arith.addf %509, %510 : vector<8x128xf32>
    %512 = arith.mulf %360, %474 : vector<8x128xf32>
    %513 = arith.addf %511, %512 : vector<8x128xf32>
    %cst_286 = arith.constant 9.000000e-02 : f32
    %514 = vector.broadcast %cst_286 : f32 to vector<8x128xf32>
    %515 = arith.mulf %350, %514 : vector<8x128xf32>
    %cst_287 = arith.constant 2.000000e-02 : f32
    %516 = vector.broadcast %cst_287 : f32 to vector<8x128xf32>
    %517 = arith.mulf %355, %516 : vector<8x128xf32>
    %518 = arith.addf %515, %517 : vector<8x128xf32>
    %cst_288 = arith.constant 1.000000e-01 : f32
    %519 = vector.broadcast %cst_288 : f32 to vector<8x128xf32>
    %520 = arith.mulf %360, %519 : vector<8x128xf32>
    %521 = arith.addf %518, %520 : vector<8x128xf32>
    %522 = arith.addf %521, %369 : vector<8x128xf32>
    %523 = arith.mulf %374, %438 : vector<8x128xf32>
    %524 = arith.mulf %379, %453 : vector<8x128xf32>
    %525 = arith.addf %523, %524 : vector<8x128xf32>
    %526 = arith.mulf %384, %466 : vector<8x128xf32>
    %527 = arith.addf %525, %526 : vector<8x128xf32>
    %528 = arith.mulf %374, %443 : vector<8x128xf32>
    %529 = arith.mulf %379, %456 : vector<8x128xf32>
    %530 = arith.addf %528, %529 : vector<8x128xf32>
    %531 = arith.mulf %384, %471 : vector<8x128xf32>
    %532 = arith.addf %530, %531 : vector<8x128xf32>
    %533 = arith.mulf %374, %448 : vector<8x128xf32>
    %534 = arith.mulf %379, %461 : vector<8x128xf32>
    %535 = arith.addf %533, %534 : vector<8x128xf32>
    %536 = arith.mulf %384, %474 : vector<8x128xf32>
    %537 = arith.addf %535, %536 : vector<8x128xf32>
    %cst_289 = arith.constant 9.000000e-02 : f32
    %538 = vector.broadcast %cst_289 : f32 to vector<8x128xf32>
    %539 = arith.mulf %374, %538 : vector<8x128xf32>
    %cst_290 = arith.constant 2.000000e-02 : f32
    %540 = vector.broadcast %cst_290 : f32 to vector<8x128xf32>
    %541 = arith.mulf %379, %540 : vector<8x128xf32>
    %542 = arith.addf %539, %541 : vector<8x128xf32>
    %cst_291 = arith.constant 1.000000e-01 : f32
    %543 = vector.broadcast %cst_291 : f32 to vector<8x128xf32>
    %544 = arith.mulf %384, %543 : vector<8x128xf32>
    %545 = arith.addf %542, %544 : vector<8x128xf32>
    %546 = arith.addf %545, %393 : vector<8x128xf32>
    %c0_292 = arith.constant 0 : index
    %c3_293 = arith.constant 3 : index
    %c0_294 = arith.constant 0 : index
    %c0_295 = arith.constant 0 : index
    %c0_296 = arith.constant 0 : index
    %547 = vector.load %arg2[%c0_292, %c3_293, %c0_294, %c0_295, %c0_296] : memref<1x7x12x8x128xf32, #tpu.memory_space<vmem>>, vector<1x1x1x8x128xf32>
    %548 = vector.shape_cast %547 : vector<1x1x1x8x128xf32> to vector<8x128xf32>
    %549 = vector.shape_cast %479 : vector<8x128xf32> to vector<1x1x1x8x128xf32>
    tpu.vector_store %arg2[%c0_292, %c3_293, %c0_294, %c0_295, %c0_296], %549 {strides = array<i32>} : memref<1x7x12x8x128xf32, #tpu.memory_space<vmem>>, vector<1x1x1x8x128xf32>,
    %c0_297 = arith.constant 0 : index
    %c3_298 = arith.constant 3 : index
    %c1_299 = arith.constant 1 : index
    %c0_300 = arith.constant 0 : index
    %c0_301 = arith.constant 0 : index
    %550 = vector.load %arg2[%c0_297, %c3_298, %c1_299, %c0_300, %c0_301] : memref<1x7x12x8x128xf32, #tpu.memory_space<vmem>>, vector<1x1x1x8x128xf32>
    %551 = vector.shape_cast %550 : vector<1x1x1x8x128xf32> to vector<8x128xf32>
    %552 = vector.shape_cast %484 : vector<8x128xf32> to vector<1x1x1x8x128xf32>
    tpu.vector_store %arg2[%c0_297, %c3_298, %c1_299, %c0_300, %c0_301], %552 {strides = array<i32>} : memref<1x7x12x8x128xf32, #tpu.memory_space<vmem>>, vector<1x1x1x8x128xf32>,
    %c0_302 = arith.constant 0 : index
    %c3_303 = arith.constant 3 : index
    %c2_304 = arith.constant 2 : index
    %c0_305 = arith.constant 0 : index
    %c0_306 = arith.constant 0 : index
    %553 = vector.load %arg2[%c0_302, %c3_303, %c2_304, %c0_305, %c0_306] : memref<1x7x12x8x128xf32, #tpu.memory_space<vmem>>, vector<1x1x1x8x128xf32>
    %554 = vector.shape_cast %553 : vector<1x1x1x8x128xf32> to vector<8x128xf32>
    %555 = vector.shape_cast %489 : vector<8x128xf32> to vector<1x1x1x8x128xf32>
    tpu.vector_store %arg2[%c0_302, %c3_303, %c2_304, %c0_305, %c0_306], %555 {strides = array<i32>} : memref<1x7x12x8x128xf32, #tpu.memory_space<vmem>>, vector<1x1x1x8x128xf32>,
    %c0_307 = arith.constant 0 : index
    %c3_308 = arith.constant 3 : index
    %c3_309 = arith.constant 3 : index
    %c0_310 = arith.constant 0 : index
    %c0_311 = arith.constant 0 : index
    %556 = vector.load %arg2[%c0_307, %c3_308, %c3_309, %c0_310, %c0_311] : memref<1x7x12x8x128xf32, #tpu.memory_space<vmem>>, vector<1x1x1x8x128xf32>
    %557 = vector.shape_cast %556 : vector<1x1x1x8x128xf32> to vector<8x128xf32>
    %558 = vector.shape_cast %498 : vector<8x128xf32> to vector<1x1x1x8x128xf32>
    tpu.vector_store %arg2[%c0_307, %c3_308, %c3_309, %c0_310, %c0_311], %558 {strides = array<i32>} : memref<1x7x12x8x128xf32, #tpu.memory_space<vmem>>, vector<1x1x1x8x128xf32>,
    %c0_312 = arith.constant 0 : index
    %c3_313 = arith.constant 3 : index
    %c4_314 = arith.constant 4 : index
    %c0_315 = arith.constant 0 : index
    %c0_316 = arith.constant 0 : index
    %559 = vector.load %arg2[%c0_312, %c3_313, %c4_314, %c0_315, %c0_316] : memref<1x7x12x8x128xf32, #tpu.memory_space<vmem>>, vector<1x1x1x8x128xf32>
    %560 = vector.shape_cast %559 : vector<1x1x1x8x128xf32> to vector<8x128xf32>
    %561 = vector.shape_cast %503 : vector<8x128xf32> to vector<1x1x1x8x128xf32>
    tpu.vector_store %arg2[%c0_312, %c3_313, %c4_314, %c0_315, %c0_316], %561 {strides = array<i32>} : memref<1x7x12x8x128xf32, #tpu.memory_space<vmem>>, vector<1x1x1x8x128xf32>,
    %c0_317 = arith.constant 0 : index
    %c3_318 = arith.constant 3 : index
    %c5_319 = arith.constant 5 : index
    %c0_320 = arith.constant 0 : index
    %c0_321 = arith.constant 0 : index
    %562 = vector.load %arg2[%c0_317, %c3_318, %c5_319, %c0_320, %c0_321] : memref<1x7x12x8x128xf32, #tpu.memory_space<vmem>>, vector<1x1x1x8x128xf32>
    %563 = vector.shape_cast %562 : vector<1x1x1x8x128xf32> to vector<8x128xf32>
    %564 = vector.shape_cast %508 : vector<8x128xf32> to vector<1x1x1x8x128xf32>
    tpu.vector_store %arg2[%c0_317, %c3_318, %c5_319, %c0_320, %c0_321], %564 {strides = array<i32>} : memref<1x7x12x8x128xf32, #tpu.memory_space<vmem>>, vector<1x1x1x8x128xf32>,
    %c0_322 = arith.constant 0 : index
    %c3_323 = arith.constant 3 : index
    %c6_324 = arith.constant 6 : index
    %c0_325 = arith.constant 0 : index
    %c0_326 = arith.constant 0 : index
    %565 = vector.load %arg2[%c0_322, %c3_323, %c6_324, %c0_325, %c0_326] : memref<1x7x12x8x128xf32, #tpu.memory_space<vmem>>, vector<1x1x1x8x128xf32>
    %566 = vector.shape_cast %565 : vector<1x1x1x8x128xf32> to vector<8x128xf32>
    %567 = vector.shape_cast %513 : vector<8x128xf32> to vector<1x1x1x8x128xf32>
    tpu.vector_store %arg2[%c0_322, %c3_323, %c6_324, %c0_325, %c0_326], %567 {strides = array<i32>} : memref<1x7x12x8x128xf32, #tpu.memory_space<vmem>>, vector<1x1x1x8x128xf32>,
    %c0_327 = arith.constant 0 : index
    %c3_328 = arith.constant 3 : index
    %c7_329 = arith.constant 7 : index
    %c0_330 = arith.constant 0 : index
    %c0_331 = arith.constant 0 : index
    %568 = vector.load %arg2[%c0_327, %c3_328, %c7_329, %c0_330, %c0_331] : memref<1x7x12x8x128xf32, #tpu.memory_space<vmem>>, vector<1x1x1x8x128xf32>
    %569 = vector.shape_cast %568 : vector<1x1x1x8x128xf32> to vector<8x128xf32>
    %570 = vector.shape_cast %522 : vector<8x128xf32> to vector<1x1x1x8x128xf32>
    tpu.vector_store %arg2[%c0_327, %c3_328, %c7_329, %c0_330, %c0_331], %570 {strides = array<i32>} : memref<1x7x12x8x128xf32, #tpu.memory_space<vmem>>, vector<1x1x1x8x128xf32>,
    %c0_332 = arith.constant 0 : index
    %c3_333 = arith.constant 3 : index
    %c8_334 = arith.constant 8 : index
    %c0_335 = arith.constant 0 : index
    %c0_336 = arith.constant 0 : index
    %571 = vector.load %arg2[%c0_332, %c3_333, %c8_334, %c0_335, %c0_336] : memref<1x7x12x8x128xf32, #tpu.memory_space<vmem>>, vector<1x1x1x8x128xf32>
    %572 = vector.shape_cast %571 : vector<1x1x1x8x128xf32> to vector<8x128xf32>
    %573 = vector.shape_cast %527 : vector<8x128xf32> to vector<1x1x1x8x128xf32>
    tpu.vector_store %arg2[%c0_332, %c3_333, %c8_334, %c0_335, %c0_336], %573 {strides = array<i32>} : memref<1x7x12x8x128xf32, #tpu.memory_space<vmem>>, vector<1x1x1x8x128xf32>,
    %c0_337 = arith.constant 0 : index
    %c3_338 = arith.constant 3 : index
    %c9_339 = arith.constant 9 : index
    %c0_340 = arith.constant 0 : index
    %c0_341 = arith.constant 0 : index
    %574 = vector.load %arg2[%c0_337, %c3_338, %c9_339, %c0_340, %c0_341] : memref<1x7x12x8x128xf32, #tpu.memory_space<vmem>>, vector<1x1x1x8x128xf32>
    %575 = vector.shape_cast %574 : vector<1x1x1x8x128xf32> to vector<8x128xf32>
    %576 = vector.shape_cast %532 : vector<8x128xf32> to vector<1x1x1x8x128xf32>
    tpu.vector_store %arg2[%c0_337, %c3_338, %c9_339, %c0_340, %c0_341], %576 {strides = array<i32>} : memref<1x7x12x8x128xf32, #tpu.memory_space<vmem>>, vector<1x1x1x8x128xf32>,
    %c0_342 = arith.constant 0 : index
    %c3_343 = arith.constant 3 : index
    %c10_344 = arith.constant 10 : index
    %c0_345 = arith.constant 0 : index
    %c0_346 = arith.constant 0 : index
    %577 = vector.load %arg2[%c0_342, %c3_343, %c10_344, %c0_345, %c0_346] : memref<1x7x12x8x128xf32, #tpu.memory_space<vmem>>, vector<1x1x1x8x128xf32>
    %578 = vector.shape_cast %577 : vector<1x1x1x8x128xf32> to vector<8x128xf32>
    %579 = vector.shape_cast %537 : vector<8x128xf32> to vector<1x1x1x8x128xf32>
    tpu.vector_store %arg2[%c0_342, %c3_343, %c10_344, %c0_345, %c0_346], %579 {strides = array<i32>} : memref<1x7x12x8x128xf32, #tpu.memory_space<vmem>>, vector<1x1x1x8x128xf32>,
    %c0_347 = arith.constant 0 : index
    %c3_348 = arith.constant 3 : index
    %c11_349 = arith.constant 11 : index
    %c0_350 = arith.constant 0 : index
    %c0_351 = arith.constant 0 : index
    %580 = vector.load %arg2[%c0_347, %c3_348, %c11_349, %c0_350, %c0_351] : memref<1x7x12x8x128xf32, #tpu.memory_space<vmem>>, vector<1x1x1x8x128xf32>
    %581 = vector.shape_cast %580 : vector<1x1x1x8x128xf32> to vector<8x128xf32>
    %582 = vector.shape_cast %546 : vector<8x128xf32> to vector<1x1x1x8x128xf32>
    tpu.vector_store %arg2[%c0_347, %c3_348, %c11_349, %c0_350, %c0_351], %582 {strides = array<i32>} : memref<1x7x12x8x128xf32, #tpu.memory_space<vmem>>, vector<1x1x1x8x128xf32>,
    %c0_352 = arith.constant 0 : index
    %c9_353 = arith.constant 9 : index
    %c0_354 = arith.constant 0 : index
    %c0_355 = arith.constant 0 : index
    %583 = vector.load %arg1[%c0_352, %c9_353, %c0_354, %c0_355] : memref<1x12x8x128xf32, #tpu.memory_space<vmem>>, vector<1x1x8x128xf32>
    %584 = vector.shape_cast %583 : vector<1x1x8x128xf32> to vector<8x128xf32>
    %585 = math.cos %584 : vector<8x128xf32>
    %586 = math.sin %584 : vector<8x128xf32>
    %cst_356 = arith.constant 1.000000e+00 : f32
    %587 = vector.broadcast %cst_356 : f32 to vector<8x128xf32>
    %588 = arith.subf %587, %585 : vector<8x128xf32>
    %cst_357 = arith.constant 0.27861163 : f32
    %589 = vector.broadcast %cst_357 : f32 to vector<8x128xf32>
    %590 = arith.mulf %588, %589 : vector<8x128xf32>
    %591 = arith.addf %585, %590 : vector<8x128xf32>
    %cst_358 = arith.constant -0.0778805091 : f32
    %592 = vector.broadcast %cst_358 : f32 to vector<8x128xf32>
    %593 = arith.mulf %588, %592 : vector<8x128xf32>
    %cst_359 = arith.constant 0.83643192 : f32
    %594 = vector.broadcast %cst_359 : f32 to vector<8x128xf32>
    %595 = arith.mulf %586, %594 : vector<8x128xf32>
    %596 = arith.subf %593, %595 : vector<8x128xf32>
    %cst_360 = arith.constant -0.441499501 : f32
    %597 = vector.broadcast %cst_360 : f32 to vector<8x128xf32>
    %598 = arith.mulf %588, %597 : vector<8x128xf32>
    %cst_361 = arith.constant 0.147546589 : f32
    %599 = vector.broadcast %cst_361 : f32 to vector<8x128xf32>
    %600 = arith.mulf %586, %599 : vector<8x128xf32>
    %601 = arith.addf %598, %600 : vector<8x128xf32>
    %cst_362 = arith.constant -0.0778805091 : f32
    %602 = vector.broadcast %cst_362 : f32 to vector<8x128xf32>
    %603 = arith.mulf %588, %602 : vector<8x128xf32>
    %cst_363 = arith.constant 0.83643192 : f32
    %604 = vector.broadcast %cst_363 : f32 to vector<8x128xf32>
    %605 = arith.mulf %586, %604 : vector<8x128xf32>
    %606 = arith.addf %603, %605 : vector<8x128xf32>
    %cst_364 = arith.constant 0.0217699967 : f32
    %607 = vector.broadcast %cst_364 : f32 to vector<8x128xf32>
    %608 = arith.mulf %588, %607 : vector<8x128xf32>
    %609 = arith.addf %585, %608 : vector<8x128xf32>
    %cst_365 = arith.constant 0.123412676 : f32
    %610 = vector.broadcast %cst_365 : f32 to vector<8x128xf32>
    %611 = arith.mulf %588, %610 : vector<8x128xf32>
    %cst_366 = arith.constant -0.52783674 : f32
    %612 = vector.broadcast %cst_366 : f32 to vector<8x128xf32>
    %613 = arith.mulf %586, %612 : vector<8x128xf32>
    %614 = arith.subf %611, %613 : vector<8x128xf32>
    %cst_367 = arith.constant -0.441499501 : f32
    %615 = vector.broadcast %cst_367 : f32 to vector<8x128xf32>
    %616 = arith.mulf %588, %615 : vector<8x128xf32>
    %cst_368 = arith.constant 0.147546589 : f32
    %617 = vector.broadcast %cst_368 : f32 to vector<8x128xf32>
    %618 = arith.mulf %586, %617 : vector<8x128xf32>
    %619 = arith.subf %616, %618 : vector<8x128xf32>
    %cst_369 = arith.constant 0.123412676 : f32
    %620 = vector.broadcast %cst_369 : f32 to vector<8x128xf32>
    %621 = arith.mulf %588, %620 : vector<8x128xf32>
    %cst_370 = arith.constant -0.52783674 : f32
    %622 = vector.broadcast %cst_370 : f32 to vector<8x128xf32>
    %623 = arith.mulf %586, %622 : vector<8x128xf32>
    %624 = arith.addf %621, %623 : vector<8x128xf32>
    %cst_371 = arith.constant 0.69961834 : f32
    %625 = vector.broadcast %cst_371 : f32 to vector<8x128xf32>
    %626 = arith.mulf %588, %625 : vector<8x128xf32>
    %627 = arith.addf %585, %626 : vector<8x128xf32>
    %628 = arith.mulf %479, %591 : vector<8x128xf32>
    %629 = arith.mulf %484, %606 : vector<8x128xf32>
    %630 = arith.addf %628, %629 : vector<8x128xf32>
    %631 = arith.mulf %489, %619 : vector<8x128xf32>
    %632 = arith.addf %630, %631 : vector<8x128xf32>
    %633 = arith.mulf %479, %596 : vector<8x128xf32>
    %634 = arith.mulf %484, %609 : vector<8x128xf32>
    %635 = arith.addf %633, %634 : vector<8x128xf32>
    %636 = arith.mulf %489, %624 : vector<8x128xf32>
    %637 = arith.addf %635, %636 : vector<8x128xf32>
    %638 = arith.mulf %479, %601 : vector<8x128xf32>
    %639 = arith.mulf %484, %614 : vector<8x128xf32>
    %640 = arith.addf %638, %639 : vector<8x128xf32>
    %641 = arith.mulf %489, %627 : vector<8x128xf32>
    %642 = arith.addf %640, %641 : vector<8x128xf32>
    %cst_372 = arith.constant 1.100000e-01 : f32
    %643 = vector.broadcast %cst_372 : f32 to vector<8x128xf32>
    %644 = arith.mulf %479, %643 : vector<8x128xf32>
    %cst_373 = arith.constant 3.000000e-02 : f32
    %645 = vector.broadcast %cst_373 : f32 to vector<8x128xf32>
    %646 = arith.mulf %484, %645 : vector<8x128xf32>
    %647 = arith.addf %644, %646 : vector<8x128xf32>
    %cst_374 = arith.constant 1.000000e-01 : f32
    %648 = vector.broadcast %cst_374 : f32 to vector<8x128xf32>
    %649 = arith.mulf %489, %648 : vector<8x128xf32>
    %650 = arith.addf %647, %649 : vector<8x128xf32>
    %651 = arith.addf %650, %498 : vector<8x128xf32>
    %652 = arith.mulf %503, %591 : vector<8x128xf32>
    %653 = arith.mulf %508, %606 : vector<8x128xf32>
    %654 = arith.addf %652, %653 : vector<8x128xf32>
    %655 = arith.mulf %513, %619 : vector<8x128xf32>
    %656 = arith.addf %654, %655 : vector<8x128xf32>
    %657 = arith.mulf %503, %596 : vector<8x128xf32>
    %658 = arith.mulf %508, %609 : vector<8x128xf32>
    %659 = arith.addf %657, %658 : vector<8x128xf32>
    %660 = arith.mulf %513, %624 : vector<8x128xf32>
    %661 = arith.addf %659, %660 : vector<8x128xf32>
    %662 = arith.mulf %503, %601 : vector<8x128xf32>
    %663 = arith.mulf %508, %614 : vector<8x128xf32>
    %664 = arith.addf %662, %663 : vector<8x128xf32>
    %665 = arith.mulf %513, %627 : vector<8x128xf32>
    %666 = arith.addf %664, %665 : vector<8x128xf32>
    %cst_375 = arith.constant 1.100000e-01 : f32
    %667 = vector.broadcast %cst_375 : f32 to vector<8x128xf32>
    %668 = arith.mulf %503, %667 : vector<8x128xf32>
    %cst_376 = arith.constant 3.000000e-02 : f32
    %669 = vector.broadcast %cst_376 : f32 to vector<8x128xf32>
    %670 = arith.mulf %508, %669 : vector<8x128xf32>
    %671 = arith.addf %668, %670 : vector<8x128xf32>
    %cst_377 = arith.constant 1.000000e-01 : f32
    %672 = vector.broadcast %cst_377 : f32 to vector<8x128xf32>
    %673 = arith.mulf %513, %672 : vector<8x128xf32>
    %674 = arith.addf %671, %673 : vector<8x128xf32>
    %675 = arith.addf %674, %522 : vector<8x128xf32>
    %676 = arith.mulf %527, %591 : vector<8x128xf32>
    %677 = arith.mulf %532, %606 : vector<8x128xf32>
    %678 = arith.addf %676, %677 : vector<8x128xf32>
    %679 = arith.mulf %537, %619 : vector<8x128xf32>
    %680 = arith.addf %678, %679 : vector<8x128xf32>
    %681 = arith.mulf %527, %596 : vector<8x128xf32>
    %682 = arith.mulf %532, %609 : vector<8x128xf32>
    %683 = arith.addf %681, %682 : vector<8x128xf32>
    %684 = arith.mulf %537, %624 : vector<8x128xf32>
    %685 = arith.addf %683, %684 : vector<8x128xf32>
    %686 = arith.mulf %527, %601 : vector<8x128xf32>
    %687 = arith.mulf %532, %614 : vector<8x128xf32>
    %688 = arith.addf %686, %687 : vector<8x128xf32>
    %689 = arith.mulf %537, %627 : vector<8x128xf32>
    %690 = arith.addf %688, %689 : vector<8x128xf32>
    %cst_378 = arith.constant 1.100000e-01 : f32
    %691 = vector.broadcast %cst_378 : f32 to vector<8x128xf32>
    %692 = arith.mulf %527, %691 : vector<8x128xf32>
    %cst_379 = arith.constant 3.000000e-02 : f32
    %693 = vector.broadcast %cst_379 : f32 to vector<8x128xf32>
    %694 = arith.mulf %532, %693 : vector<8x128xf32>
    %695 = arith.addf %692, %694 : vector<8x128xf32>
    %cst_380 = arith.constant 1.000000e-01 : f32
    %696 = vector.broadcast %cst_380 : f32 to vector<8x128xf32>
    %697 = arith.mulf %537, %696 : vector<8x128xf32>
    %698 = arith.addf %695, %697 : vector<8x128xf32>
    %699 = arith.addf %698, %546 : vector<8x128xf32>
    %c0_381 = arith.constant 0 : index
    %c4_382 = arith.constant 4 : index
    %c0_383 = arith.constant 0 : index
    %c0_384 = arith.constant 0 : index
    %c0_385 = arith.constant 0 : index
    %700 = vector.load %arg2[%c0_381, %c4_382, %c0_383, %c0_384, %c0_385] : memref<1x7x12x8x128xf32, #tpu.memory_space<vmem>>, vector<1x1x1x8x128xf32>
    %701 = vector.shape_cast %700 : vector<1x1x1x8x128xf32> to vector<8x128xf32>
    %702 = vector.shape_cast %632 : vector<8x128xf32> to vector<1x1x1x8x128xf32>
    tpu.vector_store %arg2[%c0_381, %c4_382, %c0_383, %c0_384, %c0_385], %702 {strides = array<i32>} : memref<1x7x12x8x128xf32, #tpu.memory_space<vmem>>, vector<1x1x1x8x128xf32>,
    %c0_386 = arith.constant 0 : index
    %c4_387 = arith.constant 4 : index
    %c1_388 = arith.constant 1 : index
    %c0_389 = arith.constant 0 : index
    %c0_390 = arith.constant 0 : index
    %703 = vector.load %arg2[%c0_386, %c4_387, %c1_388, %c0_389, %c0_390] : memref<1x7x12x8x128xf32, #tpu.memory_space<vmem>>, vector<1x1x1x8x128xf32>
    %704 = vector.shape_cast %703 : vector<1x1x1x8x128xf32> to vector<8x128xf32>
    %705 = vector.shape_cast %637 : vector<8x128xf32> to vector<1x1x1x8x128xf32>
    tpu.vector_store %arg2[%c0_386, %c4_387, %c1_388, %c0_389, %c0_390], %705 {strides = array<i32>} : memref<1x7x12x8x128xf32, #tpu.memory_space<vmem>>, vector<1x1x1x8x128xf32>,
    %c0_391 = arith.constant 0 : index
    %c4_392 = arith.constant 4 : index
    %c2_393 = arith.constant 2 : index
    %c0_394 = arith.constant 0 : index
    %c0_395 = arith.constant 0 : index
    %706 = vector.load %arg2[%c0_391, %c4_392, %c2_393, %c0_394, %c0_395] : memref<1x7x12x8x128xf32, #tpu.memory_space<vmem>>, vector<1x1x1x8x128xf32>
    %707 = vector.shape_cast %706 : vector<1x1x1x8x128xf32> to vector<8x128xf32>
    %708 = vector.shape_cast %642 : vector<8x128xf32> to vector<1x1x1x8x128xf32>
    tpu.vector_store %arg2[%c0_391, %c4_392, %c2_393, %c0_394, %c0_395], %708 {strides = array<i32>} : memref<1x7x12x8x128xf32, #tpu.memory_space<vmem>>, vector<1x1x1x8x128xf32>,
    %c0_396 = arith.constant 0 : index
    %c4_397 = arith.constant 4 : index
    %c3_398 = arith.constant 3 : index
    %c0_399 = arith.constant 0 : index
    %c0_400 = arith.constant 0 : index
    %709 = vector.load %arg2[%c0_396, %c4_397, %c3_398, %c0_399, %c0_400] : memref<1x7x12x8x128xf32, #tpu.memory_space<vmem>>, vector<1x1x1x8x128xf32>
    %710 = vector.shape_cast %709 : vector<1x1x1x8x128xf32> to vector<8x128xf32>
    %711 = vector.shape_cast %651 : vector<8x128xf32> to vector<1x1x1x8x128xf32>
    tpu.vector_store %arg2[%c0_396, %c4_397, %c3_398, %c0_399, %c0_400], %711 {strides = array<i32>} : memref<1x7x12x8x128xf32, #tpu.memory_space<vmem>>, vector<1x1x1x8x128xf32>,
    %c0_401 = arith.constant 0 : index
    %c4_402 = arith.constant 4 : index
    %c4_403 = arith.constant 4 : index
    %c0_404 = arith.constant 0 : index
    %c0_405 = arith.constant 0 : index
    %712 = vector.load %arg2[%c0_401, %c4_402, %c4_403, %c0_404, %c0_405] : memref<1x7x12x8x128xf32, #tpu.memory_space<vmem>>, vector<1x1x1x8x128xf32>
    %713 = vector.shape_cast %712 : vector<1x1x1x8x128xf32> to vector<8x128xf32>
    %714 = vector.shape_cast %656 : vector<8x128xf32> to vector<1x1x1x8x128xf32>
    tpu.vector_store %arg2[%c0_401, %c4_402, %c4_403, %c0_404, %c0_405], %714 {strides = array<i32>} : memref<1x7x12x8x128xf32, #tpu.memory_space<vmem>>, vector<1x1x1x8x128xf32>,
    %c0_406 = arith.constant 0 : index
    %c4_407 = arith.constant 4 : index
    %c5_408 = arith.constant 5 : index
    %c0_409 = arith.constant 0 : index
    %c0_410 = arith.constant 0 : index
    %715 = vector.load %arg2[%c0_406, %c4_407, %c5_408, %c0_409, %c0_410] : memref<1x7x12x8x128xf32, #tpu.memory_space<vmem>>, vector<1x1x1x8x128xf32>
    %716 = vector.shape_cast %715 : vector<1x1x1x8x128xf32> to vector<8x128xf32>
    %717 = vector.shape_cast %661 : vector<8x128xf32> to vector<1x1x1x8x128xf32>
    tpu.vector_store %arg2[%c0_406, %c4_407, %c5_408, %c0_409, %c0_410], %717 {strides = array<i32>} : memref<1x7x12x8x128xf32, #tpu.memory_space<vmem>>, vector<1x1x1x8x128xf32>,
    %c0_411 = arith.constant 0 : index
    %c4_412 = arith.constant 4 : index
    %c6_413 = arith.constant 6 : index
    %c0_414 = arith.constant 0 : index
    %c0_415 = arith.constant 0 : index
    %718 = vector.load %arg2[%c0_411, %c4_412, %c6_413, %c0_414, %c0_415] : memref<1x7x12x8x128xf32, #tpu.memory_space<vmem>>, vector<1x1x1x8x128xf32>
    %719 = vector.shape_cast %718 : vector<1x1x1x8x128xf32> to vector<8x128xf32>
    %720 = vector.shape_cast %666 : vector<8x128xf32> to vector<1x1x1x8x128xf32>
    tpu.vector_store %arg2[%c0_411, %c4_412, %c6_413, %c0_414, %c0_415], %720 {strides = array<i32>} : memref<1x7x12x8x128xf32, #tpu.memory_space<vmem>>, vector<1x1x1x8x128xf32>,
    %c0_416 = arith.constant 0 : index
    %c4_417 = arith.constant 4 : index
    %c7_418 = arith.constant 7 : index
    %c0_419 = arith.constant 0 : index
    %c0_420 = arith.constant 0 : index
    %721 = vector.load %arg2[%c0_416, %c4_417, %c7_418, %c0_419, %c0_420] : memref<1x7x12x8x128xf32, #tpu.memory_space<vmem>>, vector<1x1x1x8x128xf32>
    %722 = vector.shape_cast %721 : vector<1x1x1x8x128xf32> to vector<8x128xf32>
    %723 = vector.shape_cast %675 : vector<8x128xf32> to vector<1x1x1x8x128xf32>
    tpu.vector_store %arg2[%c0_416, %c4_417, %c7_418, %c0_419, %c0_420], %723 {strides = array<i32>} : memref<1x7x12x8x128xf32, #tpu.memory_space<vmem>>, vector<1x1x1x8x128xf32>,
    %c0_421 = arith.constant 0 : index
    %c4_422 = arith.constant 4 : index
    %c8_423 = arith.constant 8 : index
    %c0_424 = arith.constant 0 : index
    %c0_425 = arith.constant 0 : index
    %724 = vector.load %arg2[%c0_421, %c4_422, %c8_423, %c0_424, %c0_425] : memref<1x7x12x8x128xf32, #tpu.memory_space<vmem>>, vector<1x1x1x8x128xf32>
    %725 = vector.shape_cast %724 : vector<1x1x1x8x128xf32> to vector<8x128xf32>
    %726 = vector.shape_cast %680 : vector<8x128xf32> to vector<1x1x1x8x128xf32>
    tpu.vector_store %arg2[%c0_421, %c4_422, %c8_423, %c0_424, %c0_425], %726 {strides = array<i32>} : memref<1x7x12x8x128xf32, #tpu.memory_space<vmem>>, vector<1x1x1x8x128xf32>,
    %c0_426 = arith.constant 0 : index
    %c4_427 = arith.constant 4 : index
    %c9_428 = arith.constant 9 : index
    %c0_429 = arith.constant 0 : index
    %c0_430 = arith.constant 0 : index
    %727 = vector.load %arg2[%c0_426, %c4_427, %c9_428, %c0_429, %c0_430] : memref<1x7x12x8x128xf32, #tpu.memory_space<vmem>>, vector<1x1x1x8x128xf32>
    %728 = vector.shape_cast %727 : vector<1x1x1x8x128xf32> to vector<8x128xf32>
    %729 = vector.shape_cast %685 : vector<8x128xf32> to vector<1x1x1x8x128xf32>
    tpu.vector_store %arg2[%c0_426, %c4_427, %c9_428, %c0_429, %c0_430], %729 {strides = array<i32>} : memref<1x7x12x8x128xf32, #tpu.memory_space<vmem>>, vector<1x1x1x8x128xf32>,
    %c0_431 = arith.constant 0 : index
    %c4_432 = arith.constant 4 : index
    %c10_433 = arith.constant 10 : index
    %c0_434 = arith.constant 0 : index
    %c0_435 = arith.constant 0 : index
    %730 = vector.load %arg2[%c0_431, %c4_432, %c10_433, %c0_434, %c0_435] : memref<1x7x12x8x128xf32, #tpu.memory_space<vmem>>, vector<1x1x1x8x128xf32>
    %731 = vector.shape_cast %730 : vector<1x1x1x8x128xf32> to vector<8x128xf32>
    %732 = vector.shape_cast %690 : vector<8x128xf32> to vector<1x1x1x8x128xf32>
    tpu.vector_store %arg2[%c0_431, %c4_432, %c10_433, %c0_434, %c0_435], %732 {strides = array<i32>} : memref<1x7x12x8x128xf32, #tpu.memory_space<vmem>>, vector<1x1x1x8x128xf32>,
    %c0_436 = arith.constant 0 : index
    %c4_437 = arith.constant 4 : index
    %c11_438 = arith.constant 11 : index
    %c0_439 = arith.constant 0 : index
    %c0_440 = arith.constant 0 : index
    %733 = vector.load %arg2[%c0_436, %c4_437, %c11_438, %c0_439, %c0_440] : memref<1x7x12x8x128xf32, #tpu.memory_space<vmem>>, vector<1x1x1x8x128xf32>
    %734 = vector.shape_cast %733 : vector<1x1x1x8x128xf32> to vector<8x128xf32>
    %735 = vector.shape_cast %699 : vector<8x128xf32> to vector<1x1x1x8x128xf32>
    tpu.vector_store %arg2[%c0_436, %c4_437, %c11_438, %c0_439, %c0_440], %735 {strides = array<i32>} : memref<1x7x12x8x128xf32, #tpu.memory_space<vmem>>, vector<1x1x1x8x128xf32>,
    %c0_441 = arith.constant 0 : index
    %c10_442 = arith.constant 10 : index
    %c0_443 = arith.constant 0 : index
    %c0_444 = arith.constant 0 : index
    %736 = vector.load %arg1[%c0_441, %c10_442, %c0_443, %c0_444] : memref<1x12x8x128xf32, #tpu.memory_space<vmem>>, vector<1x1x8x128xf32>
    %737 = vector.shape_cast %736 : vector<1x1x8x128xf32> to vector<8x128xf32>
    %738 = math.cos %737 : vector<8x128xf32>
    %739 = math.sin %737 : vector<8x128xf32>
    %cst_445 = arith.constant 1.000000e+00 : f32
    %740 = vector.broadcast %cst_445 : f32 to vector<8x128xf32>
    %741 = arith.subf %740, %738 : vector<8x128xf32>
    %cst_446 = arith.constant 0.408964783 : f32
    %742 = vector.broadcast %cst_446 : f32 to vector<8x128xf32>
    %743 = arith.mulf %741, %742 : vector<8x128xf32>
    %744 = arith.addf %738, %743 : vector<8x128xf32>
    %cst_447 = arith.constant 0.298519909 : f32
    %745 = vector.broadcast %cst_447 : f32 to vector<8x128xf32>
    %746 = arith.mulf %741, %745 : vector<8x128xf32>
    %cst_448 = arith.constant 0.610846459 : f32
    %747 = vector.broadcast %cst_448 : f32 to vector<8x128xf32>
    %748 = arith.mulf %739, %747 : vector<8x128xf32>
    %749 = arith.subf %746, %748 : vector<8x128xf32>
    %cst_449 = arith.constant -0.390638471 : f32
    %750 = vector.broadcast %cst_449 : f32 to vector<8x128xf32>
    %751 = arith.mulf %741, %750 : vector<8x128xf32>
    %cst_450 = arith.constant -0.466799468 : f32
    %752 = vector.broadcast %cst_450 : f32 to vector<8x128xf32>
    %753 = arith.mulf %739, %752 : vector<8x128xf32>
    %754 = arith.addf %751, %753 : vector<8x128xf32>
    %cst_451 = arith.constant 0.298519909 : f32
    %755 = vector.broadcast %cst_451 : f32 to vector<8x128xf32>
    %756 = arith.mulf %741, %755 : vector<8x128xf32>
    %cst_452 = arith.constant 0.610846459 : f32
    %757 = vector.broadcast %cst_452 : f32 to vector<8x128xf32>
    %758 = arith.mulf %739, %757 : vector<8x128xf32>
    %759 = arith.addf %756, %758 : vector<8x128xf32>
    %cst_453 = arith.constant 0.217901736 : f32
    %760 = vector.broadcast %cst_453 : f32 to vector<8x128xf32>
    %761 = arith.mulf %741, %760 : vector<8x128xf32>
    %762 = arith.addf %738, %761 : vector<8x128xf32>
    %cst_454 = arith.constant -0.285142809 : f32
    %763 = vector.broadcast %cst_454 : f32 to vector<8x128xf32>
    %764 = arith.mulf %741, %763 : vector<8x128xf32>
    %cst_455 = arith.constant -0.639503538 : f32
    %765 = vector.broadcast %cst_455 : f32 to vector<8x128xf32>
    %766 = arith.mulf %739, %765 : vector<8x128xf32>
    %767 = arith.subf %764, %766 : vector<8x128xf32>
    %cst_456 = arith.constant -0.390638471 : f32
    %768 = vector.broadcast %cst_456 : f32 to vector<8x128xf32>
    %769 = arith.mulf %741, %768 : vector<8x128xf32>
    %cst_457 = arith.constant -0.466799468 : f32
    %770 = vector.broadcast %cst_457 : f32 to vector<8x128xf32>
    %771 = arith.mulf %739, %770 : vector<8x128xf32>
    %772 = arith.subf %769, %771 : vector<8x128xf32>
    %cst_458 = arith.constant -0.285142809 : f32
    %773 = vector.broadcast %cst_458 : f32 to vector<8x128xf32>
    %774 = arith.mulf %741, %773 : vector<8x128xf32>
    %cst_459 = arith.constant -0.639503538 : f32
    %775 = vector.broadcast %cst_459 : f32 to vector<8x128xf32>
    %776 = arith.mulf %739, %775 : vector<8x128xf32>
    %777 = arith.addf %774, %776 : vector<8x128xf32>
    %cst_460 = arith.constant 0.373133391 : f32
    %778 = vector.broadcast %cst_460 : f32 to vector<8x128xf32>
    %779 = arith.mulf %741, %778 : vector<8x128xf32>
    %780 = arith.addf %738, %779 : vector<8x128xf32>
    %781 = arith.mulf %632, %744 : vector<8x128xf32>
    %782 = arith.mulf %637, %759 : vector<8x128xf32>
    %783 = arith.addf %781, %782 : vector<8x128xf32>
    %784 = arith.mulf %642, %772 : vector<8x128xf32>
    %785 = arith.addf %783, %784 : vector<8x128xf32>
    %786 = arith.mulf %632, %749 : vector<8x128xf32>
    %787 = arith.mulf %637, %762 : vector<8x128xf32>
    %788 = arith.addf %786, %787 : vector<8x128xf32>
    %789 = arith.mulf %642, %777 : vector<8x128xf32>
    %790 = arith.addf %788, %789 : vector<8x128xf32>
    %791 = arith.mulf %632, %754 : vector<8x128xf32>
    %792 = arith.mulf %637, %767 : vector<8x128xf32>
    %793 = arith.addf %791, %792 : vector<8x128xf32>
    %794 = arith.mulf %642, %780 : vector<8x128xf32>
    %795 = arith.addf %793, %794 : vector<8x128xf32>
    %cst_461 = arith.constant 1.300000e-01 : f32
    %796 = vector.broadcast %cst_461 : f32 to vector<8x128xf32>
    %797 = arith.mulf %632, %796 : vector<8x128xf32>
    %cst_462 = arith.constant 4.000000e-02 : f32
    %798 = vector.broadcast %cst_462 : f32 to vector<8x128xf32>
    %799 = arith.mulf %637, %798 : vector<8x128xf32>
    %800 = arith.addf %797, %799 : vector<8x128xf32>
    %cst_463 = arith.constant 1.000000e-01 : f32
    %801 = vector.broadcast %cst_463 : f32 to vector<8x128xf32>
    %802 = arith.mulf %642, %801 : vector<8x128xf32>
    %803 = arith.addf %800, %802 : vector<8x128xf32>
    %804 = arith.addf %803, %651 : vector<8x128xf32>
    %805 = arith.mulf %656, %744 : vector<8x128xf32>
    %806 = arith.mulf %661, %759 : vector<8x128xf32>
    %807 = arith.addf %805, %806 : vector<8x128xf32>
    %808 = arith.mulf %666, %772 : vector<8x128xf32>
    %809 = arith.addf %807, %808 : vector<8x128xf32>
    %810 = arith.mulf %656, %749 : vector<8x128xf32>
    %811 = arith.mulf %661, %762 : vector<8x128xf32>
    %812 = arith.addf %810, %811 : vector<8x128xf32>
    %813 = arith.mulf %666, %777 : vector<8x128xf32>
    %814 = arith.addf %812, %813 : vector<8x128xf32>
    %815 = arith.mulf %656, %754 : vector<8x128xf32>
    %816 = arith.mulf %661, %767 : vector<8x128xf32>
    %817 = arith.addf %815, %816 : vector<8x128xf32>
    %818 = arith.mulf %666, %780 : vector<8x128xf32>
    %819 = arith.addf %817, %818 : vector<8x128xf32>
    %cst_464 = arith.constant 1.300000e-01 : f32
    %820 = vector.broadcast %cst_464 : f32 to vector<8x128xf32>
    %821 = arith.mulf %656, %820 : vector<8x128xf32>
    %cst_465 = arith.constant 4.000000e-02 : f32
    %822 = vector.broadcast %cst_465 : f32 to vector<8x128xf32>
    %823 = arith.mulf %661, %822 : vector<8x128xf32>
    %824 = arith.addf %821, %823 : vector<8x128xf32>
    %cst_466 = arith.constant 1.000000e-01 : f32
    %825 = vector.broadcast %cst_466 : f32 to vector<8x128xf32>
    %826 = arith.mulf %666, %825 : vector<8x128xf32>
    %827 = arith.addf %824, %826 : vector<8x128xf32>
    %828 = arith.addf %827, %675 : vector<8x128xf32>
    %829 = arith.mulf %680, %744 : vector<8x128xf32>
    %830 = arith.mulf %685, %759 : vector<8x128xf32>
    %831 = arith.addf %829, %830 : vector<8x128xf32>
    %832 = arith.mulf %690, %772 : vector<8x128xf32>
    %833 = arith.addf %831, %832 : vector<8x128xf32>
    %834 = arith.mulf %680, %749 : vector<8x128xf32>
    %835 = arith.mulf %685, %762 : vector<8x128xf32>
    %836 = arith.addf %834, %835 : vector<8x128xf32>
    %837 = arith.mulf %690, %777 : vector<8x128xf32>
    %838 = arith.addf %836, %837 : vector<8x128xf32>
    %839 = arith.mulf %680, %754 : vector<8x128xf32>
    %840 = arith.mulf %685, %767 : vector<8x128xf32>
    %841 = arith.addf %839, %840 : vector<8x128xf32>
    %842 = arith.mulf %690, %780 : vector<8x128xf32>
    %843 = arith.addf %841, %842 : vector<8x128xf32>
    %cst_467 = arith.constant 1.300000e-01 : f32
    %844 = vector.broadcast %cst_467 : f32 to vector<8x128xf32>
    %845 = arith.mulf %680, %844 : vector<8x128xf32>
    %cst_468 = arith.constant 4.000000e-02 : f32
    %846 = vector.broadcast %cst_468 : f32 to vector<8x128xf32>
    %847 = arith.mulf %685, %846 : vector<8x128xf32>
    %848 = arith.addf %845, %847 : vector<8x128xf32>
    %cst_469 = arith.constant 1.000000e-01 : f32
    %849 = vector.broadcast %cst_469 : f32 to vector<8x128xf32>
    %850 = arith.mulf %690, %849 : vector<8x128xf32>
    %851 = arith.addf %848, %850 : vector<8x128xf32>
    %852 = arith.addf %851, %699 : vector<8x128xf32>
    %c0_470 = arith.constant 0 : index
    %c5_471 = arith.constant 5 : index
    %c0_472 = arith.constant 0 : index
    %c0_473 = arith.constant 0 : index
    %c0_474 = arith.constant 0 : index
    %853 = vector.load %arg2[%c0_470, %c5_471, %c0_472, %c0_473, %c0_474] : memref<1x7x12x8x128xf32, #tpu.memory_space<vmem>>, vector<1x1x1x8x128xf32>
    %854 = vector.shape_cast %853 : vector<1x1x1x8x128xf32> to vector<8x128xf32>
    %855 = vector.shape_cast %785 : vector<8x128xf32> to vector<1x1x1x8x128xf32>
    tpu.vector_store %arg2[%c0_470, %c5_471, %c0_472, %c0_473, %c0_474], %855 {strides = array<i32>} : memref<1x7x12x8x128xf32, #tpu.memory_space<vmem>>, vector<1x1x1x8x128xf32>,
    %c0_475 = arith.constant 0 : index
    %c5_476 = arith.constant 5 : index
    %c1_477 = arith.constant 1 : index
    %c0_478 = arith.constant 0 : index
    %c0_479 = arith.constant 0 : index
    %856 = vector.load %arg2[%c0_475, %c5_476, %c1_477, %c0_478, %c0_479] : memref<1x7x12x8x128xf32, #tpu.memory_space<vmem>>, vector<1x1x1x8x128xf32>
    %857 = vector.shape_cast %856 : vector<1x1x1x8x128xf32> to vector<8x128xf32>
    %858 = vector.shape_cast %790 : vector<8x128xf32> to vector<1x1x1x8x128xf32>
    tpu.vector_store %arg2[%c0_475, %c5_476, %c1_477, %c0_478, %c0_479], %858 {strides = array<i32>} : memref<1x7x12x8x128xf32, #tpu.memory_space<vmem>>, vector<1x1x1x8x128xf32>,
    %c0_480 = arith.constant 0 : index
    %c5_481 = arith.constant 5 : index
    %c2_482 = arith.constant 2 : index
    %c0_483 = arith.constant 0 : index
    %c0_484 = arith.constant 0 : index
    %859 = vector.load %arg2[%c0_480, %c5_481, %c2_482, %c0_483, %c0_484] : memref<1x7x12x8x128xf32, #tpu.memory_space<vmem>>, vector<1x1x1x8x128xf32>
    %860 = vector.shape_cast %859 : vector<1x1x1x8x128xf32> to vector<8x128xf32>
    %861 = vector.shape_cast %795 : vector<8x128xf32> to vector<1x1x1x8x128xf32>
    tpu.vector_store %arg2[%c0_480, %c5_481, %c2_482, %c0_483, %c0_484], %861 {strides = array<i32>} : memref<1x7x12x8x128xf32, #tpu.memory_space<vmem>>, vector<1x1x1x8x128xf32>,
    %c0_485 = arith.constant 0 : index
    %c5_486 = arith.constant 5 : index
    %c3_487 = arith.constant 3 : index
    %c0_488 = arith.constant 0 : index
    %c0_489 = arith.constant 0 : index
    %862 = vector.load %arg2[%c0_485, %c5_486, %c3_487, %c0_488, %c0_489] : memref<1x7x12x8x128xf32, #tpu.memory_space<vmem>>, vector<1x1x1x8x128xf32>
    %863 = vector.shape_cast %862 : vector<1x1x1x8x128xf32> to vector<8x128xf32>
    %864 = vector.shape_cast %804 : vector<8x128xf32> to vector<1x1x1x8x128xf32>
    tpu.vector_store %arg2[%c0_485, %c5_486, %c3_487, %c0_488, %c0_489], %864 {strides = array<i32>} : memref<1x7x12x8x128xf32, #tpu.memory_space<vmem>>, vector<1x1x1x8x128xf32>,
    %c0_490 = arith.constant 0 : index
    %c5_491 = arith.constant 5 : index
    %c4_492 = arith.constant 4 : index
    %c0_493 = arith.constant 0 : index
    %c0_494 = arith.constant 0 : index
    %865 = vector.load %arg2[%c0_490, %c5_491, %c4_492, %c0_493, %c0_494] : memref<1x7x12x8x128xf32, #tpu.memory_space<vmem>>, vector<1x1x1x8x128xf32>
    %866 = vector.shape_cast %865 : vector<1x1x1x8x128xf32> to vector<8x128xf32>
    %867 = vector.shape_cast %809 : vector<8x128xf32> to vector<1x1x1x8x128xf32>
    tpu.vector_store %arg2[%c0_490, %c5_491, %c4_492, %c0_493, %c0_494], %867 {strides = array<i32>} : memref<1x7x12x8x128xf32, #tpu.memory_space<vmem>>, vector<1x1x1x8x128xf32>,
    %c0_495 = arith.constant 0 : index
    %c5_496 = arith.constant 5 : index
    %c5_497 = arith.constant 5 : index
    %c0_498 = arith.constant 0 : index
    %c0_499 = arith.constant 0 : index
    %868 = vector.load %arg2[%c0_495, %c5_496, %c5_497, %c0_498, %c0_499] : memref<1x7x12x8x128xf32, #tpu.memory_space<vmem>>, vector<1x1x1x8x128xf32>
    %869 = vector.shape_cast %868 : vector<1x1x1x8x128xf32> to vector<8x128xf32>
    %870 = vector.shape_cast %814 : vector<8x128xf32> to vector<1x1x1x8x128xf32>
    tpu.vector_store %arg2[%c0_495, %c5_496, %c5_497, %c0_498, %c0_499], %870 {strides = array<i32>} : memref<1x7x12x8x128xf32, #tpu.memory_space<vmem>>, vector<1x1x1x8x128xf32>,
    %c0_500 = arith.constant 0 : index
    %c5_501 = arith.constant 5 : index
    %c6_502 = arith.constant 6 : index
    %c0_503 = arith.constant 0 : index
    %c0_504 = arith.constant 0 : index
    %871 = vector.load %arg2[%c0_500, %c5_501, %c6_502, %c0_503, %c0_504] : memref<1x7x12x8x128xf32, #tpu.memory_space<vmem>>, vector<1x1x1x8x128xf32>
    %872 = vector.shape_cast %871 : vector<1x1x1x8x128xf32> to vector<8x128xf32>
    %873 = vector.shape_cast %819 : vector<8x128xf32> to vector<1x1x1x8x128xf32>
    tpu.vector_store %arg2[%c0_500, %c5_501, %c6_502, %c0_503, %c0_504], %873 {strides = array<i32>} : memref<1x7x12x8x128xf32, #tpu.memory_space<vmem>>, vector<1x1x1x8x128xf32>,
    %c0_505 = arith.constant 0 : index
    %c5_506 = arith.constant 5 : index
    %c7_507 = arith.constant 7 : index
    %c0_508 = arith.constant 0 : index
    %c0_509 = arith.constant 0 : index
    %874 = vector.load %arg2[%c0_505, %c5_506, %c7_507, %c0_508, %c0_509] : memref<1x7x12x8x128xf32, #tpu.memory_space<vmem>>, vector<1x1x1x8x128xf32>
    %875 = vector.shape_cast %874 : vector<1x1x1x8x128xf32> to vector<8x128xf32>
    %876 = vector.shape_cast %828 : vector<8x128xf32> to vector<1x1x1x8x128xf32>
    tpu.vector_store %arg2[%c0_505, %c5_506, %c7_507, %c0_508, %c0_509], %876 {strides = array<i32>} : memref<1x7x12x8x128xf32, #tpu.memory_space<vmem>>, vector<1x1x1x8x128xf32>,
    %c0_510 = arith.constant 0 : index
    %c5_511 = arith.constant 5 : index
    %c8_512 = arith.constant 8 : index
    %c0_513 = arith.constant 0 : index
    %c0_514 = arith.constant 0 : index
    %877 = vector.load %arg2[%c0_510, %c5_511, %c8_512, %c0_513, %c0_514] : memref<1x7x12x8x128xf32, #tpu.memory_space<vmem>>, vector<1x1x1x8x128xf32>
    %878 = vector.shape_cast %877 : vector<1x1x1x8x128xf32> to vector<8x128xf32>
    %879 = vector.shape_cast %833 : vector<8x128xf32> to vector<1x1x1x8x128xf32>
    tpu.vector_store %arg2[%c0_510, %c5_511, %c8_512, %c0_513, %c0_514], %879 {strides = array<i32>} : memref<1x7x12x8x128xf32, #tpu.memory_space<vmem>>, vector<1x1x1x8x128xf32>,
    %c0_515 = arith.constant 0 : index
    %c5_516 = arith.constant 5 : index
    %c9_517 = arith.constant 9 : index
    %c0_518 = arith.constant 0 : index
    %c0_519 = arith.constant 0 : index
    %880 = vector.load %arg2[%c0_515, %c5_516, %c9_517, %c0_518, %c0_519] : memref<1x7x12x8x128xf32, #tpu.memory_space<vmem>>, vector<1x1x1x8x128xf32>
    %881 = vector.shape_cast %880 : vector<1x1x1x8x128xf32> to vector<8x128xf32>
    %882 = vector.shape_cast %838 : vector<8x128xf32> to vector<1x1x1x8x128xf32>
    tpu.vector_store %arg2[%c0_515, %c5_516, %c9_517, %c0_518, %c0_519], %882 {strides = array<i32>} : memref<1x7x12x8x128xf32, #tpu.memory_space<vmem>>, vector<1x1x1x8x128xf32>,
    %c0_520 = arith.constant 0 : index
    %c5_521 = arith.constant 5 : index
    %c10_522 = arith.constant 10 : index
    %c0_523 = arith.constant 0 : index
    %c0_524 = arith.constant 0 : index
    %883 = vector.load %arg2[%c0_520, %c5_521, %c10_522, %c0_523, %c0_524] : memref<1x7x12x8x128xf32, #tpu.memory_space<vmem>>, vector<1x1x1x8x128xf32>
    %884 = vector.shape_cast %883 : vector<1x1x1x8x128xf32> to vector<8x128xf32>
    %885 = vector.shape_cast %843 : vector<8x128xf32> to vector<1x1x1x8x128xf32>
    tpu.vector_store %arg2[%c0_520, %c5_521, %c10_522, %c0_523, %c0_524], %885 {strides = array<i32>} : memref<1x7x12x8x128xf32, #tpu.memory_space<vmem>>, vector<1x1x1x8x128xf32>,
    %c0_525 = arith.constant 0 : index
    %c5_526 = arith.constant 5 : index
    %c11_527 = arith.constant 11 : index
    %c0_528 = arith.constant 0 : index
    %c0_529 = arith.constant 0 : index
    %886 = vector.load %arg2[%c0_525, %c5_526, %c11_527, %c0_528, %c0_529] : memref<1x7x12x8x128xf32, #tpu.memory_space<vmem>>, vector<1x1x1x8x128xf32>
    %887 = vector.shape_cast %886 : vector<1x1x1x8x128xf32> to vector<8x128xf32>
    %888 = vector.shape_cast %852 : vector<8x128xf32> to vector<1x1x1x8x128xf32>
    tpu.vector_store %arg2[%c0_525, %c5_526, %c11_527, %c0_528, %c0_529], %888 {strides = array<i32>} : memref<1x7x12x8x128xf32, #tpu.memory_space<vmem>>, vector<1x1x1x8x128xf32>,
    %c0_530 = arith.constant 0 : index
    %c11_531 = arith.constant 11 : index
    %c0_532 = arith.constant 0 : index
    %c0_533 = arith.constant 0 : index
    %889 = vector.load %arg1[%c0_530, %c11_531, %c0_532, %c0_533] : memref<1x12x8x128xf32, #tpu.memory_space<vmem>>, vector<1x1x8x128xf32>
    %890 = vector.shape_cast %889 : vector<1x1x8x128xf32> to vector<8x128xf32>
    %891 = math.cos %890 : vector<8x128xf32>
    %892 = math.sin %890 : vector<8x128xf32>
    %cst_534 = arith.constant 1.000000e+00 : f32
    %893 = vector.broadcast %cst_534 : f32 to vector<8x128xf32>
    %894 = arith.subf %893, %891 : vector<8x128xf32>
    %cst_535 = arith.constant 0.305632919 : f32
    %895 = vector.broadcast %cst_535 : f32 to vector<8x128xf32>
    %896 = arith.mulf %894, %895 : vector<8x128xf32>
    %897 = arith.addf %891, %896 : vector<8x128xf32>
    %cst_536 = arith.constant 0.325119913 : f32
    %898 = vector.broadcast %cst_536 : f32 to vector<8x128xf32>
    %899 = arith.mulf %894, %898 : vector<8x128xf32>
    %cst_537 = arith.constant 0.590353847 : f32
    %900 = vector.broadcast %cst_537 : f32 to vector<8x128xf32>
    %901 = arith.mulf %892, %900 : vector<8x128xf32>
    %902 = arith.subf %899, %901 : vector<8x128xf32>
    %cst_538 = arith.constant -0.32637167 : f32
    %903 = vector.broadcast %cst_538 : f32 to vector<8x128xf32>
    %904 = arith.mulf %894, %903 : vector<8x128xf32>
    %cst_539 = arith.constant -0.588089585 : f32
    %905 = vector.broadcast %cst_539 : f32 to vector<8x128xf32>
    %906 = arith.mulf %892, %905 : vector<8x128xf32>
    %907 = arith.addf %904, %906 : vector<8x128xf32>
    %cst_540 = arith.constant 0.325119913 : f32
    %908 = vector.broadcast %cst_540 : f32 to vector<8x128xf32>
    %909 = arith.mulf %894, %908 : vector<8x128xf32>
    %cst_541 = arith.constant 0.590353847 : f32
    %910 = vector.broadcast %cst_541 : f32 to vector<8x128xf32>
    %911 = arith.mulf %892, %910 : vector<8x128xf32>
    %912 = arith.addf %909, %911 : vector<8x128xf32>
    %cst_542 = arith.constant 0.345849365 : f32
    %913 = vector.broadcast %cst_542 : f32 to vector<8x128xf32>
    %914 = arith.mulf %894, %913 : vector<8x128xf32>
    %915 = arith.addf %891, %914 : vector<8x128xf32>
    %cst_543 = arith.constant -0.347180963 : f32
    %916 = vector.broadcast %cst_543 : f32 to vector<8x128xf32>
    %917 = arith.mulf %894, %916 : vector<8x128xf32>
    %cst_544 = arith.constant -0.552840769 : f32
    %918 = vector.broadcast %cst_544 : f32 to vector<8x128xf32>
    %919 = arith.mulf %892, %918 : vector<8x128xf32>
    %920 = arith.subf %917, %919 : vector<8x128xf32>
    %cst_545 = arith.constant -0.32637167 : f32
    %921 = vector.broadcast %cst_545 : f32 to vector<8x128xf32>
    %922 = arith.mulf %894, %921 : vector<8x128xf32>
    %cst_546 = arith.constant -0.588089585 : f32
    %923 = vector.broadcast %cst_546 : f32 to vector<8x128xf32>
    %924 = arith.mulf %892, %923 : vector<8x128xf32>
    %925 = arith.subf %922, %924 : vector<8x128xf32>
    %cst_547 = arith.constant -0.347180963 : f32
    %926 = vector.broadcast %cst_547 : f32 to vector<8x128xf32>
    %927 = arith.mulf %894, %926 : vector<8x128xf32>
    %cst_548 = arith.constant -0.552840769 : f32
    %928 = vector.broadcast %cst_548 : f32 to vector<8x128xf32>
    %929 = arith.mulf %892, %928 : vector<8x128xf32>
    %930 = arith.addf %927, %929 : vector<8x128xf32>
    %cst_549 = arith.constant 0.348517656 : f32
    %931 = vector.broadcast %cst_549 : f32 to vector<8x128xf32>
    %932 = arith.mulf %894, %931 : vector<8x128xf32>
    %933 = arith.addf %891, %932 : vector<8x128xf32>
    %934 = arith.mulf %785, %897 : vector<8x128xf32>
    %935 = arith.mulf %790, %912 : vector<8x128xf32>
    %936 = arith.addf %934, %935 : vector<8x128xf32>
    %937 = arith.mulf %795, %925 : vector<8x128xf32>
    %938 = arith.addf %936, %937 : vector<8x128xf32>
    %939 = arith.mulf %785, %902 : vector<8x128xf32>
    %940 = arith.mulf %790, %915 : vector<8x128xf32>
    %941 = arith.addf %939, %940 : vector<8x128xf32>
    %942 = arith.mulf %795, %930 : vector<8x128xf32>
    %943 = arith.addf %941, %942 : vector<8x128xf32>
    %944 = arith.mulf %785, %907 : vector<8x128xf32>
    %945 = arith.mulf %790, %920 : vector<8x128xf32>
    %946 = arith.addf %944, %945 : vector<8x128xf32>
    %947 = arith.mulf %795, %933 : vector<8x128xf32>
    %948 = arith.addf %946, %947 : vector<8x128xf32>
    %cst_550 = arith.constant 1.500000e-01 : f32
    %949 = vector.broadcast %cst_550 : f32 to vector<8x128xf32>
    %950 = arith.mulf %785, %949 : vector<8x128xf32>
    %cst_551 = arith.constant 5.000000e-02 : f32
    %951 = vector.broadcast %cst_551 : f32 to vector<8x128xf32>
    %952 = arith.mulf %790, %951 : vector<8x128xf32>
    %953 = arith.addf %950, %952 : vector<8x128xf32>
    %cst_552 = arith.constant 1.000000e-01 : f32
    %954 = vector.broadcast %cst_552 : f32 to vector<8x128xf32>
    %955 = arith.mulf %795, %954 : vector<8x128xf32>
    %956 = arith.addf %953, %955 : vector<8x128xf32>
    %957 = arith.addf %956, %804 : vector<8x128xf32>
    %958 = arith.mulf %809, %897 : vector<8x128xf32>
    %959 = arith.mulf %814, %912 : vector<8x128xf32>
    %960 = arith.addf %958, %959 : vector<8x128xf32>
    %961 = arith.mulf %819, %925 : vector<8x128xf32>
    %962 = arith.addf %960, %961 : vector<8x128xf32>
    %963 = arith.mulf %809, %902 : vector<8x128xf32>
    %964 = arith.mulf %814, %915 : vector<8x128xf32>
    %965 = arith.addf %963, %964 : vector<8x128xf32>
    %966 = arith.mulf %819, %930 : vector<8x128xf32>
    %967 = arith.addf %965, %966 : vector<8x128xf32>
    %968 = arith.mulf %809, %907 : vector<8x128xf32>
    %969 = arith.mulf %814, %920 : vector<8x128xf32>
    %970 = arith.addf %968, %969 : vector<8x128xf32>
    %971 = arith.mulf %819, %933 : vector<8x128xf32>
    %972 = arith.addf %970, %971 : vector<8x128xf32>
    %cst_553 = arith.constant 1.500000e-01 : f32
    %973 = vector.broadcast %cst_553 : f32 to vector<8x128xf32>
    %974 = arith.mulf %809, %973 : vector<8x128xf32>
    %cst_554 = arith.constant 5.000000e-02 : f32
    %975 = vector.broadcast %cst_554 : f32 to vector<8x128xf32>
    %976 = arith.mulf %814, %975 : vector<8x128xf32>
    %977 = arith.addf %974, %976 : vector<8x128xf32>
    %cst_555 = arith.constant 1.000000e-01 : f32
    %978 = vector.broadcast %cst_555 : f32 to vector<8x128xf32>
    %979 = arith.mulf %819, %978 : vector<8x128xf32>
    %980 = arith.addf %977, %979 : vector<8x128xf32>
    %981 = arith.addf %980, %828 : vector<8x128xf32>
    %982 = arith.mulf %833, %897 : vector<8x128xf32>
    %983 = arith.mulf %838, %912 : vector<8x128xf32>
    %984 = arith.addf %982, %983 : vector<8x128xf32>
    %985 = arith.mulf %843, %925 : vector<8x128xf32>
    %986 = arith.addf %984, %985 : vector<8x128xf32>
    %987 = arith.mulf %833, %902 : vector<8x128xf32>
    %988 = arith.mulf %838, %915 : vector<8x128xf32>
    %989 = arith.addf %987, %988 : vector<8x128xf32>
    %990 = arith.mulf %843, %930 : vector<8x128xf32>
    %991 = arith.addf %989, %990 : vector<8x128xf32>
    %992 = arith.mulf %833, %907 : vector<8x128xf32>
    %993 = arith.mulf %838, %920 : vector<8x128xf32>
    %994 = arith.addf %992, %993 : vector<8x128xf32>
    %995 = arith.mulf %843, %933 : vector<8x128xf32>
    %996 = arith.addf %994, %995 : vector<8x128xf32>
    %cst_556 = arith.constant 1.500000e-01 : f32
    %997 = vector.broadcast %cst_556 : f32 to vector<8x128xf32>
    %998 = arith.mulf %833, %997 : vector<8x128xf32>
    %cst_557 = arith.constant 5.000000e-02 : f32
    %999 = vector.broadcast %cst_557 : f32 to vector<8x128xf32>
    %1000 = arith.mulf %838, %999 : vector<8x128xf32>
    %1001 = arith.addf %998, %1000 : vector<8x128xf32>
    %cst_558 = arith.constant 1.000000e-01 : f32
    %1002 = vector.broadcast %cst_558 : f32 to vector<8x128xf32>
    %1003 = arith.mulf %843, %1002 : vector<8x128xf32>
    %1004 = arith.addf %1001, %1003 : vector<8x128xf32>
    %1005 = arith.addf %1004, %852 : vector<8x128xf32>
    %c0_559 = arith.constant 0 : index
    %c6_560 = arith.constant 6 : index
    %c0_561 = arith.constant 0 : index
    %c0_562 = arith.constant 0 : index
    %c0_563 = arith.constant 0 : index
    %1006 = vector.load %arg2[%c0_559, %c6_560, %c0_561, %c0_562, %c0_563] : memref<1x7x12x8x128xf32, #tpu.memory_space<vmem>>, vector<1x1x1x8x128xf32>
    %1007 = vector.shape_cast %1006 : vector<1x1x1x8x128xf32> to vector<8x128xf32>
    %1008 = vector.shape_cast %938 : vector<8x128xf32> to vector<1x1x1x8x128xf32>
    tpu.vector_store %arg2[%c0_559, %c6_560, %c0_561, %c0_562, %c0_563], %1008 {strides = array<i32>} : memref<1x7x12x8x128xf32, #tpu.memory_space<vmem>>, vector<1x1x1x8x128xf32>,
    %c0_564 = arith.constant 0 : index
    %c6_565 = arith.constant 6 : index
    %c1_566 = arith.constant 1 : index
    %c0_567 = arith.constant 0 : index
    %c0_568 = arith.constant 0 : index
    %1009 = vector.load %arg2[%c0_564, %c6_565, %c1_566, %c0_567, %c0_568] : memref<1x7x12x8x128xf32, #tpu.memory_space<vmem>>, vector<1x1x1x8x128xf32>
    %1010 = vector.shape_cast %1009 : vector<1x1x1x8x128xf32> to vector<8x128xf32>
    %1011 = vector.shape_cast %943 : vector<8x128xf32> to vector<1x1x1x8x128xf32>
    tpu.vector_store %arg2[%c0_564, %c6_565, %c1_566, %c0_567, %c0_568], %1011 {strides = array<i32>} : memref<1x7x12x8x128xf32, #tpu.memory_space<vmem>>, vector<1x1x1x8x128xf32>,
    %c0_569 = arith.constant 0 : index
    %c6_570 = arith.constant 6 : index
    %c2_571 = arith.constant 2 : index
    %c0_572 = arith.constant 0 : index
    %c0_573 = arith.constant 0 : index
    %1012 = vector.load %arg2[%c0_569, %c6_570, %c2_571, %c0_572, %c0_573] : memref<1x7x12x8x128xf32, #tpu.memory_space<vmem>>, vector<1x1x1x8x128xf32>
    %1013 = vector.shape_cast %1012 : vector<1x1x1x8x128xf32> to vector<8x128xf32>
    %1014 = vector.shape_cast %948 : vector<8x128xf32> to vector<1x1x1x8x128xf32>
    tpu.vector_store %arg2[%c0_569, %c6_570, %c2_571, %c0_572, %c0_573], %1014 {strides = array<i32>} : memref<1x7x12x8x128xf32, #tpu.memory_space<vmem>>, vector<1x1x1x8x128xf32>,
    %c0_574 = arith.constant 0 : index
    %c6_575 = arith.constant 6 : index
    %c3_576 = arith.constant 3 : index
    %c0_577 = arith.constant 0 : index
    %c0_578 = arith.constant 0 : index
    %1015 = vector.load %arg2[%c0_574, %c6_575, %c3_576, %c0_577, %c0_578] : memref<1x7x12x8x128xf32, #tpu.memory_space<vmem>>, vector<1x1x1x8x128xf32>
    %1016 = vector.shape_cast %1015 : vector<1x1x1x8x128xf32> to vector<8x128xf32>
    %1017 = vector.shape_cast %957 : vector<8x128xf32> to vector<1x1x1x8x128xf32>
    tpu.vector_store %arg2[%c0_574, %c6_575, %c3_576, %c0_577, %c0_578], %1017 {strides = array<i32>} : memref<1x7x12x8x128xf32, #tpu.memory_space<vmem>>, vector<1x1x1x8x128xf32>,
    %c0_579 = arith.constant 0 : index
    %c6_580 = arith.constant 6 : index
    %c4_581 = arith.constant 4 : index
    %c0_582 = arith.constant 0 : index
    %c0_583 = arith.constant 0 : index
    %1018 = vector.load %arg2[%c0_579, %c6_580, %c4_581, %c0_582, %c0_583] : memref<1x7x12x8x128xf32, #tpu.memory_space<vmem>>, vector<1x1x1x8x128xf32>
    %1019 = vector.shape_cast %1018 : vector<1x1x1x8x128xf32> to vector<8x128xf32>
    %1020 = vector.shape_cast %962 : vector<8x128xf32> to vector<1x1x1x8x128xf32>
    tpu.vector_store %arg2[%c0_579, %c6_580, %c4_581, %c0_582, %c0_583], %1020 {strides = array<i32>} : memref<1x7x12x8x128xf32, #tpu.memory_space<vmem>>, vector<1x1x1x8x128xf32>,
    %c0_584 = arith.constant 0 : index
    %c6_585 = arith.constant 6 : index
    %c5_586 = arith.constant 5 : index
    %c0_587 = arith.constant 0 : index
    %c0_588 = arith.constant 0 : index
    %1021 = vector.load %arg2[%c0_584, %c6_585, %c5_586, %c0_587, %c0_588] : memref<1x7x12x8x128xf32, #tpu.memory_space<vmem>>, vector<1x1x1x8x128xf32>
    %1022 = vector.shape_cast %1021 : vector<1x1x1x8x128xf32> to vector<8x128xf32>
    %1023 = vector.shape_cast %967 : vector<8x128xf32> to vector<1x1x1x8x128xf32>
    tpu.vector_store %arg2[%c0_584, %c6_585, %c5_586, %c0_587, %c0_588], %1023 {strides = array<i32>} : memref<1x7x12x8x128xf32, #tpu.memory_space<vmem>>, vector<1x1x1x8x128xf32>,
    %c0_589 = arith.constant 0 : index
    %c6_590 = arith.constant 6 : index
    %c6_591 = arith.constant 6 : index
    %c0_592 = arith.constant 0 : index
    %c0_593 = arith.constant 0 : index
    %1024 = vector.load %arg2[%c0_589, %c6_590, %c6_591, %c0_592, %c0_593] : memref<1x7x12x8x128xf32, #tpu.memory_space<vmem>>, vector<1x1x1x8x128xf32>
    %1025 = vector.shape_cast %1024 : vector<1x1x1x8x128xf32> to vector<8x128xf32>
    %1026 = vector.shape_cast %972 : vector<8x128xf32> to vector<1x1x1x8x128xf32>
    tpu.vector_store %arg2[%c0_589, %c6_590, %c6_591, %c0_592, %c0_593], %1026 {strides = array<i32>} : memref<1x7x12x8x128xf32, #tpu.memory_space<vmem>>, vector<1x1x1x8x128xf32>,
    %c0_594 = arith.constant 0 : index
    %c6_595 = arith.constant 6 : index
    %c7_596 = arith.constant 7 : index
    %c0_597 = arith.constant 0 : index
    %c0_598 = arith.constant 0 : index
    %1027 = vector.load %arg2[%c0_594, %c6_595, %c7_596, %c0_597, %c0_598] : memref<1x7x12x8x128xf32, #tpu.memory_space<vmem>>, vector<1x1x1x8x128xf32>
    %1028 = vector.shape_cast %1027 : vector<1x1x1x8x128xf32> to vector<8x128xf32>
    %1029 = vector.shape_cast %981 : vector<8x128xf32> to vector<1x1x1x8x128xf32>
    tpu.vector_store %arg2[%c0_594, %c6_595, %c7_596, %c0_597, %c0_598], %1029 {strides = array<i32>} : memref<1x7x12x8x128xf32, #tpu.memory_space<vmem>>, vector<1x1x1x8x128xf32>,
    %c0_599 = arith.constant 0 : index
    %c6_600 = arith.constant 6 : index
    %c8_601 = arith.constant 8 : index
    %c0_602 = arith.constant 0 : index
    %c0_603 = arith.constant 0 : index
    %1030 = vector.load %arg2[%c0_599, %c6_600, %c8_601, %c0_602, %c0_603] : memref<1x7x12x8x128xf32, #tpu.memory_space<vmem>>, vector<1x1x1x8x128xf32>
    %1031 = vector.shape_cast %1030 : vector<1x1x1x8x128xf32> to vector<8x128xf32>
    %1032 = vector.shape_cast %986 : vector<8x128xf32> to vector<1x1x1x8x128xf32>
    tpu.vector_store %arg2[%c0_599, %c6_600, %c8_601, %c0_602, %c0_603], %1032 {strides = array<i32>} : memref<1x7x12x8x128xf32, #tpu.memory_space<vmem>>, vector<1x1x1x8x128xf32>,
    %c0_604 = arith.constant 0 : index
    %c6_605 = arith.constant 6 : index
    %c9_606 = arith.constant 9 : index
    %c0_607 = arith.constant 0 : index
    %c0_608 = arith.constant 0 : index
    %1033 = vector.load %arg2[%c0_604, %c6_605, %c9_606, %c0_607, %c0_608] : memref<1x7x12x8x128xf32, #tpu.memory_space<vmem>>, vector<1x1x1x8x128xf32>
    %1034 = vector.shape_cast %1033 : vector<1x1x1x8x128xf32> to vector<8x128xf32>
    %1035 = vector.shape_cast %991 : vector<8x128xf32> to vector<1x1x1x8x128xf32>
    tpu.vector_store %arg2[%c0_604, %c6_605, %c9_606, %c0_607, %c0_608], %1035 {strides = array<i32>} : memref<1x7x12x8x128xf32, #tpu.memory_space<vmem>>, vector<1x1x1x8x128xf32>,
    %c0_609 = arith.constant 0 : index
    %c6_610 = arith.constant 6 : index
    %c10_611 = arith.constant 10 : index
    %c0_612 = arith.constant 0 : index
    %c0_613 = arith.constant 0 : index
    %1036 = vector.load %arg2[%c0_609, %c6_610, %c10_611, %c0_612, %c0_613] : memref<1x7x12x8x128xf32, #tpu.memory_space<vmem>>, vector<1x1x1x8x128xf32>
    %1037 = vector.shape_cast %1036 : vector<1x1x1x8x128xf32> to vector<8x128xf32>
    %1038 = vector.shape_cast %996 : vector<8x128xf32> to vector<1x1x1x8x128xf32>
    tpu.vector_store %arg2[%c0_609, %c6_610, %c10_611, %c0_612, %c0_613], %1038 {strides = array<i32>} : memref<1x7x12x8x128xf32, #tpu.memory_space<vmem>>, vector<1x1x1x8x128xf32>,
    %c0_614 = arith.constant 0 : index
    %c6_615 = arith.constant 6 : index
    %c11_616 = arith.constant 11 : index
    %c0_617 = arith.constant 0 : index
    %c0_618 = arith.constant 0 : index
    %1039 = vector.load %arg2[%c0_614, %c6_615, %c11_616, %c0_617, %c0_618] : memref<1x7x12x8x128xf32, #tpu.memory_space<vmem>>, vector<1x1x1x8x128xf32>
    %1040 = vector.shape_cast %1039 : vector<1x1x1x8x128xf32> to vector<8x128xf32>
    %1041 = vector.shape_cast %1005 : vector<8x128xf32> to vector<1x1x1x8x128xf32>
    tpu.vector_store %arg2[%c0_614, %c6_615, %c11_616, %c0_617, %c0_618], %1041 {strides = array<i32>} : memref<1x7x12x8x128xf32, #tpu.memory_space<vmem>>, vector<1x1x1x8x128xf32>,
    return
  }
  func.func @transform_0(%arg0: i32) -> (i32, i32, i32, i32) {
    %c0_i32 = arith.constant 0 : i32
    %c0_i32_0 = arith.constant 0 : i32
    %c0_i32_1 = arith.constant 0 : i32
    %c0_i32_2 = arith.constant 0 : i32
    return %arg0, %c0_i32, %c0_i32_0, %c0_i32_1 : i32, i32, i32, i32
  }
  func.func @transform_1(%arg0: i32) -> (i32, i32, i32, i32, i32) {
    %c0_i32 = arith.constant 0 : i32
    %c0_i32_0 = arith.constant 0 : i32
    %c0_i32_1 = arith.constant 0 : i32
    %c0_i32_2 = arith.constant 0 : i32
    %c0_i32_3 = arith.constant 0 : i32
    return %arg0, %c0_i32, %c0_i32_0, %c0_i32_1, %c0_i32_2 : i32, i32, i32, i32, i32
  }
}

</mosaic_0001>

<llo_original>
// kernel: _forward_impl.1
$region0: #{_forward_impl.1}
  #allocation0 [shape = 'u32[]', space=smem, size = 0x4, offset = 0x4, fixed_abs, tag = 'smem constant byte address 0x4 - core index']
  #allocation1 [shape = 'u32[144,128]{1,0:T(1,128)}', space=vmem, size = 0x12000, scoped, tag = 'internal scratch']
  %s0 = inlined_call_operand.vmem [shape: f32[1,12,8,128], index: 0, kind: input, shape index: {}]
  %s1 = inlined_call_operand.vmem [shape: f32[1,7,12,8,128], index: 1, kind: output, shape index: {}]
  %s2 = sld [smem:[#allocation0]]
  $region14: #{_forward_impl.1} parent=0
    _
  %s4 = ssub.s32 1, %s2
  %s5 = scalar_select 0, %s4, %s2
  // Predicated region
  $region2: #{_forward_impl.1} parent=0 // pred_check
    _
  $region3: #{_forward_impl.1} parent=0 // pred_check_branch
    %7 = sbr.rel (0) target = $region5
  $region4: #{_forward_impl.1} parent=0 // pred_region
    _
  $region5: #{_forward_impl.1} parent=0 // pred_fallthru
    _
  %v8 = vld [vmem:[%s0] sm:$0xff]
  %s9 = scalar_lea.vmem %s0, 8
  %v10 = vld [vmem:[%s9] sm:$0xff]
  %s11 = scalar_lea.vmem %s0, 16
  %v12 = vld [vmem:[%s11] sm:$0xff]
  %s13 = scalar_lea.vmem %s0, 24
  %v14 = vld [vmem:[%s13] sm:$0xff]
  %s15 = scalar_lea.vmem %s0, 32
  %v16 = vld [vmem:[%s15] sm:$0xff]
  %s17 = scalar_lea.vmem %s0, 40
  %v18 = vld [vmem:[%s17] sm:$0xff]
  %v19 = vmul.f32 %v14, %v14
  %v20 = vmul.f32 %v16, %v16
  %v21 = vadd.f32 %v19, %v20
  %v22 = vmul.f32 %v18, %v18
  %v23 = vadd.f32 %v21, %v22
  %vm24 = vcmp.lt.f32.partialorder %v23, 1e-08
  %v25 = vsel %vm24, 1.0, %v23
  %v26 = vrsqrt.pop %v25
  %v27 = vmul.f32 %v23, %v26
  %v28 = vmul.f32 %v23, 0.16666667
  %v29 = vsub.f32 1.0, %v28
  %v30 = vand.u32 2147483647, %v27
  %vm31 = vcmp.le.f32.partialorder %v30, 0.7853982
  %vm32 = vcmp.lt.s32.totalorder %v27, 0
  %v33 = vand.u32 %v27, 2139095040
  %v34 = vshrl.u32 %v33, 23
  %v35 = vsub.s32 %v34, 127
  %v36 = vand.u32 2147483647, %v27
  %v37 = vand.u32 %v36, 8388607
  %v38 = vor.u32 %v37, 8388608
  %v39 = vsub.s32 0, %v38
  %v40 = vadd.s32 %v35, 1
  %vm41 = vcmp.gt.s32.totalorder %v40, 0
  %v42 = vsel %vm41, %v40, 0
  %v43 = vshrl.u32 %v42, 5
  %v44 = vand.u32 %v42, 31
  %v45 = vsub.s32 32, %v44
  %v46 = vshrl.u32 683565275, %v45
  %v47 = vshll.u32 683565275, %v44
  %v48 = vshrl.u32 2475754826, %v45
  %v49 = vor.u32 %v47, %v48
  %v50 = vshll.u32 2475754826, %v44
  %v51 = vshrl.u32 2131351028, %v45
  %v52 = vor.u32 %v50, %v51
  %v53 = vshll.u32 2131351028, %v44
  %v54 = vshrl.u32 2102212464, %v45
  %v55 = vor.u32 %v53, %v54
  %v56 = vshll.u32 2102212464, %v44
  %v57 = vshrl.u32 920167782, %v45
  %v58 = vor.u32 %v56, %v57
  %v59 = vshll.u32 920167782, %v44
  %v60 = vshrl.u32 1326507024, %v45
  %v61 = vor.u32 %v59, %v60
  %vm62 = vcmp.lt.s32.totalorder %v43, 1
  %vm63 = vcmp.lt.s32.totalorder %v43, 2
  %vm64 = vcmp.lt.s32.totalorder %v43, 3
  %vm65 = vcmp.lt.s32.totalorder %v43, 4
  %v66 = vsel %vm62, %v46, %v49
  %v67 = vsel %vm65, %v55, 2102212464
  %v68 = vsel %vm64, %v52, %v67
  %v69 = vsel %vm63, %v66, %v68
  %v70 = vsel %vm62, %v49, %v52
  %v71 = vsel %vm65, %v58, 920167782
  %v72 = vsel %vm64, %v55, %v71
  %v73 = vsel %vm63, %v70, %v72
  %v74 = vsel %vm62, %v52, %v55
  %v75 = vsel %vm65, %v61, 1326507024
  %v76 = vsel %vm64, %v58, %v75
  %v77 = vsel %vm63, %v74, %v76
  %v78 = vshll.u32 %v38, 8
  %v79 = vmul.u32.u64.compose %v78, %v77
  %v80 = vextract.low.u32 %v79
  %v81 = vextract.high.u32 %v79
  %v82 = vmul.u32.u64.compose %v78, %v73
  %v83 = vextract.low.u32 %v82
  %v84 = vextract.high.u32 %v82
  %v85 = vmul.u32 %v78, %v69
  %v86 = vadd.s32 %v81, %v83
  %vm87 = vc.u32 %v81, %v83
  %v88 = vadd.s32 %v84, 1
  %v89 = vsel %vm87, %v88, %v84
  %v90 = vadd.s32 %v85, %v89
  %v91 = vadd.s32 %v90, 536870912
  %v92 = vshrl.u32 %v91, 30
  %v93 = vshll.u32 %v92, 30
  %v94 = vsub.s32 %v90, %v93
  %vm95 = vcmp.lt.s32.totalorder %v94, 0
  %v96 = vsub.s32 0, %v94
  %v97 = vsel %vm95, %v96, %v94
  %v98 = vclz %v97
  %v99 = vsub.s32 %v98, 2
  %vm100 = vcmp.gt.s32.totalorder 0, %v99
  %v101 = vsel %vm100, 0, %v99
  %v102 = vsub.s32 32, %v101
  %v103 = vshll.u32 %v94, %v101
  %v104 = vshrl.u32 %v86, %v102
  %v105 = vor.u32 %v103, %v104
  %v106 = vsub.s32 4294967266, %v101
  %v107 = vadd.s32 %v106, 127
  %v108 = vshll.u32 %v107, 23
  %v109 = vor.u32 4788187, %v108
  %v110 = vand.u32 2147483647, %v109
  %v112 = vcvt.s32.f32 %v105
  %v113 = vmul.f32 %v112, %v110
  %v114 = vxor.u32 %v113, 2147483648
  %v115 = vsel %vm32, %v114, %v113
  %v116 = vsub.s32 4, %v92
  %v117 = vsel %vm32, %v116, %v92
  %v118 = vsel %vm31, %v27, %v115
  %v119 = vsel %vm31, 0, %v117
  %v120 = vcosq.f32.pop %v118
  %v121 = vsinq.f32.pop %v118
  %vm122 = vweird.f32 %v27
  %v123 = vadd.s32 %v119, 3
  %v124 = vand.u32 %v123, 3
  %vm125 = vcmp.lt.s32.totalorder %v124, 2
  %vm126 = vcmp.eq.s32.totalorder %v124, 0
  %v127 = vxor.u32 %v121, 2147483648
  %v128 = vsel %vm126, %v120, %v127
  %vm129 = vcmp.eq.s32.totalorder %v124, 2
  %v130 = vxor.u32 %v120, 2147483648
  %v131 = vsel %vm129, %v130, %v121
  %v132 = vsel %vm125, %v128, %v131
  %v133 = vsel %vm122, nan, %v132
  %v134 = vmul.f32 %v133, %v26
  %v135 = vsel %vm24, %v29, %v134
  %v136 = vmul.f32 %v27, 0.5
  %v137 = vand.u32 2147483647, %v136
  %vm138 = vcmp.le.f32.partialorder %v137, 0.7853982
  %vm139 = vcmp.lt.s32.totalorder %v136, 0
  %v140 = vand.u32 %v136, 2139095040
  %v141 = vshrl.u32 %v140, 23
  %v142 = vsub.s32 %v141, 127
  %v143 = vand.u32 2147483647, %v136
  %v144 = vand.u32 %v143, 8388607
  %v145 = vor.u32 %v144, 8388608
  %v146 = vsub.s32 0, %v145
  %v147 = vadd.s32 %v142, 1
  %vm148 = vcmp.gt.s32.totalorder %v147, 0
  %v149 = vsel %vm148, %v147, 0
  %v150 = vshrl.u32 %v149, 5
  %v151 = vand.u32 %v149, 31
  %v152 = vsub.s32 32, %v151
  %v153 = vshrl.u32 683565275, %v152
  %v154 = vshll.u32 683565275, %v151
  %v155 = vshrl.u32 2475754826, %v152
  %v156 = vor.u32 %v154, %v155
  %v157 = vshll.u32 2475754826, %v151
  %v158 = vshrl.u32 2131351028, %v152
  %v159 = vor.u32 %v157, %v158
  %v160 = vshll.u32 2131351028, %v151
  %v161 = vshrl.u32 2102212464, %v152
  %v162 = vor.u32 %v160, %v161
  %v163 = vshll.u32 2102212464, %v151
  %v164 = vshrl.u32 920167782, %v152
  %v165 = vor.u32 %v163, %v164
  %v166 = vshll.u32 920167782, %v151
  %v167 = vshrl.u32 1326507024, %v152
  %v168 = vor.u32 %v166, %v167
  %vm169 = vcmp.lt.s32.totalorder %v150, 1
  %vm170 = vcmp.lt.s32.totalorder %v150, 2
  %vm171 = vcmp.lt.s32.totalorder %v150, 3
  %vm172 = vcmp.lt.s32.totalorder %v150, 4
  %v173 = vsel %vm169, %v153, %v156
  %v174 = vsel %vm172, %v162, 2102212464
  %v175 = vsel %vm171, %v159, %v174
  %v176 = vsel %vm170, %v173, %v175
  %v177 = vsel %vm169, %v156, %v159
  %v178 = vsel %vm172, %v165, 920167782
  %v179 = vsel %vm171, %v162, %v178
  %v180 = vsel %vm170, %v177, %v179
  %v181 = vsel %vm169, %v159, %v162
  %v182 = vsel %vm172, %v168, 1326507024
  %v183 = vsel %vm171, %v165, %v182
  %v184 = vsel %vm170, %v181, %v183
  %v185 = vshll.u32 %v145, 8
  %v186 = vmul.u32.u64.compose %v185, %v184
  %v187 = vextract.low.u32 %v186
  %v188 = vextract.high.u32 %v186
  %v189 = vmul.u32.u64.compose %v185, %v180
  %v190 = vextract.low.u32 %v189
  %v191 = vextract.high.u32 %v189
  %v192 = vmul.u32 %v185, %v176
  %v193 = vadd.s32 %v188, %v190
  %vm194 = vc.u32 %v188, %v190
  %v195 = vadd.s32 %v191, 1
  %v196 = vsel %vm194, %v195, %v191
  %v197 = vadd.s32 %v192, %v196
  %v198 = vadd.s32 %v197, 536870912
  %v199 = vshrl.u32 %v198, 30
  %v200 = vshll.u32 %v199, 30
  %v201 = vsub.s32 %v197, %v200
  %vm202 = vcmp.lt.s32.totalorder %v201, 0
  %v203 = vsub.s32 0, %v201
  %v204 = vsel %vm202, %v203, %v201
  %v205 = vclz %v204
  %v206 = vsub.s32 %v205, 2
  %vm207 = vcmp.gt.s32.totalorder 0, %v206
  %v208 = vsel %vm207, 0, %v206
  %v209 = vsub.s32 32, %v208
  %v210 = vshll.u32 %v201, %v208
  %v211 = vshrl.u32 %v193, %v209
  %v212 = vor.u32 %v210, %v211
  %v213 = vsub.s32 4294967266, %v208
  %v214 = vadd.s32 %v213, 127
  %v215 = vshll.u32 %v214, 23
  %v216 = vor.u32 4788187, %v215
  %v217 = vand.u32 2147483647, %v216
  %v219 = vcvt.s32.f32 %v212
  %v220 = vmul.f32 %v219, %v217
  %v221 = vxor.u32 %v220, 2147483648
  %v222 = vsel %vm139, %v221, %v220
  %v223 = vsub.s32 4, %v199
  %v224 = vsel %vm139, %v223, %v199
  %v225 = vsel %vm138, %v136, %v222
  %v226 = vsel %vm138, 0, %v224
  %v227 = vcosq.f32.pop %v225
  %v228 = vsinq.f32.pop %v225
  %vm229 = vweird.f32 %v136
  %v230 = vadd.s32 %v226, 3
  %v231 = vand.u32 %v230, 3
  %vm232 = vcmp.lt.s32.totalorder %v231, 2
  %vm233 = vcmp.eq.s32.totalorder %v231, 0
  %v234 = vxor.u32 %v228, 2147483648
  %v235 = vsel %vm233, %v227, %v234
  %vm236 = vcmp.eq.s32.totalorder %v231, 2
  %v237 = vxor.u32 %v227, 2147483648
  %v238 = vsel %vm236, %v237, %v228
  %v239 = vsel %vm232, %v235, %v238
  %v240 = vsel %vm229, nan, %v239
  %v241 = vmul.f32 %v23, 0.041666668
  %v242 = vsub.f32 0.5, %v241
  %v243 = vmul.f32 %v240, 2.0
  %v244 = vmul.f32 %v243, %v240
  %v245 = vmul.f32 %v244, %v26
  %v246 = vmul.f32 %v245, %v26
  %v247 = vsel %vm24, %v242, %v246
  %v248 = vsub.f32 %v19, %v23
  %v249 = vmul.f32 %v247, %v248
  %v250 = vadd.f32 %v249, 1.0
  %v251 = vsub.f32 0.0, %v135
  %v252 = vmul.f32 %v251, %v18
  %v253 = vmul.f32 %v247, %v14
  %v254 = vmul.f32 %v253, %v16
  %v255 = vadd.f32 %v252, %v254
  %v256 = vmul.f32 %v135, %v16
  %v257 = vmul.f32 %v253, %v18
  %v258 = vadd.f32 %v256, %v257
  %v259 = vmul.f32 %v135, %v18
  %v260 = vadd.f32 %v259, %v254
  %v261 = vsub.f32 %v20, %v23
  %v262 = vmul.f32 %v247, %v261
  %v263 = vadd.f32 %v262, 1.0
  %v264 = vmul.f32 %v251, %v14
  %v265 = vmul.f32 %v247, %v16
  %v266 = vmul.f32 %v265, %v18
  %v267 = vadd.f32 %v264, %v266
  %v268 = vmul.f32 %v251, %v16
  %v269 = vadd.f32 %v268, %v257
  %v270 = vmul.f32 %v135, %v14
  %v271 = vadd.f32 %v270, %v266
  %v272 = vsub.f32 %v22, %v23
  %v273 = vmul.f32 %v247, %v272
  %v274 = vadd.f32 %v273, 1.0
  %275 = vst [vmem:[%s1] sm:$0xff] %v250
  %s276 = scalar_lea.vmem %s1, 8
  %277 = vst [vmem:[%s276] sm:$0xff] %v255
  %s278 = scalar_lea.vmem %s1, 16
  %279 = vst [vmem:[%s278] sm:$0xff] %v258
  %s280 = scalar_lea.vmem %s1, 24
  %281 = vst [vmem:[%s280] sm:$0xff] %v8
  %s282 = scalar_lea.vmem %s1, 32
  %283 = vst [vmem:[%s282] sm:$0xff] %v260
  %s284 = scalar_lea.vmem %s1, 40
  %285 = vst [vmem:[%s284] sm:$0xff] %v263
  %s286 = scalar_lea.vmem %s1, 48
  %287 = vst [vmem:[%s286] sm:$0xff] %v267
  %s288 = scalar_lea.vmem %s1, 56
  %289 = vst [vmem:[%s288] sm:$0xff] %v10
  %s290 = scalar_lea.vmem %s1, 64
  %291 = vst [vmem:[%s290] sm:$0xff] %v269
  %s292 = scalar_lea.vmem %s1, 72
  %293 = vst [vmem:[%s292] sm:$0xff] %v271
  %s294 = scalar_lea.vmem %s1, 80
  %295 = vst [vmem:[%s294] sm:$0xff] %v274
  %s296 = scalar_lea.vmem %s1, 88
  %297 = vst [vmem:[%s296] sm:$0xff] %v12
  %s298 = scalar_lea.vmem %s0, 48
  %v299 = vld [vmem:[%s298] sm:$0xff]
  %v300 = vand.u32 2147483647, %v299
  %vm301 = vcmp.le.f32.partialorder %v300, 0.7853982
  %vm302 = vcmp.lt.s32.totalorder %v299, 0
  %v303 = vand.u32 %v299, 2139095040
  %v304 = vshrl.u32 %v303, 23
  %v305 = vsub.s32 %v304, 127
  %v306 = vand.u32 2147483647, %v299
  %v307 = vand.u32 %v306, 8388607
  %v308 = vor.u32 %v307, 8388608
  %v309 = vsub.s32 0, %v308
  %v310 = vadd.s32 %v305, 1
  %vm311 = vcmp.gt.s32.totalorder %v310, 0
  %v312 = vsel %vm311, %v310, 0
  %v313 = vshrl.u32 %v312, 5
  %v314 = vand.u32 %v312, 31
  %v315 = vsub.s32 32, %v314
  %v316 = vshrl.u32 683565275, %v315
  %v317 = vshll.u32 683565275, %v314
  %v318 = vshrl.u32 2475754826, %v315
  %v319 = vor.u32 %v317, %v318
  %v320 = vshll.u32 2475754826, %v314
  %v321 = vshrl.u32 2131351028, %v315
  %v322 = vor.u32 %v320, %v321
  %v323 = vshll.u32 2131351028, %v314
  %v324 = vshrl.u32 2102212464, %v315
  %v325 = vor.u32 %v323, %v324
  %v326 = vshll.u32 2102212464, %v314
  %v327 = vshrl.u32 920167782, %v315
  %v328 = vor.u32 %v326, %v327
  %v329 = vshll.u32 920167782, %v314
  %v330 = vshrl.u32 1326507024, %v315
  %v331 = vor.u32 %v329, %v330
  %vm332 = vcmp.lt.s32.totalorder %v313, 1
  %vm333 = vcmp.lt.s32.totalorder %v313, 2
  %vm334 = vcmp.lt.s32.totalorder %v313, 3
  %vm335 = vcmp.lt.s32.totalorder %v313, 4
  %v336 = vsel %vm332, %v316, %v319
  %v337 = vsel %vm335, %v325, 2102212464
  %v338 = vsel %vm334, %v322, %v337
  %v339 = vsel %vm333, %v336, %v338
  %v340 = vsel %vm332, %v319, %v322
  %v341 = vsel %vm335, %v328, 920167782
  %v342 = vsel %vm334, %v325, %v341
  %v343 = vsel %vm333, %v340, %v342
  %v344 = vsel %vm332, %v322, %v325
  %v345 = vsel %vm335, %v331, 1326507024
  %v346 = vsel %vm334, %v328, %v345
  %v347 = vsel %vm333, %v344, %v346
  %v348 = vshll.u32 %v308, 8
  %v349 = vmul.u32.u64.compose %v348, %v347
  %v350 = vextract.low.u32 %v349
  %v351 = vextract.high.u32 %v349
  %v352 = vmul.u32.u64.compose %v348, %v343
  %v353 = vextract.low.u32 %v352
  %v354 = vextract.high.u32 %v352
  %v355 = vmul.u32 %v348, %v339
  %v356 = vadd.s32 %v351, %v353
  %vm357 = vc.u32 %v351, %v353
  %v358 = vadd.s32 %v354, 1
  %v359 = vsel %vm357, %v358, %v354
  %v360 = vadd.s32 %v355, %v359
  %v361 = vadd.s32 %v360, 536870912
  %v362 = vshrl.u32 %v361, 30
  %v363 = vshll.u32 %v362, 30
  %v364 = vsub.s32 %v360, %v363
  %vm365 = vcmp.lt.s32.totalorder %v364, 0
  %v366 = vsub.s32 0, %v364
  %v367 = vsel %vm365, %v366, %v364
  %v368 = vclz %v367
  %v369 = vsub.s32 %v368, 2
  %vm370 = vcmp.gt.s32.totalorder 0, %v369
  %v371 = vsel %vm370, 0, %v369
  %v372 = vsub.s32 32, %v371
  %v373 = vshll.u32 %v364, %v371
  %v374 = vshrl.u32 %v356, %v372
  %v375 = vor.u32 %v373, %v374
  %v376 = vsub.s32 4294967266, %v371
  %v377 = vadd.s32 %v376, 127
  %v378 = vshll.u32 %v377, 23
  %v379 = vor.u32 4788187, %v378
  %v380 = vand.u32 2147483647, %v379
  %v382 = vcvt.s32.f32 %v375
  %v383 = vmul.f32 %v382, %v380
  %v384 = vxor.u32 %v383, 2147483648
  %v385 = vsel %vm302, %v384, %v383
  %v386 = vsub.s32 4, %v362
  %v387 = vsel %vm302, %v386, %v362
  %v388 = vsel %vm301, %v299, %v385
  %v389 = vsel %vm301, 0, %v387
  %v390 = vcosq.f32.pop %v388
  %v391 = vsinq.f32.pop %v388
  %vm392 = vweird.f32 %v299
  %v393 = vand.u32 %v389, 3
  %vm394 = vcmp.lt.s32.totalorder %v393, 2
  %vm395 = vcmp.eq.s32.totalorder %v393, 0
  %v396 = vxor.u32 %v391, 2147483648
  %v397 = vsel %vm395, %v390, %v396
  %vm398 = vcmp.eq.s32.totalorder %v393, 2
  %v399 = vxor.u32 %v390, 2147483648
  %v400 = vsel %vm398, %v399, %v391
  %v401 = vsel %vm394, %v397, %v400
  %v402 = vsel %vm392, nan, %v401
  %v403 = vand.u32 2147483647, %v299
  %vm404 = vcmp.le.f32.partialorder %v403, 0.7853982
  %vm405 = vcmp.lt.s32.totalorder %v299, 0
  %v406 = vand.u32 %v299, 2139095040
  %v407 = vshrl.u32 %v406, 23
  %v408 = vsub.s32 %v407, 127
  %v409 = vand.u32 2147483647, %v299
  %v410 = vand.u32 %v409, 8388607
  %v411 = vor.u32 %v410, 8388608
  %v412 = vsub.s32 0, %v411
  %v413 = vadd.s32 %v408, 1
  %vm414 = vcmp.gt.s32.totalorder %v413, 0
  %v415 = vsel %vm414, %v413, 0
  %v416 = vshrl.u32 %v415, 5
  %v417 = vand.u32 %v415, 31
  %v418 = vsub.s32 32, %v417
  %v419 = vshrl.u32 683565275, %v418
  %v420 = vshll.u32 683565275, %v417
  %v421 = vshrl.u32 2475754826, %v418
  %v422 = vor.u32 %v420, %v421
  %v423 = vshll.u32 2475754826, %v417
  %v424 = vshrl.u32 2131351028, %v418
  %v425 = vor.u32 %v423, %v424
  %v426 = vshll.u32 2131351028, %v417
  %v427 = vshrl.u32 2102212464, %v418
  %v428 = vor.u32 %v426, %v427
  %v429 = vshll.u32 2102212464, %v417
  %v430 = vshrl.u32 920167782, %v418
  %v431 = vor.u32 %v429, %v430
  %v432 = vshll.u32 920167782, %v417
  %v433 = vshrl.u32 1326507024, %v418
  %v434 = vor.u32 %v432, %v433
  %vm435 = vcmp.lt.s32.totalorder %v416, 1
  %vm436 = vcmp.lt.s32.totalorder %v416, 2
  %vm437 = vcmp.lt.s32.totalorder %v416, 3
  %vm438 = vcmp.lt.s32.totalorder %v416, 4
  %v439 = vsel %vm435, %v419, %v422
  %v440 = vsel %vm438, %v428, 2102212464
  %v441 = vsel %vm437, %v425, %v440
  %v442 = vsel %vm436, %v439, %v441
  %v443 = vsel %vm435, %v422, %v425
  %v444 = vsel %vm438, %v431, 920167782
  %v445 = vsel %vm437, %v428, %v444
  %v446 = vsel %vm436, %v443, %v445
  %v447 = vsel %vm435, %v425, %v428
  %v448 = vsel %vm438, %v434, 1326507024
  %v449 = vsel %vm437, %v431, %v448
  %v450 = vsel %vm436, %v447, %v449
  %v451 = vshll.u32 %v411, 8
  %v452 = vmul.u32.u64.compose %v451, %v450
  %v453 = vextract.low.u32 %v452
  %v454 = vextract.high.u32 %v452
  %v455 = vmul.u32.u64.compose %v451, %v446
  %v456 = vextract.low.u32 %v455
  %v457 = vextract.high.u32 %v455
  %v458 = vmul.u32 %v451, %v442
  %v459 = vadd.s32 %v454, %v456
  %vm460 = vc.u32 %v454, %v456
  %v461 = vadd.s32 %v457, 1
  %v462 = vsel %vm460, %v461, %v457
  %v463 = vadd.s32 %v458, %v462
  %v464 = vadd.s32 %v463, 536870912
  %v465 = vshrl.u32 %v464, 30
  %v466 = vshll.u32 %v465, 30
  %v467 = vsub.s32 %v463, %v466
  %vm468 = vcmp.lt.s32.totalorder %v467, 0
  %v469 = vsub.s32 0, %v467
  %v470 = vsel %vm468, %v469, %v467
  %v471 = vclz %v470
  %v472 = vsub.s32 %v471, 2
  %vm473 = vcmp.gt.s32.totalorder 0, %v472
  %v474 = vsel %vm473, 0, %v472
  %v475 = vsub.s32 32, %v474
  %v476 = vshll.u32 %v467, %v474
  %v477 = vshrl.u32 %v459, %v475
  %v478 = vor.u32 %v476, %v477
  %v479 = vsub.s32 4294967266, %v474
  %v480 = vadd.s32 %v479, 127
  %v481 = vshll.u32 %v480, 23
  %v482 = vor.u32 4788187, %v481
  %v483 = vand.u32 2147483647, %v482
  %v485 = vcvt.s32.f32 %v478
  %v486 = vmul.f32 %v485, %v483
  %v487 = vxor.u32 %v486, 2147483648
  %v488 = vsel %vm405, %v487, %v486
  %v489 = vsub.s32 4, %v465
  %v490 = vsel %vm405, %v489, %v465
  %v491 = vsel %vm404, %v299, %v488
  %v492 = vsel %vm404, 0, %v490
  %v493 = vcosq.f32.pop %v491
  %v494 = vsinq.f32.pop %v491
  %vm495 = vweird.f32 %v299
  %v496 = vadd.s32 %v492, 3
  %v497 = vand.u32 %v496, 3
  %vm498 = vcmp.lt.s32.totalorder %v497, 2
  %vm499 = vcmp.eq.s32.totalorder %v497, 0
  %v500 = vxor.u32 %v494, 2147483648
  %v501 = vsel %vm499, %v493, %v500
  %vm502 = vcmp.eq.s32.totalorder %v497, 2
  %v503 = vxor.u32 %v493, 2147483648
  %v504 = vsel %vm502, %v503, %v494
  %v505 = vsel %vm498, %v501, %v504
  %v506 = vsel %vm495, nan, %v505
  %v507 = vsub.f32 1.0, %v402
  %v508 = vmul.f32 %v507, 0.7477574
  %v509 = vadd.f32 %v402, %v508
  %v510 = vmul.f32 %v507, 0.22097741
  %v511 = vmul.f32 %v506, 0.43236482
  %v512 = vsub.f32 %v510, %v511
  %v513 = vmul.f32 %v507, 0.3738787
  %v514 = vmul.f32 %v506, 0.25554508
  %v515 = vadd.f32 %v513, %v514
  %v516 = vadd.f32 %v510, %v511
  %v517 = vmul.f32 %v507, 0.06530329
  %v518 = vadd.f32 %v402, %v517
  %v519 = vmul.f32 %v507, 0.110488705
  %v520 = vmul.f32 %v506, 0.86472964
  %v521 = vsub.f32 %v519, %v520
  %v522 = vsub.f32 %v513, %v514
  %v523 = vadd.f32 %v519, %v520
  %v524 = vmul.f32 %v507, 0.18693934
  %v525 = vadd.f32 %v402, %v524
  %v526 = vmul.f32 %v250, %v509
  %v527 = vmul.f32 %v255, %v516
  %v528 = vadd.f32 %v526, %v527
  %v529 = vmul.f32 %v258, %v522
  %v530 = vadd.f32 %v528, %v529
  %v531 = vmul.f32 %v250, %v512
  %v532 = vmul.f32 %v255, %v518
  %v533 = vadd.f32 %v531, %v532
  %v534 = vmul.f32 %v258, %v523
  %v535 = vadd.f32 %v533, %v534
  %v536 = vmul.f32 %v250, %v515
  %v537 = vmul.f32 %v255, %v521
  %v538 = vadd.f32 %v536, %v537
  %v539 = vmul.f32 %v258, %v525
  %v540 = vadd.f32 %v538, %v539
  %v541 = vmul.f32 %v250, 0.05
  %v542 = vmul.f32 %v255, 0.0
  %v543 = vadd.f32 %v541, %v542
  %v544 = vmul.f32 %v258, 0.1
  %v545 = vadd.f32 %v543, %v544
  %v546 = vadd.f32 %v545, %v8
  %v547 = vmul.f32 %v260, %v509
  %v548 = vmul.f32 %v263, %v516
  %v549 = vadd.f32 %v547, %v548
  %v550 = vmul.f32 %v267, %v522
  %v551 = vadd.f32 %v549, %v550
  %v552 = vmul.f32 %v260, %v512
  %v553 = vmul.f32 %v263, %v518
  %v554 = vadd.f32 %v552, %v553
  %v555 = vmul.f32 %v267, %v523
  %v556 = vadd.f32 %v554, %v555
  %v557 = vmul.f32 %v260, %v515
  %v558 = vmul.f32 %v263, %v521
  %v559 = vadd.f32 %v557, %v558
  %v560 = vmul.f32 %v267, %v525
  %v561 = vadd.f32 %v559, %v560
  %v562 = vmul.f32 %v260, 0.05
  %v563 = vmul.f32 %v263, 0.0
  %v564 = vadd.f32 %v562, %v563
  %v565 = vmul.f32 %v267, 0.1
  %v566 = vadd.f32 %v564, %v565
  %v567 = vadd.f32 %v566, %v10
  %v568 = vmul.f32 %v269, %v509
  %v569 = vmul.f32 %v271, %v516
  %v570 = vadd.f32 %v568, %v569
  %v571 = vmul.f32 %v274, %v522
  %v572 = vadd.f32 %v570, %v571
  %v573 = vmul.f32 %v269, %v512
  %v574 = vmul.f32 %v271, %v518
  %v575 = vadd.f32 %v573, %v574
  %v576 = vmul.f32 %v274, %v523
  %v577 = vadd.f32 %v575, %v576
  %v578 = vmul.f32 %v269, %v515
  %v579 = vmul.f32 %v271, %v521
  %v580 = vadd.f32 %v578, %v579
  %v581 = vmul.f32 %v274, %v525
  %v582 = vadd.f32 %v580, %v581
  %v583 = vmul.f32 %v269, 0.05
  %v584 = vmul.f32 %v271, 0.0
  %v585 = vadd.f32 %v583, %v584
  %v586 = vmul.f32 %v274, 0.1
  %v587 = vadd.f32 %v585, %v586
  %v588 = vadd.f32 %v587, %v12
  %s589 = scalar_lea.vmem %s1, 96
  %590 = vst [vmem:[%s589] sm:$0xff] %v530
  %s591 = scalar_lea.vmem %s1, 104
  %592 = vst [vmem:[%s591] sm:$0xff] %v535
  %s593 = scalar_lea.vmem %s1, 112
  %594 = vst [vmem:[%s593] sm:$0xff] %v540
  %s595 = scalar_lea.vmem %s1, 120
  %596 = vst [vmem:[%s595] sm:$0xff] %v546
  %s597 = scalar_lea.vmem %s1, 128
  %598 = vst [vmem:[%s597] sm:$0xff] %v551
  %s599 = scalar_lea.vmem %s1, 136
  %600 = vst [vmem:[%s599] sm:$0xff] %v556
  %s601 = scalar_lea.vmem %s1, 144
  %602 = vst [vmem:[%s601] sm:$0xff] %v561
  %s603 = scalar_lea.vmem %s1, 152
  %604 = vst [vmem:[%s603] sm:$0xff] %v567
  %s605 = scalar_lea.vmem %s1, 160
  %606 = vst [vmem:[%s605] sm:$0xff] %v572
  %s607 = scalar_lea.vmem %s1, 168
  %608 = vst [vmem:[%s607] sm:$0xff] %v577
  %s609 = scalar_lea.vmem %s1, 176
  %610 = vst [vmem:[%s609] sm:$0xff] %v582
  %s611 = scalar_lea.vmem %s1, 184
  %612 = vst [vmem:[%s611] sm:$0xff] %v588
  %s613 = scalar_lea.vmem %s0, 56
  %v614 = vld [vmem:[%s613] sm:$0xff]
  %v615 = vand.u32 2147483647, %v614
  %vm616 = vcmp.le.f32.partialorder %v615, 0.7853982
  %vm617 = vcmp.lt.s32.totalorder %v614, 0
  %v618 = vand.u32 %v614, 2139095040
  %v619 = vshrl.u32 %v618, 23
  %v620 = vsub.s32 %v619, 127
  %v621 = vand.u32 2147483647, %v614
  %v622 = vand.u32 %v621, 8388607
  %v623 = vor.u32 %v622, 8388608
  %v624 = vsub.s32 0, %v623
  %v625 = vadd.s32 %v620, 1
  %vm626 = vcmp.gt.s32.totalorder %v625, 0
  %v627 = vsel %vm626, %v625, 0
  %v628 = vshrl.u32 %v627, 5
  %v629 = vand.u32 %v627, 31
  %v630 = vsub.s32 32, %v629
  %v631 = vshrl.u32 683565275, %v630
  %v632 = vshll.u32 683565275, %v629
  %v633 = vshrl.u32 2475754826, %v630
  %v634 = vor.u32 %v632, %v633
  %v635 = vshll.u32 2475754826, %v629
  %v636 = vshrl.u32 2131351028, %v630
  %v637 = vor.u32 %v635, %v636
  %v638 = vshll.u32 2131351028, %v629
  %v639 = vshrl.u32 2102212464, %v630
  %v640 = vor.u32 %v638, %v639
  %v641 = vshll.u32 2102212464, %v629
  %v642 = vshrl.u32 920167782, %v630
  %v643 = vor.u32 %v641, %v642
  %v644 = vshll.u32 920167782, %v629
  %v645 = vshrl.u32 1326507024, %v630
  %v646 = vor.u32 %v644, %v645
  %vm647 = vcmp.lt.s32.totalorder %v628, 1
  %vm648 = vcmp.lt.s32.totalorder %v628, 2
  %vm649 = vcmp.lt.s32.totalorder %v628, 3
  %vm650 = vcmp.lt.s32.totalorder %v628, 4
  %v651 = vsel %vm647, %v631, %v634
  %v652 = vsel %vm650, %v640, 2102212464
  %v653 = vsel %vm649, %v637, %v652
  %v654 = vsel %vm648, %v651, %v653
  %v655 = vsel %vm647, %v634, %v637
  %v656 = vsel %vm650, %v643, 920167782
  %v657 = vsel %vm649, %v640, %v656
  %v658 = vsel %vm648, %v655, %v657
  %v659 = vsel %vm647, %v637, %v640
  %v660 = vsel %vm650, %v646, 1326507024
  %v661 = vsel %vm649, %v643, %v660
  %v662 = vsel %vm648, %v659, %v661
  %v663 = vshll.u32 %v623, 8
  %v664 = vmul.u32.u64.compose %v663, %v662
  %v665 = vextract.low.u32 %v664
  %v666 = vextract.high.u32 %v664
  %v667 = vmul.u32.u64.compose %v663, %v658
  %v668 = vextract.low.u32 %v667
  %v669 = vextract.high.u32 %v667
  %v670 = vmul.u32 %v663, %v654
  %v671 = vadd.s32 %v666, %v668
  %vm672 = vc.u32 %v666, %v668
  %v673 = vadd.s32 %v669, 1
  %v674 = vsel %vm672, %v673, %v669
  %v675 = vadd.s32 %v670, %v674
  %v676 = vadd.s32 %v675, 536870912
  %v677 = vshrl.u32 %v676, 30
  %v678 = vshll.u32 %v677, 30
  %v679 = vsub.s32 %v675, %v678
  %vm680 = vcmp.lt.s32.totalorder %v679, 0
  %v681 = vsub.s32 0, %v679
  %v682 = vsel %vm680, %v681, %v679
  %v683 = vclz %v682
  %v684 = vsub.s32 %v683, 2
  %vm685 = vcmp.gt.s32.totalorder 0, %v684
  %v686 = vsel %vm685, 0, %v684
  %v687 = vsub.s32 32, %v686
  %v688 = vshll.u32 %v679, %v686
  %v689 = vshrl.u32 %v671, %v687
  %v690 = vor.u32 %v688, %v689
  %v691 = vsub.s32 4294967266, %v686
  %v692 = vadd.s32 %v691, 127
  %v693 = vshll.u32 %v692, 23
  %v694 = vor.u32 4788187, %v693
  %v695 = vand.u32 2147483647, %v694
  %v697 = vcvt.s32.f32 %v690
  %v698 = vmul.f32 %v697, %v695
  %v699 = vxor.u32 %v698, 2147483648
  %v700 = vsel %vm617, %v699, %v698
  %v701 = vsub.s32 4, %v677
  %v702 = vsel %vm617, %v701, %v677
  %v703 = vsel %vm616, %v614, %v700
  %v704 = vsel %vm616, 0, %v702
  %v705 = vcosq.f32.pop %v703
  %v706 = vsinq.f32.pop %v703
  %vm707 = vweird.f32 %v614
  %v708 = vand.u32 %v704, 3
  %vm709 = vcmp.lt.s32.totalorder %v708, 2
  %vm710 = vcmp.eq.s32.totalorder %v708, 0
  %v711 = vxor.u32 %v706, 2147483648
  %v712 = vsel %vm710, %v705, %v711
  %vm713 = vcmp.eq.s32.totalorder %v708, 2
  %v714 = vxor.u32 %v705, 2147483648
  %v715 = vsel %vm713, %v714, %v706
  %v716 = vsel %vm709, %v712, %v715
  %v717 = vsel %vm707, nan, %v716
  %v718 = vand.u32 2147483647, %v614
  %vm719 = vcmp.le.f32.partialorder %v718, 0.7853982
  %vm720 = vcmp.lt.s32.totalorder %v614, 0
  %v721 = vand.u32 %v614, 2139095040
  %v722 = vshrl.u32 %v721, 23
  %v723 = vsub.s32 %v722, 127
  %v724 = vand.u32 2147483647, %v614
  %v725 = vand.u32 %v724, 8388607
  %v726 = vor.u32 %v725, 8388608
  %v727 = vsub.s32 0, %v726
  %v728 = vadd.s32 %v723, 1
  %vm729 = vcmp.gt.s32.totalorder %v728, 0
  %v730 = vsel %vm729, %v728, 0
  %v731 = vshrl.u32 %v730, 5
  %v732 = vand.u32 %v730, 31
  %v733 = vsub.s32 32, %v732
  %v734 = vshrl.u32 683565275, %v733
  %v735 = vshll.u32 683565275, %v732
  %v736 = vshrl.u32 2475754826, %v733
  %v737 = vor.u32 %v735, %v736
  %v738 = vshll.u32 2475754826, %v732
  %v739 = vshrl.u32 2131351028, %v733
  %v740 = vor.u32 %v738, %v739
  %v741 = vshll.u32 2131351028, %v732
  %v742 = vshrl.u32 2102212464, %v733
  %v743 = vor.u32 %v741, %v742
  %v744 = vshll.u32 2102212464, %v732
  %v745 = vshrl.u32 920167782, %v733
  %v746 = vor.u32 %v744, %v745
  %v747 = vshll.u32 920167782, %v732
  %v748 = vshrl.u32 1326507024, %v733
  %v749 = vor.u32 %v747, %v748
  %vm750 = vcmp.lt.s32.totalorder %v731, 1
  %vm751 = vcmp.lt.s32.totalorder %v731, 2
  %vm752 = vcmp.lt.s32.totalorder %v731, 3
  %vm753 = vcmp.lt.s32.totalorder %v731, 4
  %v754 = vsel %vm750, %v734, %v737
  %v755 = vsel %vm753, %v743, 2102212464
  %v756 = vsel %vm752, %v740, %v755
  %v757 = vsel %vm751, %v754, %v756
  %v758 = vsel %vm750, %v737, %v740
  %v759 = vsel %vm753, %v746, 920167782
  %v760 = vsel %vm752, %v743, %v759
  %v761 = vsel %vm751, %v758, %v760
  %v762 = vsel %vm750, %v740, %v743
  %v763 = vsel %vm753, %v749, 1326507024
  %v764 = vsel %vm752, %v746, %v763
  %v765 = vsel %vm751, %v762, %v764
  %v766 = vshll.u32 %v726, 8
  %v767 = vmul.u32.u64.compose %v766, %v765
  %v768 = vextract.low.u32 %v767
  %v769 = vextract.high.u32 %v767
  %v770 = vmul.u32.u64.compose %v766, %v761
  %v771 = vextract.low.u32 %v770
  %v772 = vextract.high.u32 %v770
  %v773 = vmul.u32 %v766, %v757
  %v774 = vadd.s32 %v769, %v771
  %vm775 = vc.u32 %v769, %v771
  %v776 = vadd.s32 %v772, 1
  %v777 = vsel %vm775, %v776, %v772
  %v778 = vadd.s32 %v773, %v777
  %v779 = vadd.s32 %v778, 536870912
  %v780 = vshrl.u32 %v779, 30
  %v781 = vshll.u32 %v780, 30
  %v782 = vsub.s32 %v778, %v781
  %vm783 = vcmp.lt.s32.totalorder %v782, 0
  %v784 = vsub.s32 0, %v782
  %v785 = vsel %vm783, %v784, %v782
  %v786 = vclz %v785
  %v787 = vsub.s32 %v786, 2
  %vm788 = vcmp.gt.s32.totalorder 0, %v787
  %v789 = vsel %vm788, 0, %v787
  %v790 = vsub.s32 32, %v789
  %v791 = vshll.u32 %v782, %v789
  %v792 = vshrl.u32 %v774, %v790
  %v793 = vor.u32 %v791, %v792
  %v794 = vsub.s32 4294967266, %v789
  %v795 = vadd.s32 %v794, 127
  %v796 = vshll.u32 %v795, 23
  %v797 = vor.u32 4788187, %v796
  %v798 = vand.u32 2147483647, %v797
  %v800 = vcvt.s32.f32 %v793
  %v801 = vmul.f32 %v800, %v798
  %v802 = vxor.u32 %v801, 2147483648
  %v803 = vsel %vm720, %v802, %v801
  %v804 = vsub.s32 4, %v780
  %v805 = vsel %vm720, %v804, %v780
  %v806 = vsel %vm719, %v614, %v803
  %v807 = vsel %vm719, 0, %v805
  %v808 = vcosq.f32.pop %v806
  %v809 = vsinq.f32.pop %v806
  %vm810 = vweird.f32 %v614
  %v811 = vadd.s32 %v807, 3
  %v812 = vand.u32 %v811, 3
  %vm813 = vcmp.lt.s32.totalorder %v812, 2
  %vm814 = vcmp.eq.s32.totalorder %v812, 0
  %v815 = vxor.u32 %v809, 2147483648
  %v816 = vsel %vm814, %v808, %v815
  %vm817 = vcmp.eq.s32.totalorder %v812, 2
  %v818 = vxor.u32 %v808, 2147483648
  %v819 = vsel %vm817, %v818, %v809
  %v820 = vsel %vm813, %v816, %v819
  %v821 = vsel %vm810, nan, %v820
  %v822 = vsub.f32 1.0, %v717
  %v823 = vmul.f32 %v822, 0.32253954
  %v824 = vadd.f32 %v717, %v823
  %v825 = vmul.f32 %v822, 0.39304766
  %v826 = vmul.f32 %v821, 0.44552377
  %v827 = vsub.f32 %v825, %v826
  %v828 = vmul.f32 %v822, 0.25302437
  %v829 = vmul.f32 %v821, 0.6920759
  %v830 = vadd.f32 %v828, %v829
  %v831 = vadd.f32 %v825, %v826
  %v832 = vmul.f32 %v822, 0.47896907
  %v833 = vadd.f32 %v717, %v832
  %v834 = vmul.f32 %v822, 0.30833626
  %v835 = vmul.f32 %v821, 0.56792563
  %v836 = vsub.f32 %v834, %v835
  %v837 = vsub.f32 %v828, %v829
  %v838 = vadd.f32 %v834, %v835
  %v839 = vmul.f32 %v822, 0.19849142
  %v840 = vadd.f32 %v717, %v839
  %v841 = vmul.f32 %v530, %v824
  %v842 = vmul.f32 %v535, %v831
  %v843 = vadd.f32 %v841, %v842
  %v844 = vmul.f32 %v540, %v837
  %v845 = vadd.f32 %v843, %v844
  %v846 = vmul.f32 %v530, %v827
  %v847 = vmul.f32 %v535, %v833
  %v848 = vadd.f32 %v846, %v847
  %v849 = vmul.f32 %v540, %v838
  %v850 = vadd.f32 %v848, %v849
  %v851 = vmul.f32 %v530, %v830
  %v852 = vmul.f32 %v535, %v836
  %v853 = vadd.f32 %v851, %v852
  %v854 = vmul.f32 %v540, %v840
  %v855 = vadd.f32 %v853, %v854
  %v856 = vmul.f32 %v530, 0.07
  %v857 = vmul.f32 %v535, 0.01
  %v858 = vadd.f32 %v856, %v857
  %v859 = vmul.f32 %v540, 0.1
  %v860 = vadd.f32 %v858, %v859
  %v861 = vadd.f32 %v860, %v546
  %v862 = vmul.f32 %v551, %v824
  %v863 = vmul.f32 %v556, %v831
  %v864 = vadd.f32 %v862, %v863
  %v865 = vmul.f32 %v561, %v837
  %v866 = vadd.f32 %v864, %v865
  %v867 = vmul.f32 %v551, %v827
  %v868 = vmul.f32 %v556, %v833
  %v869 = vadd.f32 %v867, %v868
  %v870 = vmul.f32 %v561, %v838
  %v871 = vadd.f32 %v869, %v870
  %v872 = vmul.f32 %v551, %v830
  %v873 = vmul.f32 %v556, %v836
  %v874 = vadd.f32 %v872, %v873
  %v875 = vmul.f32 %v561, %v840
  %v876 = vadd.f32 %v874, %v875
  %v877 = vmul.f32 %v551, 0.07
  %v878 = vmul.f32 %v556, 0.01
  %v879 = vadd.f32 %v877, %v878
  %v880 = vmul.f32 %v561, 0.1
  %v881 = vadd.f32 %v879, %v880
  %v882 = vadd.f32 %v881, %v567
  %v883 = vmul.f32 %v572, %v824
  %v884 = vmul.f32 %v577, %v831
  %v885 = vadd.f32 %v883, %v884
  %v886 = vmul.f32 %v582, %v837
  %v887 = vadd.f32 %v885, %v886
  %v888 = vmul.f32 %v572, %v827
  %v889 = vmul.f32 %v577, %v833
  %v890 = vadd.f32 %v888, %v889
  %v891 = vmul.f32 %v582, %v838
  %v892 = vadd.f32 %v890, %v891
  %v893 = vmul.f32 %v572, %v830
  %v894 = vmul.f32 %v577, %v836
  %v895 = vadd.f32 %v893, %v894
  %v896 = vmul.f32 %v582, %v840
  %v897 = vadd.f32 %v895, %v896
  %v898 = vmul.f32 %v572, 0.07
  %v899 = vmul.f32 %v577, 0.01
  %v900 = vadd.f32 %v898, %v899
  %v901 = vmul.f32 %v582, 0.1
  %v902 = vadd.f32 %v900, %v901
  %v903 = vadd.f32 %v902, %v588
  %s904 = scalar_lea.vmem %s1, 192
  %905 = vst [vmem:[%s904] sm:$0xff] %v845
  %s906 = scalar_lea.vmem %s1, 200
  %907 = vst [vmem:[%s906] sm:$0xff] %v850
  %s908 = scalar_lea.vmem %s1, 208
  %909 = vst [vmem:[%s908] sm:$0xff] %v855
  %s910 = scalar_lea.vmem %s1, 216
  %911 = vst [vmem:[%s910] sm:$0xff] %v861
  %s912 = scalar_lea.vmem %s1, 224
  %913 = vst [vmem:[%s912] sm:$0xff] %v866
  %s914 = scalar_lea.vmem %s1, 232
  %915 = vst [vmem:[%s914] sm:$0xff] %v871
  %s916 = scalar_lea.vmem %s1, 240
  %917 = vst [vmem:[%s916] sm:$0xff] %v876
  %s918 = scalar_lea.vmem %s1, 248
  %919 = vst [vmem:[%s918] sm:$0xff] %v882
  %s920 = scalar_lea.vmem %s1, 256
  %921 = vst [vmem:[%s920] sm:$0xff] %v887
  %s922 = scalar_lea.vmem %s1, 264
  %923 = vst [vmem:[%s922] sm:$0xff] %v892
  %s924 = scalar_lea.vmem %s1, 272
  %925 = vst [vmem:[%s924] sm:$0xff] %v897
  %s926 = scalar_lea.vmem %s1, 280
  %927 = vst [vmem:[%s926] sm:$0xff] %v903
  %s928 = scalar_lea.vmem %s0, 64
  %v929 = vld [vmem:[%s928] sm:$0xff]
  %v930 = vand.u32 2147483647, %v929
  %vm931 = vcmp.le.f32.partialorder %v930, 0.7853982
  %vm932 = vcmp.lt.s32.totalorder %v929, 0
  %v933 = vand.u32 %v929, 2139095040
  %v934 = vshrl.u32 %v933, 23
  %v935 = vsub.s32 %v934, 127
  %v936 = vand.u32 2147483647, %v929
  %v937 = vand.u32 %v936, 8388607
  %v938 = vor.u32 %v937, 8388608
  %v939 = vsub.s32 0, %v938
  %v940 = vadd.s32 %v935, 1
  %vm941 = vcmp.gt.s32.totalorder %v940, 0
  %v942 = vsel %vm941, %v940, 0
  %v943 = vshrl.u32 %v942, 5
  %v944 = vand.u32 %v942, 31
  %v945 = vsub.s32 32, %v944
  %v946 = vshrl.u32 683565275, %v945
  %v947 = vshll.u32 683565275, %v944
  %v948 = vshrl.u32 2475754826, %v945
  %v949 = vor.u32 %v947, %v948
  %v950 = vshll.u32 2475754826, %v944
  %v951 = vshrl.u32 2131351028, %v945
  %v952 = vor.u32 %v950, %v951
  %v953 = vshll.u32 2131351028, %v944
  %v954 = vshrl.u32 2102212464, %v945
  %v955 = vor.u32 %v953, %v954
  %v956 = vshll.u32 2102212464, %v944
  %v957 = vshrl.u32 920167782, %v945
  %v958 = vor.u32 %v956, %v957
  %v959 = vshll.u32 920167782, %v944
  %v960 = vshrl.u32 1326507024, %v945
  %v961 = vor.u32 %v959, %v960
  %vm962 = vcmp.lt.s32.totalorder %v943, 1
  %vm963 = vcmp.lt.s32.totalorder %v943, 2
  %vm964 = vcmp.lt.s32.totalorder %v943, 3
  %vm965 = vcmp.lt.s32.totalorder %v943, 4
  %v966 = vsel %vm962, %v946, %v949
  %v967 = vsel %vm965, %v955, 2102212464
  %v968 = vsel %vm964, %v952, %v967
  %v969 = vsel %vm963, %v966, %v968
  %v970 = vsel %vm962, %v949, %v952
  %v971 = vsel %vm965, %v958, 920167782
  %v972 = vsel %vm964, %v955, %v971
  %v973 = vsel %vm963, %v970, %v972
  %v974 = vsel %vm962, %v952, %v955
  %v975 = vsel %vm965, %v961, 1326507024
  %v976 = vsel %vm964, %v958, %v975
  %v977 = vsel %vm963, %v974, %v976
  %v978 = vshll.u32 %v938, 8
  %v979 = vmul.u32.u64.compose %v978, %v977
  %v980 = vextract.low.u32 %v979
  %v981 = vextract.high.u32 %v979
  %v982 = vmul.u32.u64.compose %v978, %v973
  %v983 = vextract.low.u32 %v982
  %v984 = vextract.high.u32 %v982
  %v985 = vmul.u32 %v978, %v969
  %v986 = vadd.s32 %v981, %v983
  %vm987 = vc.u32 %v981, %v983
  %v988 = vadd.s32 %v984, 1
  %v989 = vsel %vm987, %v988, %v984
  %v990 = vadd.s32 %v985, %v989
  %v991 = vadd.s32 %v990, 536870912
  %v992 = vshrl.u32 %v991, 30
  %v993 = vshll.u32 %v992, 30
  %v994 = vsub.s32 %v990, %v993
  %vm995 = vcmp.lt.s32.totalorder %v994, 0
  %v996 = vsub.s32 0, %v994
  %v997 = vsel %vm995, %v996, %v994
  %v998 = vclz %v997
  %v999 = vsub.s32 %v998, 2
  %vm1000 = vcmp.gt.s32.totalorder 0, %v999
  %v1001 = vsel %vm1000, 0, %v999
  %v1002 = vsub.s32 32, %v1001
  %v1003 = vshll.u32 %v994, %v1001
  %v1004 = vshrl.u32 %v986, %v1002
  %v1005 = vor.u32 %v1003, %v1004
  %v1006 = vsub.s32 4294967266, %v1001
  %v1007 = vadd.s32 %v1006, 127
  %v1008 = vshll.u32 %v1007, 23
  %v1009 = vor.u32 4788187, %v1008
  %v1010 = vand.u32 2147483647, %v1009
  %v1012 = vcvt.s32.f32 %v1005
  %v1013 = vmul.f32 %v1012, %v1010
  %v1014 = vxor.u32 %v1013, 2147483648
  %v1015 = vsel %vm932, %v1014, %v1013
  %v1016 = vsub.s32 4, %v992
  %v1017 = vsel %vm932, %v1016, %v992
  %v1018 = vsel %vm931, %v929, %v1015
  %v1019 = vsel %vm931, 0, %v1017
  %v1020 = vcosq.f32.pop %v1018
  %v1021 = vsinq.f32.pop %v1018
  %vm1022 = vweird.f32 %v929
  %v1023 = vand.u32 %v1019, 3
  %vm1024 = vcmp.lt.s32.totalorder %v1023, 2
  %vm1025 = vcmp.eq.s32.totalorder %v1023, 0
  %v1026 = vxor.u32 %v1021, 2147483648
  %v1027 = vsel %vm1025, %v1020, %v1026
  %vm1028 = vcmp.eq.s32.totalorder %v1023, 2
  %v1029 = vxor.u32 %v1020, 2147483648
  %v1030 = vsel %vm1028, %v1029, %v1021
  %v1031 = vsel %vm1024, %v1027, %v1030
  %v1032 = vsel %vm1022, nan, %v1031
  %v1033 = vand.u32 2147483647, %v929
  %vm1034 = vcmp.le.f32.partialorder %v1033, 0.7853982
  %vm1035 = vcmp.lt.s32.totalorder %v929, 0
  %v1036 = vand.u32 %v929, 2139095040
  %v1037 = vshrl.u32 %v1036, 23
  %v1038 = vsub.s32 %v1037, 127
  %v1039 = vand.u32 2147483647, %v929
  %v1040 = vand.u32 %v1039, 8388607
  %v1041 = vor.u32 %v1040, 8388608
  %v1042 = vsub.s32 0, %v1041
  %v1043 = vadd.s32 %v1038, 1
  %vm1044 = vcmp.gt.s32.totalorder %v1043, 0
  %v1045 = vsel %vm1044, %v1043, 0
  %v1046 = vshrl.u32 %v1045, 5
  %v1047 = vand.u32 %v1045, 31
  %v1048 = vsub.s32 32, %v1047
  %v1049 = vshrl.u32 683565275, %v1048
  %v1050 = vshll.u32 683565275, %v1047
  %v1051 = vshrl.u32 2475754826, %v1048
  %v1052 = vor.u32 %v1050, %v1051
  %v1053 = vshll.u32 2475754826, %v1047
  %v1054 = vshrl.u32 2131351028, %v1048
  %v1055 = vor.u32 %v1053, %v1054
  %v1056 = vshll.u32 2131351028, %v1047
  %v1057 = vshrl.u32 2102212464, %v1048
  %v1058 = vor.u32 %v1056, %v1057
  %v1059 = vshll.u32 2102212464, %v1047
  %v1060 = vshrl.u32 920167782, %v1048
  %v1061 = vor.u32 %v1059, %v1060
  %v1062 = vshll.u32 920167782, %v1047
  %v1063 = vshrl.u32 1326507024, %v1048
  %v1064 = vor.u32 %v1062, %v1063
  %vm1065 = vcmp.lt.s32.totalorder %v1046, 1
  %vm1066 = vcmp.lt.s32.totalorder %v1046, 2
  %vm1067 = vcmp.lt.s32.totalorder %v1046, 3
  %vm1068 = vcmp.lt.s32.totalorder %v1046, 4
  %v1069 = vsel %vm1065, %v1049, %v1052
  %v1070 = vsel %vm1068, %v1058, 2102212464
  %v1071 = vsel %vm1067, %v1055, %v1070
  %v1072 = vsel %vm1066, %v1069, %v1071
  %v1073 = vsel %vm1065, %v1052, %v1055
  %v1074 = vsel %vm1068, %v1061, 920167782
  %v1075 = vsel %vm1067, %v1058, %v1074
  %v1076 = vsel %vm1066, %v1073, %v1075
  %v1077 = vsel %vm1065, %v1055, %v1058
  %v1078 = vsel %vm1068, %v1064, 1326507024
  %v1079 = vsel %vm1067, %v1061, %v1078
  %v1080 = vsel %vm1066, %v1077, %v1079
  %v1081 = vshll.u32 %v1041, 8
  %v1082 = vmul.u32.u64.compose %v1081, %v1080
  %v1083 = vextract.low.u32 %v1082
  %v1084 = vextract.high.u32 %v1082
  %v1085 = vmul.u32.u64.compose %v1081, %v1076
  %v1086 = vextract.low.u32 %v1085
  %v1087 = vextract.high.u32 %v1085
  %v1088 = vmul.u32 %v1081, %v1072
  %v1089 = vadd.s32 %v1084, %v1086
  %vm1090 = vc.u32 %v1084, %v1086
  %v1091 = vadd.s32 %v1087, 1
  %v1092 = vsel %vm1090, %v1091, %v1087
  %v1093 = vadd.s32 %v1088, %v1092
  %v1094 = vadd.s32 %v1093, 536870912
  %v1095 = vshrl.u32 %v1094, 30
  %v1096 = vshll.u32 %v1095, 30
  %v1097 = vsub.s32 %v1093, %v1096
  %vm1098 = vcmp.lt.s32.totalorder %v1097, 0
  %v1099 = vsub.s32 0, %v1097
  %v1100 = vsel %vm1098, %v1099, %v1097
  %v1101 = vclz %v1100
  %v1102 = vsub.s32 %v1101, 2
  %vm1103 = vcmp.gt.s32.totalorder 0, %v1102
  %v1104 = vsel %vm1103, 0, %v1102
  %v1105 = vsub.s32 32, %v1104
  %v1106 = vshll.u32 %v1097, %v1104
  %v1107 = vshrl.u32 %v1089, %v1105
  %v1108 = vor.u32 %v1106, %v1107
  %v1109 = vsub.s32 4294967266, %v1104
  %v1110 = vadd.s32 %v1109, 127
  %v1111 = vshll.u32 %v1110, 23
  %v1112 = vor.u32 4788187, %v1111
  %v1113 = vand.u32 2147483647, %v1112
  %v1115 = vcvt.s32.f32 %v1108
  %v1116 = vmul.f32 %v1115, %v1113
  %v1117 = vxor.u32 %v1116, 2147483648
  %v1118 = vsel %vm1035, %v1117, %v1116
  %v1119 = vsub.s32 4, %v1095
  %v1120 = vsel %vm1035, %v1119, %v1095
  %v1121 = vsel %vm1034, %v929, %v1118
  %v1122 = vsel %vm1034, 0, %v1120
  %v1123 = vcosq.f32.pop %v1121
  %v1124 = vsinq.f32.pop %v1121
  %vm1125 = vweird.f32 %v929
  %v1126 = vadd.s32 %v1122, 3
  %v1127 = vand.u32 %v1126, 3
  %vm1128 = vcmp.lt.s32.totalorder %v1127, 2
  %vm1129 = vcmp.eq.s32.totalorder %v1127, 0
  %v1130 = vxor.u32 %v1124, 2147483648
  %v1131 = vsel %vm1129, %v1123, %v1130
  %vm1132 = vcmp.eq.s32.totalorder %v1127, 2
  %v1133 = vxor.u32 %v1123, 2147483648
  %v1134 = vsel %vm1132, %v1133, %v1124
  %v1135 = vsel %vm1128, %v1131, %v1134
  %v1136 = vsel %vm1125, nan, %v1135
  %v1137 = vsub.f32 1.0, %v1032
  %v1138 = vmul.f32 %v1137, 0.022854744
  %v1139 = vadd.f32 %v1032, %v1138
  %v1140 = vmul.f32 %v1137, 0.11607201
  %v1141 = vmul.f32 %v1136, 0.62261736
  %v1142 = vsub.f32 %v1140, %v1141
  %v1143 = vmul.f32 %v1137, 0.09412596
  %v1144 = vmul.f32 %v1136, 0.7677845
  %v1145 = vadd.f32 %v1143, %v1144
  %v1146 = vadd.f32 %v1140, %v1141
  %v1147 = vmul.f32 %v1137, 0.589493
  %v1148 = vadd.f32 %v1032, %v1147
  %v1149 = vmul.f32 %v1137, 0.47803596
  %v1150 = vmul.f32 %v1136, 0.15117785
  %v1151 = vsub.f32 %v1149, %v1150
  %v1152 = vsub.f32 %v1143, %v1144
  %v1153 = vadd.f32 %v1149, %v1150
  %v1154 = vmul.f32 %v1137, 0.38765237
  %v1155 = vadd.f32 %v1032, %v1154
  %v1156 = vmul.f32 %v845, %v1139
  %v1157 = vmul.f32 %v850, %v1146
  %v1158 = vadd.f32 %v1156, %v1157
  %v1159 = vmul.f32 %v855, %v1152
  %v1160 = vadd.f32 %v1158, %v1159
  %v1161 = vmul.f32 %v845, %v1142
  %v1162 = vmul.f32 %v850, %v1148
  %v1163 = vadd.f32 %v1161, %v1162
  %v1164 = vmul.f32 %v855, %v1153
  %v1165 = vadd.f32 %v1163, %v1164
  %v1166 = vmul.f32 %v845, %v1145
  %v1167 = vmul.f32 %v850, %v1151
  %v1168 = vadd.f32 %v1166, %v1167
  %v1169 = vmul.f32 %v855, %v1155
  %v1170 = vadd.f32 %v1168, %v1169
  %v1171 = vmul.f32 %v845, 0.09
  %v1172 = vmul.f32 %v850, 0.02
  %v1173 = vadd.f32 %v1171, %v1172
  %v1174 = vmul.f32 %v855, 0.1
  %v1175 = vadd.f32 %v1173, %v1174
  %v1176 = vadd.f32 %v1175, %v861
  %v1177 = vmul.f32 %v866, %v1139
  %v1178 = vmul.f32 %v871, %v1146
  %v1179 = vadd.f32 %v1177, %v1178
  %v1180 = vmul.f32 %v876, %v1152
  %v1181 = vadd.f32 %v1179, %v1180
  %v1182 = vmul.f32 %v866, %v1142
  %v1183 = vmul.f32 %v871, %v1148
  %v1184 = vadd.f32 %v1182, %v1183
  %v1185 = vmul.f32 %v876, %v1153
  %v1186 = vadd.f32 %v1184, %v1185
  %v1187 = vmul.f32 %v866, %v1145
  %v1188 = vmul.f32 %v871, %v1151
  %v1189 = vadd.f32 %v1187, %v1188
  %v1190 = vmul.f32 %v876, %v1155
  %v1191 = vadd.f32 %v1189, %v1190
  %v1192 = vmul.f32 %v866, 0.09
  %v1193 = vmul.f32 %v871, 0.02
  %v1194 = vadd.f32 %v1192, %v1193
  %v1195 = vmul.f32 %v876, 0.1
  %v1196 = vadd.f32 %v1194, %v1195
  %v1197 = vadd.f32 %v1196, %v882
  %v1198 = vmul.f32 %v887, %v1139
  %v1199 = vmul.f32 %v892, %v1146
  %v1200 = vadd.f32 %v1198, %v1199
  %v1201 = vmul.f32 %v897, %v1152
  %v1202 = vadd.f32 %v1200, %v1201
  %v1203 = vmul.f32 %v887, %v1142
  %v1204 = vmul.f32 %v892, %v1148
  %v1205 = vadd.f32 %v1203, %v1204
  %v1206 = vmul.f32 %v897, %v1153
  %v1207 = vadd.f32 %v1205, %v1206
  %v1208 = vmul.f32 %v887, %v1145
  %v1209 = vmul.f32 %v892, %v1151
  %v1210 = vadd.f32 %v1208, %v1209
  %v1211 = vmul.f32 %v897, %v1155
  %v1212 = vadd.f32 %v1210, %v1211
  %v1213 = vmul.f32 %v887, 0.09
  %v1214 = vmul.f32 %v892, 0.02
  %v1215 = vadd.f32 %v1213, %v1214
  %v1216 = vmul.f32 %v897, 0.1
  %v1217 = vadd.f32 %v1215, %v1216
  %v1218 = vadd.f32 %v1217, %v903
  %s1219 = scalar_lea.vmem %s1, 288
  %1220 = vst [vmem:[%s1219] sm:$0xff] %v1160
  %s1221 = scalar_lea.vmem %s1, 296
  %1222 = vst [vmem:[%s1221] sm:$0xff] %v1165
  %s1223 = scalar_lea.vmem %s1, 304
  %1224 = vst [vmem:[%s1223] sm:$0xff] %v1170
  %s1225 = scalar_lea.vmem %s1, 312
  %1226 = vst [vmem:[%s1225] sm:$0xff] %v1176
  %s1227 = scalar_lea.vmem %s1, 320
  %1228 = vst [vmem:[%s1227] sm:$0xff] %v1181
  %s1229 = scalar_lea.vmem %s1, 328
  %1230 = vst [vmem:[%s1229] sm:$0xff] %v1186
  %s1231 = scalar_lea.vmem %s1, 336
  %1232 = vst [vmem:[%s1231] sm:$0xff] %v1191
  %s1233 = scalar_lea.vmem %s1, 344
  %1234 = vst [vmem:[%s1233] sm:$0xff] %v1197
  %s1235 = scalar_lea.vmem %s1, 352
  %1236 = vst [vmem:[%s1235] sm:$0xff] %v1202
  %s1237 = scalar_lea.vmem %s1, 360
  %1238 = vst [vmem:[%s1237] sm:$0xff] %v1207
  %s1239 = scalar_lea.vmem %s1, 368
  %1240 = vst [vmem:[%s1239] sm:$0xff] %v1212
  %s1241 = scalar_lea.vmem %s1, 376
  %1242 = vst [vmem:[%s1241] sm:$0xff] %v1218
  %s1243 = scalar_lea.vmem %s0, 72
  %v1244 = vld [vmem:[%s1243] sm:$0xff]
  %v1245 = vand.u32 2147483647, %v1244
  %vm1246 = vcmp.le.f32.partialorder %v1245, 0.7853982
  %vm1247 = vcmp.lt.s32.totalorder %v1244, 0
  %v1248 = vand.u32 %v1244, 2139095040
  %v1249 = vshrl.u32 %v1248, 23
  %v1250 = vsub.s32 %v1249, 127
  %v1251 = vand.u32 2147483647, %v1244
  %v1252 = vand.u32 %v1251, 8388607
  %v1253 = vor.u32 %v1252, 8388608
  %v1254 = vsub.s32 0, %v1253
  %v1255 = vadd.s32 %v1250, 1
  %vm1256 = vcmp.gt.s32.totalorder %v1255, 0
  %v1257 = vsel %vm1256, %v1255, 0
  %v1258 = vshrl.u32 %v1257, 5
  %v1259 = vand.u32 %v1257, 31
  %v1260 = vsub.s32 32, %v1259
  %v1261 = vshrl.u32 683565275, %v1260
  %v1262 = vshll.u32 683565275, %v1259
  %v1263 = vshrl.u32 2475754826, %v1260
  %v1264 = vor.u32 %v1262, %v1263
  %v1265 = vshll.u32 2475754826, %v1259
  %v1266 = vshrl.u32 2131351028, %v1260
  %v1267 = vor.u32 %v1265, %v1266
  %v1268 = vshll.u32 2131351028, %v1259
  %v1269 = vshrl.u32 2102212464, %v1260
  %v1270 = vor.u32 %v1268, %v1269
  %v1271 = vshll.u32 2102212464, %v1259
  %v1272 = vshrl.u32 920167782, %v1260
  %v1273 = vor.u32 %v1271, %v1272
  %v1274 = vshll.u32 920167782, %v1259
  %v1275 = vshrl.u32 1326507024, %v1260
  %v1276 = vor.u32 %v1274, %v1275
  %vm1277 = vcmp.lt.s32.totalorder %v1258, 1
  %vm1278 = vcmp.lt.s32.totalorder %v1258, 2
  %vm1279 = vcmp.lt.s32.totalorder %v1258, 3
  %vm1280 = vcmp.lt.s32.totalorder %v1258, 4
  %v1281 = vsel %vm1277, %v1261, %v1264
  %v1282 = vsel %vm1280, %v1270, 2102212464
  %v1283 = vsel %vm1279, %v1267, %v1282
  %v1284 = vsel %vm1278, %v1281, %v1283
  %v1285 = vsel %vm1277, %v1264, %v1267
  %v1286 = vsel %vm1280, %v1273, 920167782
  %v1287 = vsel %vm1279, %v1270, %v1286
  %v1288 = vsel %vm1278, %v1285, %v1287
  %v1289 = vsel %vm1277, %v1267, %v1270
  %v1290 = vsel %vm1280, %v1276, 1326507024
  %v1291 = vsel %vm1279, %v1273, %v1290
  %v1292 = vsel %vm1278, %v1289, %v1291
  %v1293 = vshll.u32 %v1253, 8
  %v1294 = vmul.u32.u64.compose %v1293, %v1292
  %v1295 = vextract.low.u32 %v1294
  %v1296 = vextract.high.u32 %v1294
  %v1297 = vmul.u32.u64.compose %v1293, %v1288
  %v1298 = vextract.low.u32 %v1297
  %v1299 = vextract.high.u32 %v1297
  %v1300 = vmul.u32 %v1293, %v1284
  %v1301 = vadd.s32 %v1296, %v1298
  %vm1302 = vc.u32 %v1296, %v1298
  %v1303 = vadd.s32 %v1299, 1
  %v1304 = vsel %vm1302, %v1303, %v1299
  %v1305 = vadd.s32 %v1300, %v1304
  %v1306 = vadd.s32 %v1305, 536870912
  %v1307 = vshrl.u32 %v1306, 30
  %v1308 = vshll.u32 %v1307, 30
  %v1309 = vsub.s32 %v1305, %v1308
  %vm1310 = vcmp.lt.s32.totalorder %v1309, 0
  %v1311 = vsub.s32 0, %v1309
  %v1312 = vsel %vm1310, %v1311, %v1309
  %v1313 = vclz %v1312
  %v1314 = vsub.s32 %v1313, 2
  %vm1315 = vcmp.gt.s32.totalorder 0, %v1314
  %v1316 = vsel %vm1315, 0, %v1314
  %v1317 = vsub.s32 32, %v1316
  %v1318 = vshll.u32 %v1309, %v1316
  %v1319 = vshrl.u32 %v1301, %v1317
  %v1320 = vor.u32 %v1318, %v1319
  %v1321 = vsub.s32 4294967266, %v1316
  %v1322 = vadd.s32 %v1321, 127
  %v1323 = vshll.u32 %v1322, 23
  %v1324 = vor.u32 4788187, %v1323
  %v1325 = vand.u32 2147483647, %v1324
  %v1327 = vcvt.s32.f32 %v1320
  %v1328 = vmul.f32 %v1327, %v1325
  %v1329 = vxor.u32 %v1328, 2147483648
  %v1330 = vsel %vm1247, %v1329, %v1328
  %v1331 = vsub.s32 4, %v1307
  %v1332 = vsel %vm1247, %v1331, %v1307
  %v1333 = vsel %vm1246, %v1244, %v1330
  %v1334 = vsel %vm1246, 0, %v1332
  %v1335 = vcosq.f32.pop %v1333
  %v1336 = vsinq.f32.pop %v1333
  %vm1337 = vweird.f32 %v1244
  %v1338 = vand.u32 %v1334, 3
  %vm1339 = vcmp.lt.s32.totalorder %v1338, 2
  %vm1340 = vcmp.eq.s32.totalorder %v1338, 0
  %v1341 = vxor.u32 %v1336, 2147483648
  %v1342 = vsel %vm1340, %v1335, %v1341
  %vm1343 = vcmp.eq.s32.totalorder %v1338, 2
  %v1344 = vxor.u32 %v1335, 2147483648
  %v1345 = vsel %vm1343, %v1344, %v1336
  %v1346 = vsel %vm1339, %v1342, %v1345
  %v1347 = vsel %vm1337, nan, %v1346
  %v1348 = vand.u32 2147483647, %v1244
  %vm1349 = vcmp.le.f32.partialorder %v1348, 0.7853982
  %vm1350 = vcmp.lt.s32.totalorder %v1244, 0
  %v1351 = vand.u32 %v1244, 2139095040
  %v1352 = vshrl.u32 %v1351, 23
  %v1353 = vsub.s32 %v1352, 127
  %v1354 = vand.u32 2147483647, %v1244
  %v1355 = vand.u32 %v1354, 8388607
  %v1356 = vor.u32 %v1355, 8388608
  %v1357 = vsub.s32 0, %v1356
  %v1358 = vadd.s32 %v1353, 1
  %vm1359 = vcmp.gt.s32.totalorder %v1358, 0
  %v1360 = vsel %vm1359, %v1358, 0
  %v1361 = vshrl.u32 %v1360, 5
  %v1362 = vand.u32 %v1360, 31
  %v1363 = vsub.s32 32, %v1362
  %v1364 = vshrl.u32 683565275, %v1363
  %v1365 = vshll.u32 683565275, %v1362
  %v1366 = vshrl.u32 2475754826, %v1363
  %v1367 = vor.u32 %v1365, %v1366
  %v1368 = vshll.u32 2475754826, %v1362
  %v1369 = vshrl.u32 2131351028, %v1363
  %v1370 = vor.u32 %v1368, %v1369
  %v1371 = vshll.u32 2131351028, %v1362
  %v1372 = vshrl.u32 2102212464, %v1363
  %v1373 = vor.u32 %v1371, %v1372
  %v1374 = vshll.u32 2102212464, %v1362
  %v1375 = vshrl.u32 920167782, %v1363
  %v1376 = vor.u32 %v1374, %v1375
  %v1377 = vshll.u32 920167782, %v1362
  %v1378 = vshrl.u32 1326507024, %v1363
  %v1379 = vor.u32 %v1377, %v1378
  %vm1380 = vcmp.lt.s32.totalorder %v1361, 1
  %vm1381 = vcmp.lt.s32.totalorder %v1361, 2
  %vm1382 = vcmp.lt.s32.totalorder %v1361, 3
  %vm1383 = vcmp.lt.s32.totalorder %v1361, 4
  %v1384 = vsel %vm1380, %v1364, %v1367
  %v1385 = vsel %vm1383, %v1373, 2102212464
  %v1386 = vsel %vm1382, %v1370, %v1385
  %v1387 = vsel %vm1381, %v1384, %v1386
  %v1388 = vsel %vm1380, %v1367, %v1370
  %v1389 = vsel %vm1383, %v1376, 920167782
  %v1390 = vsel %vm1382, %v1373, %v1389
  %v1391 = vsel %vm1381, %v1388, %v1390
  %v1392 = vsel %vm1380, %v1370, %v1373
  %v1393 = vsel %vm1383, %v1379, 1326507024
  %v1394 = vsel %vm1382, %v1376, %v1393
  %v1395 = vsel %vm1381, %v1392, %v1394
  %v1396 = vshll.u32 %v1356, 8
  %v1397 = vmul.u32.u64.compose %v1396, %v1395
  %v1398 = vextract.low.u32 %v1397
  %v1399 = vextract.high.u32 %v1397
  %v1400 = vmul.u32.u64.compose %v1396, %v1391
  %v1401 = vextract.low.u32 %v1400
  %v1402 = vextract.high.u32 %v1400
  %v1403 = vmul.u32 %v1396, %v1387
  %v1404 = vadd.s32 %v1399, %v1401
  %vm1405 = vc.u32 %v1399, %v1401
  %v1406 = vadd.s32 %v1402, 1
  %v1407 = vsel %vm1405, %v1406, %v1402
  %v1408 = vadd.s32 %v1403, %v1407
  %v1409 = vadd.s32 %v1408, 536870912
  %v1410 = vshrl.u32 %v1409, 30
  %v1411 = vshll.u32 %v1410, 30
  %v1412 = vsub.s32 %v1408, %v1411
  %vm1413 = vcmp.lt.s32.totalorder %v1412, 0
  %v1414 = vsub.s32 0, %v1412
  %v1415 = vsel %vm1413, %v1414, %v1412
  %v1416 = vclz %v1415
  %v1417 = vsub.s32 %v1416, 2
  %vm1418 = vcmp.gt.s32.totalorder 0, %v1417
  %v1419 = vsel %vm1418, 0, %v1417
  %v1420 = vsub.s32 32, %v1419
  %v1421 = vshll.u32 %v1412, %v1419
  %v1422 = vshrl.u32 %v1404, %v1420
  %v1423 = vor.u32 %v1421, %v1422
  %v1424 = vsub.s32 4294967266, %v1419
  %v1425 = vadd.s32 %v1424, 127
  %v1426 = vshll.u32 %v1425, 23
  %v1427 = vor.u32 4788187, %v1426
  %v1428 = vand.u32 2147483647, %v1427
  %v1430 = vcvt.s32.f32 %v1423
  %v1431 = vmul.f32 %v1430, %v1428
  %v1432 = vxor.u32 %v1431, 2147483648
  %v1433 = vsel %vm1350, %v1432, %v1431
  %v1434 = vsub.s32 4, %v1410
  %v1435 = vsel %vm1350, %v1434, %v1410
  %v1436 = vsel %vm1349, %v1244, %v1433
  %v1437 = vsel %vm1349, 0, %v1435
  %v1438 = vcosq.f32.pop %v1436
  %v1439 = vsinq.f32.pop %v1436
  %vm1440 = vweird.f32 %v1244
  %v1441 = vadd.s32 %v1437, 3
  %v1442 = vand.u32 %v1441, 3
  %vm1443 = vcmp.lt.s32.totalorder %v1442, 2
  %vm1444 = vcmp.eq.s32.totalorder %v1442, 0
  %v1445 = vxor.u32 %v1439, 2147483648
  %v1446 = vsel %vm1444, %v1438, %v1445
  %vm1447 = vcmp.eq.s32.totalorder %v1442, 2
  %v1448 = vxor.u32 %v1438, 2147483648
  %v1449 = vsel %vm1447, %v1448, %v1439
  %v1450 = vsel %vm1443, %v1446, %v1449
  %v1451 = vsel %vm1440, nan, %v1450
  %v1452 = vsub.f32 1.0, %v1347
  %v1453 = vmul.f32 %v1452, 0.27861163
  %v1454 = vadd.f32 %v1347, %v1453
  %v1455 = vmul.f32 %v1452, -0.07788051
  %v1456 = vmul.f32 %v1451, 0.8364319
  %v1457 = vsub.f32 %v1455, %v1456
  %v1458 = vmul.f32 %v1452, -0.4414995
  %v1459 = vmul.f32 %v1451, 0.14754659
  %v1460 = vadd.f32 %v1458, %v1459
  %v1461 = vadd.f32 %v1455, %v1456
  %v1462 = vmul.f32 %v1452, 0.021769997
  %v1463 = vadd.f32 %v1347, %v1462
  %v1464 = vmul.f32 %v1452, 0.123412676
  %v1465 = vmul.f32 %v1451, -0.52783674
  %v1466 = vsub.f32 %v1464, %v1465
  %v1467 = vsub.f32 %v1458, %v1459
  %v1468 = vadd.f32 %v1464, %v1465
  %v1469 = vmul.f32 %v1452, 0.69961834
  %v1470 = vadd.f32 %v1347, %v1469
  %v1471 = vmul.f32 %v1160, %v1454
  %v1472 = vmul.f32 %v1165, %v1461
  %v1473 = vadd.f32 %v1471, %v1472
  %v1474 = vmul.f32 %v1170, %v1467
  %v1475 = vadd.f32 %v1473, %v1474
  %v1476 = vmul.f32 %v1160, %v1457
  %v1477 = vmul.f32 %v1165, %v1463
  %v1478 = vadd.f32 %v1476, %v1477
  %v1479 = vmul.f32 %v1170, %v1468
  %v1480 = vadd.f32 %v1478, %v1479
  %v1481 = vmul.f32 %v1160, %v1460
  %v1482 = vmul.f32 %v1165, %v1466
  %v1483 = vadd.f32 %v1481, %v1482
  %v1484 = vmul.f32 %v1170, %v1470
  %v1485 = vadd.f32 %v1483, %v1484
  %v1486 = vmul.f32 %v1160, 0.11
  %v1487 = vmul.f32 %v1165, 0.03
  %v1488 = vadd.f32 %v1486, %v1487
  %v1489 = vmul.f32 %v1170, 0.1
  %v1490 = vadd.f32 %v1488, %v1489
  %v1491 = vadd.f32 %v1490, %v1176
  %v1492 = vmul.f32 %v1181, %v1454
  %v1493 = vmul.f32 %v1186, %v1461
  %v1494 = vadd.f32 %v1492, %v1493
  %v1495 = vmul.f32 %v1191, %v1467
  %v1496 = vadd.f32 %v1494, %v1495
  %v1497 = vmul.f32 %v1181, %v1457
  %v1498 = vmul.f32 %v1186, %v1463
  %v1499 = vadd.f32 %v1497, %v1498
  %v1500 = vmul.f32 %v1191, %v1468
  %v1501 = vadd.f32 %v1499, %v1500
  %v1502 = vmul.f32 %v1181, %v1460
  %v1503 = vmul.f32 %v1186, %v1466
  %v1504 = vadd.f32 %v1502, %v1503
  %v1505 = vmul.f32 %v1191, %v1470
  %v1506 = vadd.f32 %v1504, %v1505
  %v1507 = vmul.f32 %v1181, 0.11
  %v1508 = vmul.f32 %v1186, 0.03
  %v1509 = vadd.f32 %v1507, %v1508
  %v1510 = vmul.f32 %v1191, 0.1
  %v1511 = vadd.f32 %v1509, %v1510
  %v1512 = vadd.f32 %v1511, %v1197
  %v1513 = vmul.f32 %v1202, %v1454
  %v1514 = vmul.f32 %v1207, %v1461
  %v1515 = vadd.f32 %v1513, %v1514
  %v1516 = vmul.f32 %v1212, %v1467
  %v1517 = vadd.f32 %v1515, %v1516
  %v1518 = vmul.f32 %v1202, %v1457
  %v1519 = vmul.f32 %v1207, %v1463
  %v1520 = vadd.f32 %v1518, %v1519
  %v1521 = vmul.f32 %v1212, %v1468
  %v1522 = vadd.f32 %v1520, %v1521
  %v1523 = vmul.f32 %v1202, %v1460
  %v1524 = vmul.f32 %v1207, %v1466
  %v1525 = vadd.f32 %v1523, %v1524
  %v1526 = vmul.f32 %v1212, %v1470
  %v1527 = vadd.f32 %v1525, %v1526
  %v1528 = vmul.f32 %v1202, 0.11
  %v1529 = vmul.f32 %v1207, 0.03
  %v1530 = vadd.f32 %v1528, %v1529
  %v1531 = vmul.f32 %v1212, 0.1
  %v1532 = vadd.f32 %v1530, %v1531
  %v1533 = vadd.f32 %v1532, %v1218
  %s1534 = scalar_lea.vmem %s1, 384
  %1535 = vst [vmem:[%s1534] sm:$0xff] %v1475
  %s1536 = scalar_lea.vmem %s1, 392
  %1537 = vst [vmem:[%s1536] sm:$0xff] %v1480
  %s1538 = scalar_lea.vmem %s1, 400
  %1539 = vst [vmem:[%s1538] sm:$0xff] %v1485
  %s1540 = scalar_lea.vmem %s1, 408
  %1541 = vst [vmem:[%s1540] sm:$0xff] %v1491
  %s1542 = scalar_lea.vmem %s1, 416
  %1543 = vst [vmem:[%s1542] sm:$0xff] %v1496
  %s1544 = scalar_lea.vmem %s1, 424
  %1545 = vst [vmem:[%s1544] sm:$0xff] %v1501
  %s1546 = scalar_lea.vmem %s1, 432
  %1547 = vst [vmem:[%s1546] sm:$0xff] %v1506
  %s1548 = scalar_lea.vmem %s1, 440
  %1549 = vst [vmem:[%s1548] sm:$0xff] %v1512
  %s1550 = scalar_lea.vmem %s1, 448
  %1551 = vst [vmem:[%s1550] sm:$0xff] %v1517
  %s1552 = scalar_lea.vmem %s1, 456
  %1553 = vst [vmem:[%s1552] sm:$0xff] %v1522
  %s1554 = scalar_lea.vmem %s1, 464
  %1555 = vst [vmem:[%s1554] sm:$0xff] %v1527
  %s1556 = scalar_lea.vmem %s1, 472
  %1557 = vst [vmem:[%s1556] sm:$0xff] %v1533
  %s1558 = scalar_lea.vmem %s0, 80
  %v1559 = vld [vmem:[%s1558] sm:$0xff]
  %v1560 = vand.u32 2147483647, %v1559
  %vm1561 = vcmp.le.f32.partialorder %v1560, 0.7853982
  %vm1562 = vcmp.lt.s32.totalorder %v1559, 0
  %v1563 = vand.u32 %v1559, 2139095040
  %v1564 = vshrl.u32 %v1563, 23
  %v1565 = vsub.s32 %v1564, 127
  %v1566 = vand.u32 2147483647, %v1559
  %v1567 = vand.u32 %v1566, 8388607
  %v1568 = vor.u32 %v1567, 8388608
  %v1569 = vsub.s32 0, %v1568
  %v1570 = vadd.s32 %v1565, 1
  %vm1571 = vcmp.gt.s32.totalorder %v1570, 0
  %v1572 = vsel %vm1571, %v1570, 0
  %v1573 = vshrl.u32 %v1572, 5
  %v1574 = vand.u32 %v1572, 31
  %v1575 = vsub.s32 32, %v1574
  %v1576 = vshrl.u32 683565275, %v1575
  %v1577 = vshll.u32 683565275, %v1574
  %v1578 = vshrl.u32 2475754826, %v1575
  %v1579 = vor.u32 %v1577, %v1578
  %v1580 = vshll.u32 2475754826, %v1574
  %v1581 = vshrl.u32 2131351028, %v1575
  %v1582 = vor.u32 %v1580, %v1581
  %v1583 = vshll.u32 2131351028, %v1574
  %v1584 = vshrl.u32 2102212464, %v1575
  %v1585 = vor.u32 %v1583, %v1584
  %v1586 = vshll.u32 2102212464, %v1574
  %v1587 = vshrl.u32 920167782, %v1575
  %v1588 = vor.u32 %v1586, %v1587
  %v1589 = vshll.u32 920167782, %v1574
  %v1590 = vshrl.u32 1326507024, %v1575
  %v1591 = vor.u32 %v1589, %v1590
  %vm1592 = vcmp.lt.s32.totalorder %v1573, 1
  %vm1593 = vcmp.lt.s32.totalorder %v1573, 2
  %vm1594 = vcmp.lt.s32.totalorder %v1573, 3
  %vm1595 = vcmp.lt.s32.totalorder %v1573, 4
  %v1596 = vsel %vm1592, %v1576, %v1579
  %v1597 = vsel %vm1595, %v1585, 2102212464
  %v1598 = vsel %vm1594, %v1582, %v1597
  %v1599 = vsel %vm1593, %v1596, %v1598
  %v1600 = vsel %vm1592, %v1579, %v1582
  %v1601 = vsel %vm1595, %v1588, 920167782
  %v1602 = vsel %vm1594, %v1585, %v1601
  %v1603 = vsel %vm1593, %v1600, %v1602
  %v1604 = vsel %vm1592, %v1582, %v1585
  %v1605 = vsel %vm1595, %v1591, 1326507024
  %v1606 = vsel %vm1594, %v1588, %v1605
  %v1607 = vsel %vm1593, %v1604, %v1606
  %v1608 = vshll.u32 %v1568, 8
  %v1609 = vmul.u32.u64.compose %v1608, %v1607
  %v1610 = vextract.low.u32 %v1609
  %v1611 = vextract.high.u32 %v1609
  %v1612 = vmul.u32.u64.compose %v1608, %v1603
  %v1613 = vextract.low.u32 %v1612
  %v1614 = vextract.high.u32 %v1612
  %v1615 = vmul.u32 %v1608, %v1599
  %v1616 = vadd.s32 %v1611, %v1613
  %vm1617 = vc.u32 %v1611, %v1613
  %v1618 = vadd.s32 %v1614, 1
  %v1619 = vsel %vm1617, %v1618, %v1614
  %v1620 = vadd.s32 %v1615, %v1619
  %v1621 = vadd.s32 %v1620, 536870912
  %v1622 = vshrl.u32 %v1621, 30
  %v1623 = vshll.u32 %v1622, 30
  %v1624 = vsub.s32 %v1620, %v1623
  %vm1625 = vcmp.lt.s32.totalorder %v1624, 0
  %v1626 = vsub.s32 0, %v1624
  %v1627 = vsel %vm1625, %v1626, %v1624
  %v1628 = vclz %v1627
  %v1629 = vsub.s32 %v1628, 2
  %vm1630 = vcmp.gt.s32.totalorder 0, %v1629
  %v1631 = vsel %vm1630, 0, %v1629
  %v1632 = vsub.s32 32, %v1631
  %v1633 = vshll.u32 %v1624, %v1631
  %v1634 = vshrl.u32 %v1616, %v1632
  %v1635 = vor.u32 %v1633, %v1634
  %v1636 = vsub.s32 4294967266, %v1631
  %v1637 = vadd.s32 %v1636, 127
  %v1638 = vshll.u32 %v1637, 23
  %v1639 = vor.u32 4788187, %v1638
  %v1640 = vand.u32 2147483647, %v1639
  %v1642 = vcvt.s32.f32 %v1635
  %v1643 = vmul.f32 %v1642, %v1640
  %v1644 = vxor.u32 %v1643, 2147483648
  %v1645 = vsel %vm1562, %v1644, %v1643
  %v1646 = vsub.s32 4, %v1622
  %v1647 = vsel %vm1562, %v1646, %v1622
  %v1648 = vsel %vm1561, %v1559, %v1645
  %v1649 = vsel %vm1561, 0, %v1647
  %v1650 = vcosq.f32.pop %v1648
  %v1651 = vsinq.f32.pop %v1648
  %vm1652 = vweird.f32 %v1559
  %v1653 = vand.u32 %v1649, 3
  %vm1654 = vcmp.lt.s32.totalorder %v1653, 2
  %vm1655 = vcmp.eq.s32.totalorder %v1653, 0
  %v1656 = vxor.u32 %v1651, 2147483648
  %v1657 = vsel %vm1655, %v1650, %v1656
  %vm1658 = vcmp.eq.s32.totalorder %v1653, 2
  %v1659 = vxor.u32 %v1650, 2147483648
  %v1660 = vsel %vm1658, %v1659, %v1651
  %v1661 = vsel %vm1654, %v1657, %v1660
  %v1662 = vsel %vm1652, nan, %v1661
  %v1663 = vand.u32 2147483647, %v1559
  %vm1664 = vcmp.le.f32.partialorder %v1663, 0.7853982
  %vm1665 = vcmp.lt.s32.totalorder %v1559, 0
  %v1666 = vand.u32 %v1559, 2139095040
  %v1667 = vshrl.u32 %v1666, 23
  %v1668 = vsub.s32 %v1667, 127
  %v1669 = vand.u32 2147483647, %v1559
  %v1670 = vand.u32 %v1669, 8388607
  %v1671 = vor.u32 %v1670, 8388608
  %v1672 = vsub.s32 0, %v1671
  %v1673 = vadd.s32 %v1668, 1
  %vm1674 = vcmp.gt.s32.totalorder %v1673, 0
  %v1675 = vsel %vm1674, %v1673, 0
  %v1676 = vshrl.u32 %v1675, 5
  %v1677 = vand.u32 %v1675, 31
  %v1678 = vsub.s32 32, %v1677
  %v1679 = vshrl.u32 683565275, %v1678
  %v1680 = vshll.u32 683565275, %v1677
  %v1681 = vshrl.u32 2475754826, %v1678
  %v1682 = vor.u32 %v1680, %v1681
  %v1683 = vshll.u32 2475754826, %v1677
  %v1684 = vshrl.u32 2131351028, %v1678
  %v1685 = vor.u32 %v1683, %v1684
  %v1686 = vshll.u32 2131351028, %v1677
  %v1687 = vshrl.u32 2102212464, %v1678
  %v1688 = vor.u32 %v1686, %v1687
  %v1689 = vshll.u32 2102212464, %v1677
  %v1690 = vshrl.u32 920167782, %v1678
  %v1691 = vor.u32 %v1689, %v1690
  %v1692 = vshll.u32 920167782, %v1677
  %v1693 = vshrl.u32 1326507024, %v1678
  %v1694 = vor.u32 %v1692, %v1693
  %vm1695 = vcmp.lt.s32.totalorder %v1676, 1
  %vm1696 = vcmp.lt.s32.totalorder %v1676, 2
  %vm1697 = vcmp.lt.s32.totalorder %v1676, 3
  %vm1698 = vcmp.lt.s32.totalorder %v1676, 4
  %v1699 = vsel %vm1695, %v1679, %v1682
  %v1700 = vsel %vm1698, %v1688, 2102212464
  %v1701 = vsel %vm1697, %v1685, %v1700
  %v1702 = vsel %vm1696, %v1699, %v1701
  %v1703 = vsel %vm1695, %v1682, %v1685
  %v1704 = vsel %vm1698, %v1691, 920167782
  %v1705 = vsel %vm1697, %v1688, %v1704
  %v1706 = vsel %vm1696, %v1703, %v1705
  %v1707 = vsel %vm1695, %v1685, %v1688
  %v1708 = vsel %vm1698, %v1694, 1326507024
  %v1709 = vsel %vm1697, %v1691, %v1708
  %v1710 = vsel %vm1696, %v1707, %v1709
  %v1711 = vshll.u32 %v1671, 8
  %v1712 = vmul.u32.u64.compose %v1711, %v1710
  %v1713 = vextract.low.u32 %v1712
  %v1714 = vextract.high.u32 %v1712
  %v1715 = vmul.u32.u64.compose %v1711, %v1706
  %v1716 = vextract.low.u32 %v1715
  %v1717 = vextract.high.u32 %v1715
  %v1718 = vmul.u32 %v1711, %v1702
  %v1719 = vadd.s32 %v1714, %v1716
  %vm1720 = vc.u32 %v1714, %v1716
  %v1721 = vadd.s32 %v1717, 1
  %v1722 = vsel %vm1720, %v1721, %v1717
  %v1723 = vadd.s32 %v1718, %v1722
  %v1724 = vadd.s32 %v1723, 536870912
  %v1725 = vshrl.u32 %v1724, 30
  %v1726 = vshll.u32 %v1725, 30
  %v1727 = vsub.s32 %v1723, %v1726
  %vm1728 = vcmp.lt.s32.totalorder %v1727, 0
  %v1729 = vsub.s32 0, %v1727
  %v1730 = vsel %vm1728, %v1729, %v1727
  %v1731 = vclz %v1730
  %v1732 = vsub.s32 %v1731, 2
  %vm1733 = vcmp.gt.s32.totalorder 0, %v1732
  %v1734 = vsel %vm1733, 0, %v1732
  %v1735 = vsub.s32 32, %v1734
  %v1736 = vshll.u32 %v1727, %v1734
  %v1737 = vshrl.u32 %v1719, %v1735
  %v1738 = vor.u32 %v1736, %v1737
  %v1739 = vsub.s32 4294967266, %v1734
  %v1740 = vadd.s32 %v1739, 127
  %v1741 = vshll.u32 %v1740, 23
  %v1742 = vor.u32 4788187, %v1741
  %v1743 = vand.u32 2147483647, %v1742
  %v1745 = vcvt.s32.f32 %v1738
  %v1746 = vmul.f32 %v1745, %v1743
  %v1747 = vxor.u32 %v1746, 2147483648
  %v1748 = vsel %vm1665, %v1747, %v1746
  %v1749 = vsub.s32 4, %v1725
  %v1750 = vsel %vm1665, %v1749, %v1725
  %v1751 = vsel %vm1664, %v1559, %v1748
  %v1752 = vsel %vm1664, 0, %v1750
  %v1753 = vcosq.f32.pop %v1751
  %v1754 = vsinq.f32.pop %v1751
  %vm1755 = vweird.f32 %v1559
  %v1756 = vadd.s32 %v1752, 3
  %v1757 = vand.u32 %v1756, 3
  %vm1758 = vcmp.lt.s32.totalorder %v1757, 2
  %vm1759 = vcmp.eq.s32.totalorder %v1757, 0
  %v1760 = vxor.u32 %v1754, 2147483648
  %v1761 = vsel %vm1759, %v1753, %v1760
  %vm1762 = vcmp.eq.s32.totalorder %v1757, 2
  %v1763 = vxor.u32 %v1753, 2147483648
  %v1764 = vsel %vm1762, %v1763, %v1754
  %v1765 = vsel %vm1758, %v1761, %v1764
  %v1766 = vsel %vm1755, nan, %v1765
  %v1767 = vsub.f32 1.0, %v1662
  %v1768 = vmul.f32 %v1767, 0.40896478
  %v1769 = vadd.f32 %v1662, %v1768
  %v1770 = vmul.f32 %v1767, 0.2985199
  %v1771 = vmul.f32 %v1766, 0.61084646
  %v1772 = vsub.f32 %v1770, %v1771
  %v1773 = vmul.f32 %v1767, -0.39063847
  %v1774 = vmul.f32 %v1766, -0.46679947
  %v1775 = vadd.f32 %v1773, %v1774
  %v1776 = vadd.f32 %v1770, %v1771
  %v1777 = vmul.f32 %v1767, 0.21790174
  %v1778 = vadd.f32 %v1662, %v1777
  %v1779 = vmul.f32 %v1767, -0.2851428
  %v1780 = vmul.f32 %v1766, -0.63950354
  %v1781 = vsub.f32 %v1779, %v1780
  %v1782 = vsub.f32 %v1773, %v1774
  %v1783 = vadd.f32 %v1779, %v1780
  %v1784 = vmul.f32 %v1767, 0.3731334
  %v1785 = vadd.f32 %v1662, %v1784
  %v1786 = vmul.f32 %v1475, %v1769
  %v1787 = vmul.f32 %v1480, %v1776
  %v1788 = vadd.f32 %v1786, %v1787
  %v1789 = vmul.f32 %v1485, %v1782
  %v1790 = vadd.f32 %v1788, %v1789
  %v1791 = vmul.f32 %v1475, %v1772
  %v1792 = vmul.f32 %v1480, %v1778
  %v1793 = vadd.f32 %v1791, %v1792
  %v1794 = vmul.f32 %v1485, %v1783
  %v1795 = vadd.f32 %v1793, %v1794
  %v1796 = vmul.f32 %v1475, %v1775
  %v1797 = vmul.f32 %v1480, %v1781
  %v1798 = vadd.f32 %v1796, %v1797
  %v1799 = vmul.f32 %v1485, %v1785
  %v1800 = vadd.f32 %v1798, %v1799
  %v1801 = vmul.f32 %v1475, 0.13
  %v1802 = vmul.f32 %v1480, 0.04
  %v1803 = vadd.f32 %v1801, %v1802
  %v1804 = vmul.f32 %v1485, 0.1
  %v1805 = vadd.f32 %v1803, %v1804
  %v1806 = vadd.f32 %v1805, %v1491
  %v1807 = vmul.f32 %v1496, %v1769
  %v1808 = vmul.f32 %v1501, %v1776
  %v1809 = vadd.f32 %v1807, %v1808
  %v1810 = vmul.f32 %v1506, %v1782
  %v1811 = vadd.f32 %v1809, %v1810
  %v1812 = vmul.f32 %v1496, %v1772
  %v1813 = vmul.f32 %v1501, %v1778
  %v1814 = vadd.f32 %v1812, %v1813
  %v1815 = vmul.f32 %v1506, %v1783
  %v1816 = vadd.f32 %v1814, %v1815
  %v1817 = vmul.f32 %v1496, %v1775
  %v1818 = vmul.f32 %v1501, %v1781
  %v1819 = vadd.f32 %v1817, %v1818
  %v1820 = vmul.f32 %v1506, %v1785
  %v1821 = vadd.f32 %v1819, %v1820
  %v1822 = vmul.f32 %v1496, 0.13
  %v1823 = vmul.f32 %v1501, 0.04
  %v1824 = vadd.f32 %v1822, %v1823
  %v1825 = vmul.f32 %v1506, 0.1
  %v1826 = vadd.f32 %v1824, %v1825
  %v1827 = vadd.f32 %v1826, %v1512
  %v1828 = vmul.f32 %v1517, %v1769
  %v1829 = vmul.f32 %v1522, %v1776
  %v1830 = vadd.f32 %v1828, %v1829
  %v1831 = vmul.f32 %v1527, %v1782
  %v1832 = vadd.f32 %v1830, %v1831
  %v1833 = vmul.f32 %v1517, %v1772
  %v1834 = vmul.f32 %v1522, %v1778
  %v1835 = vadd.f32 %v1833, %v1834
  %v1836 = vmul.f32 %v1527, %v1783
  %v1837 = vadd.f32 %v1835, %v1836
  %v1838 = vmul.f32 %v1517, %v1775
  %v1839 = vmul.f32 %v1522, %v1781
  %v1840 = vadd.f32 %v1838, %v1839
  %v1841 = vmul.f32 %v1527, %v1785
  %v1842 = vadd.f32 %v1840, %v1841
  %v1843 = vmul.f32 %v1517, 0.13
  %v1844 = vmul.f32 %v1522, 0.04
  %v1845 = vadd.f32 %v1843, %v1844
  %v1846 = vmul.f32 %v1527, 0.1
  %v1847 = vadd.f32 %v1845, %v1846
  %v1848 = vadd.f32 %v1847, %v1533
  %s1849 = scalar_lea.vmem %s1, 480
  %1850 = vst [vmem:[%s1849] sm:$0xff] %v1790
  %s1851 = scalar_lea.vmem %s1, 488
  %1852 = vst [vmem:[%s1851] sm:$0xff] %v1795
  %s1853 = scalar_lea.vmem %s1, 496
  %1854 = vst [vmem:[%s1853] sm:$0xff] %v1800
  %s1855 = scalar_lea.vmem %s1, 504
  %1856 = vst [vmem:[%s1855] sm:$0xff] %v1806
  %s1857 = scalar_lea.vmem %s1, 512
  %1858 = vst [vmem:[%s1857] sm:$0xff] %v1811
  %s1859 = scalar_lea.vmem %s1, 520
  %1860 = vst [vmem:[%s1859] sm:$0xff] %v1816
  %s1861 = scalar_lea.vmem %s1, 528
  %1862 = vst [vmem:[%s1861] sm:$0xff] %v1821
  %s1863 = scalar_lea.vmem %s1, 536
  %1864 = vst [vmem:[%s1863] sm:$0xff] %v1827
  %s1865 = scalar_lea.vmem %s1, 544
  %1866 = vst [vmem:[%s1865] sm:$0xff] %v1832
  %s1867 = scalar_lea.vmem %s1, 552
  %1868 = vst [vmem:[%s1867] sm:$0xff] %v1837
  %s1869 = scalar_lea.vmem %s1, 560
  %1870 = vst [vmem:[%s1869] sm:$0xff] %v1842
  %s1871 = scalar_lea.vmem %s1, 568
  %1872 = vst [vmem:[%s1871] sm:$0xff] %v1848
  %s1873 = scalar_lea.vmem %s0, 88
  %v1874 = vld [vmem:[%s1873] sm:$0xff]
  %v1875 = vand.u32 2147483647, %v1874
  %vm1876 = vcmp.le.f32.partialorder %v1875, 0.7853982
  %vm1877 = vcmp.lt.s32.totalorder %v1874, 0
  %v1878 = vand.u32 %v1874, 2139095040
  %v1879 = vshrl.u32 %v1878, 23
  %v1880 = vsub.s32 %v1879, 127
  %v1881 = vand.u32 2147483647, %v1874
  %v1882 = vand.u32 %v1881, 8388607
  %v1883 = vor.u32 %v1882, 8388608
  %v1884 = vsub.s32 0, %v1883
  %v1885 = vadd.s32 %v1880, 1
  %vm1886 = vcmp.gt.s32.totalorder %v1885, 0
  %v1887 = vsel %vm1886, %v1885, 0
  %v1888 = vshrl.u32 %v1887, 5
  %v1889 = vand.u32 %v1887, 31
  %v1890 = vsub.s32 32, %v1889
  %v1891 = vshrl.u32 683565275, %v1890
  %v1892 = vshll.u32 683565275, %v1889
  %v1893 = vshrl.u32 2475754826, %v1890
  %v1894 = vor.u32 %v1892, %v1893
  %v1895 = vshll.u32 2475754826, %v1889
  %v1896 = vshrl.u32 2131351028, %v1890
  %v1897 = vor.u32 %v1895, %v1896
  %v1898 = vshll.u32 2131351028, %v1889
  %v1899 = vshrl.u32 2102212464, %v1890
  %v1900 = vor.u32 %v1898, %v1899
  %v1901 = vshll.u32 2102212464, %v1889
  %v1902 = vshrl.u32 920167782, %v1890
  %v1903 = vor.u32 %v1901, %v1902
  %v1904 = vshll.u32 920167782, %v1889
  %v1905 = vshrl.u32 1326507024, %v1890
  %v1906 = vor.u32 %v1904, %v1905
  %vm1907 = vcmp.lt.s32.totalorder %v1888, 1
  %vm1908 = vcmp.lt.s32.totalorder %v1888, 2
  %vm1909 = vcmp.lt.s32.totalorder %v1888, 3
  %vm1910 = vcmp.lt.s32.totalorder %v1888, 4
  %v1911 = vsel %vm1907, %v1891, %v1894
  %v1912 = vsel %vm1910, %v1900, 2102212464
  %v1913 = vsel %vm1909, %v1897, %v1912
  %v1914 = vsel %vm1908, %v1911, %v1913
  %v1915 = vsel %vm1907, %v1894, %v1897
  %v1916 = vsel %vm1910, %v1903, 920167782
  %v1917 = vsel %vm1909, %v1900, %v1916
  %v1918 = vsel %vm1908, %v1915, %v1917
  %v1919 = vsel %vm1907, %v1897, %v1900
  %v1920 = vsel %vm1910, %v1906, 1326507024
  %v1921 = vsel %vm1909, %v1903, %v1920
  %v1922 = vsel %vm1908, %v1919, %v1921
  %v1923 = vshll.u32 %v1883, 8
  %v1924 = vmul.u32.u64.compose %v1923, %v1922
  %v1925 = vextract.low.u32 %v1924
  %v1926 = vextract.high.u32 %v1924
  %v1927 = vmul.u32.u64.compose %v1923, %v1918
  %v1928 = vextract.low.u32 %v1927
  %v1929 = vextract.high.u32 %v1927
  %v1930 = vmul.u32 %v1923, %v1914
  %v1931 = vadd.s32 %v1926, %v1928
  %vm1932 = vc.u32 %v1926, %v1928
  %v1933 = vadd.s32 %v1929, 1
  %v1934 = vsel %vm1932, %v1933, %v1929
  %v1935 = vadd.s32 %v1930, %v1934
  %v1936 = vadd.s32 %v1935, 536870912
  %v1937 = vshrl.u32 %v1936, 30
  %v1938 = vshll.u32 %v1937, 30
  %v1939 = vsub.s32 %v1935, %v1938
  %vm1940 = vcmp.lt.s32.totalorder %v1939, 0
  %v1941 = vsub.s32 0, %v1939
  %v1942 = vsel %vm1940, %v1941, %v1939
  %v1943 = vclz %v1942
  %v1944 = vsub.s32 %v1943, 2
  %vm1945 = vcmp.gt.s32.totalorder 0, %v1944
  %v1946 = vsel %vm1945, 0, %v1944
  %v1947 = vsub.s32 32, %v1946
  %v1948 = vshll.u32 %v1939, %v1946
  %v1949 = vshrl.u32 %v1931, %v1947
  %v1950 = vor.u32 %v1948, %v1949
  %v1951 = vsub.s32 4294967266, %v1946
  %v1952 = vadd.s32 %v1951, 127
  %v1953 = vshll.u32 %v1952, 23
  %v1954 = vor.u32 4788187, %v1953
  %v1955 = vand.u32 2147483647, %v1954
  %v1957 = vcvt.s32.f32 %v1950
  %v1958 = vmul.f32 %v1957, %v1955
  %v1959 = vxor.u32 %v1958, 2147483648
  %v1960 = vsel %vm1877, %v1959, %v1958
  %v1961 = vsub.s32 4, %v1937
  %v1962 = vsel %vm1877, %v1961, %v1937
  %v1963 = vsel %vm1876, %v1874, %v1960
  %v1964 = vsel %vm1876, 0, %v1962
  %v1965 = vcosq.f32.pop %v1963
  %v1966 = vsinq.f32.pop %v1963
  %vm1967 = vweird.f32 %v1874
  %v1968 = vand.u32 %v1964, 3
  %vm1969 = vcmp.lt.s32.totalorder %v1968, 2
  %vm1970 = vcmp.eq.s32.totalorder %v1968, 0
  %v1971 = vxor.u32 %v1966, 2147483648
  %v1972 = vsel %vm1970, %v1965, %v1971
  %vm1973 = vcmp.eq.s32.totalorder %v1968, 2
  %v1974 = vxor.u32 %v1965, 2147483648
  %v1975 = vsel %vm1973, %v1974, %v1966
  %v1976 = vsel %vm1969, %v1972, %v1975
  %v1977 = vsel %vm1967, nan, %v1976
  %v1978 = vand.u32 2147483647, %v1874
  %vm1979 = vcmp.le.f32.partialorder %v1978, 0.7853982
  %vm1980 = vcmp.lt.s32.totalorder %v1874, 0
  %v1981 = vand.u32 %v1874, 2139095040
  %v1982 = vshrl.u32 %v1981, 23
  %v1983 = vsub.s32 %v1982, 127
  %v1984 = vand.u32 2147483647, %v1874
  %v1985 = vand.u32 %v1984, 8388607
  %v1986 = vor.u32 %v1985, 8388608
  %v1987 = vsub.s32 0, %v1986
  %v1988 = vadd.s32 %v1983, 1
  %vm1989 = vcmp.gt.s32.totalorder %v1988, 0
  %v1990 = vsel %vm1989, %v1988, 0
  %v1991 = vshrl.u32 %v1990, 5
  %v1992 = vand.u32 %v1990, 31
  %v1993 = vsub.s32 32, %v1992
  %v1994 = vshrl.u32 683565275, %v1993
  %v1995 = vshll.u32 683565275, %v1992
  %v1996 = vshrl.u32 2475754826, %v1993
  %v1997 = vor.u32 %v1995, %v1996
  %v1998 = vshll.u32 2475754826, %v1992
  %v1999 = vshrl.u32 2131351028, %v1993
  %v2000 = vor.u32 %v1998, %v1999
  %v2001 = vshll.u32 2131351028, %v1992
  %v2002 = vshrl.u32 2102212464, %v1993
  %v2003 = vor.u32 %v2001, %v2002
  %v2004 = vshll.u32 2102212464, %v1992
  %v2005 = vshrl.u32 920167782, %v1993
  %v2006 = vor.u32 %v2004, %v2005
  %v2007 = vshll.u32 920167782, %v1992
  %v2008 = vshrl.u32 1326507024, %v1993
  %v2009 = vor.u32 %v2007, %v2008
  %vm2010 = vcmp.lt.s32.totalorder %v1991, 1
  %vm2011 = vcmp.lt.s32.totalorder %v1991, 2
  %vm2012 = vcmp.lt.s32.totalorder %v1991, 3
  %vm2013 = vcmp.lt.s32.totalorder %v1991, 4
  %v2014 = vsel %vm2010, %v1994, %v1997
  %v2015 = vsel %vm2013, %v2003, 2102212464
  %v2016 = vsel %vm2012, %v2000, %v2015
  %v2017 = vsel %vm2011, %v2014, %v2016
  %v2018 = vsel %vm2010, %v1997, %v2000
  %v2019 = vsel %vm2013, %v2006, 920167782
  %v2020 = vsel %vm2012, %v2003, %v2019
  %v2021 = vsel %vm2011, %v2018, %v2020
  %v2022 = vsel %vm2010, %v2000, %v2003
  %v2023 = vsel %vm2013, %v2009, 1326507024
  %v2024 = vsel %vm2012, %v2006, %v2023
  %v2025 = vsel %vm2011, %v2022, %v2024
  %v2026 = vshll.u32 %v1986, 8
  %v2027 = vmul.u32.u64.compose %v2026, %v2025
  %v2028 = vextract.low.u32 %v2027
  %v2029 = vextract.high.u32 %v2027
  %v2030 = vmul.u32.u64.compose %v2026, %v2021
  %v2031 = vextract.low.u32 %v2030
  %v2032 = vextract.high.u32 %v2030
  %v2033 = vmul.u32 %v2026, %v2017
  %v2034 = vadd.s32 %v2029, %v2031
  %vm2035 = vc.u32 %v2029, %v2031
  %v2036 = vadd.s32 %v2032, 1
  %v2037 = vsel %vm2035, %v2036, %v2032
  %v2038 = vadd.s32 %v2033, %v2037
  %v2039 = vadd.s32 %v2038, 536870912
  %v2040 = vshrl.u32 %v2039, 30
  %v2041 = vshll.u32 %v2040, 30
  %v2042 = vsub.s32 %v2038, %v2041
  %vm2043 = vcmp.lt.s32.totalorder %v2042, 0
  %v2044 = vsub.s32 0, %v2042
  %v2045 = vsel %vm2043, %v2044, %v2042
  %v2046 = vclz %v2045
  %v2047 = vsub.s32 %v2046, 2
  %vm2048 = vcmp.gt.s32.totalorder 0, %v2047
  %v2049 = vsel %vm2048, 0, %v2047
  %v2050 = vsub.s32 32, %v2049
  %v2051 = vshll.u32 %v2042, %v2049
  %v2052 = vshrl.u32 %v2034, %v2050
  %v2053 = vor.u32 %v2051, %v2052
  %v2054 = vsub.s32 4294967266, %v2049
  %v2055 = vadd.s32 %v2054, 127
  %v2056 = vshll.u32 %v2055, 23
  %v2057 = vor.u32 4788187, %v2056
  %v2058 = vand.u32 2147483647, %v2057
  %v2060 = vcvt.s32.f32 %v2053
  %v2061 = vmul.f32 %v2060, %v2058
  %v2062 = vxor.u32 %v2061, 2147483648
  %v2063 = vsel %vm1980, %v2062, %v2061
  %v2064 = vsub.s32 4, %v2040
  %v2065 = vsel %vm1980, %v2064, %v2040
  %v2066 = vsel %vm1979, %v1874, %v2063
  %v2067 = vsel %vm1979, 0, %v2065
  %v2068 = vcosq.f32.pop %v2066
  %v2069 = vsinq.f32.pop %v2066
  %vm2070 = vweird.f32 %v1874
  %v2071 = vadd.s32 %v2067, 3
  %v2072 = vand.u32 %v2071, 3
  %vm2073 = vcmp.lt.s32.totalorder %v2072, 2
  %vm2074 = vcmp.eq.s32.totalorder %v2072, 0
  %v2075 = vxor.u32 %v2069, 2147483648
  %v2076 = vsel %vm2074, %v2068, %v2075
  %vm2077 = vcmp.eq.s32.totalorder %v2072, 2
  %v2078 = vxor.u32 %v2068, 2147483648
  %v2079 = vsel %vm2077, %v2078, %v2069
  %v2080 = vsel %vm2073, %v2076, %v2079
  %v2081 = vsel %vm2070, nan, %v2080
  %v2082 = vsub.f32 1.0, %v1977
  %v2083 = vmul.f32 %v2082, 0.30563292
  %v2084 = vadd.f32 %v1977, %v2083
  %v2085 = vmul.f32 %v2082, 0.3251199
  %v2086 = vmul.f32 %v2081, 0.59035385
  %v2087 = vsub.f32 %v2085, %v2086
  %v2088 = vmul.f32 %v2082, -0.32637167
  %v2089 = vmul.f32 %v2081, -0.5880896
  %v2090 = vadd.f32 %v2088, %v2089
  %v2091 = vadd.f32 %v2085, %v2086
  %v2092 = vmul.f32 %v2082, 0.34584936
  %v2093 = vadd.f32 %v1977, %v2092
  %v2094 = vmul.f32 %v2082, -0.34718096
  %v2095 = vmul.f32 %v2081, -0.55284077
  %v2096 = vsub.f32 %v2094, %v2095
  %v2097 = vsub.f32 %v2088, %v2089
  %v2098 = vadd.f32 %v2094, %v2095
  %v2099 = vmul.f32 %v2082, 0.34851766
  %v2100 = vadd.f32 %v1977, %v2099
  %v2101 = vmul.f32 %v1790, %v2084
  %v2102 = vmul.f32 %v1795, %v2091
  %v2103 = vadd.f32 %v2101, %v2102
  %v2104 = vmul.f32 %v1800, %v2097
  %v2105 = vadd.f32 %v2103, %v2104
  %v2106 = vmul.f32 %v1790, %v2087
  %v2107 = vmul.f32 %v1795, %v2093
  %v2108 = vadd.f32 %v2106, %v2107
  %v2109 = vmul.f32 %v1800, %v2098
  %v2110 = vadd.f32 %v2108, %v2109
  %v2111 = vmul.f32 %v1790, %v2090
  %v2112 = vmul.f32 %v1795, %v2096
  %v2113 = vadd.f32 %v2111, %v2112
  %v2114 = vmul.f32 %v1800, %v2100
  %v2115 = vadd.f32 %v2113, %v2114
  %v2116 = vmul.f32 %v1790, 0.15
  %v2117 = vmul.f32 %v1795, 0.05
  %v2118 = vadd.f32 %v2116, %v2117
  %v2119 = vmul.f32 %v1800, 0.1
  %v2120 = vadd.f32 %v2118, %v2119
  %v2121 = vadd.f32 %v2120, %v1806
  %v2122 = vmul.f32 %v1811, %v2084
  %v2123 = vmul.f32 %v1816, %v2091
  %v2124 = vadd.f32 %v2122, %v2123
  %v2125 = vmul.f32 %v1821, %v2097
  %v2126 = vadd.f32 %v2124, %v2125
  %v2127 = vmul.f32 %v1811, %v2087
  %v2128 = vmul.f32 %v1816, %v2093
  %v2129 = vadd.f32 %v2127, %v2128
  %v2130 = vmul.f32 %v1821, %v2098
  %v2131 = vadd.f32 %v2129, %v2130
  %v2132 = vmul.f32 %v1811, %v2090
  %v2133 = vmul.f32 %v1816, %v2096
  %v2134 = vadd.f32 %v2132, %v2133
  %v2135 = vmul.f32 %v1821, %v2100
  %v2136 = vadd.f32 %v2134, %v2135
  %v2137 = vmul.f32 %v1811, 0.15
  %v2138 = vmul.f32 %v1816, 0.05
  %v2139 = vadd.f32 %v2137, %v2138
  %v2140 = vmul.f32 %v1821, 0.1
  %v2141 = vadd.f32 %v2139, %v2140
  %v2142 = vadd.f32 %v2141, %v1827
  %v2143 = vmul.f32 %v1832, %v2084
  %v2144 = vmul.f32 %v1837, %v2091
  %v2145 = vadd.f32 %v2143, %v2144
  %v2146 = vmul.f32 %v1842, %v2097
  %v2147 = vadd.f32 %v2145, %v2146
  %v2148 = vmul.f32 %v1832, %v2087
  %v2149 = vmul.f32 %v1837, %v2093
  %v2150 = vadd.f32 %v2148, %v2149
  %v2151 = vmul.f32 %v1842, %v2098
  %v2152 = vadd.f32 %v2150, %v2151
  %v2153 = vmul.f32 %v1832, %v2090
  %v2154 = vmul.f32 %v1837, %v2096
  %v2155 = vadd.f32 %v2153, %v2154
  %v2156 = vmul.f32 %v1842, %v2100
  %v2157 = vadd.f32 %v2155, %v2156
  %v2158 = vmul.f32 %v1832, 0.15
  %v2159 = vmul.f32 %v1837, 0.05
  %v2160 = vadd.f32 %v2158, %v2159
  %v2161 = vmul.f32 %v1842, 0.1
  %v2162 = vadd.f32 %v2160, %v2161
  %v2163 = vadd.f32 %v2162, %v1848
  %s2164 = scalar_lea.vmem %s1, 576
  %2165 = vst [vmem:[%s2164] sm:$0xff] %v2105
  %s2166 = scalar_lea.vmem %s1, 584
  %2167 = vst [vmem:[%s2166] sm:$0xff] %v2110
  %s2168 = scalar_lea.vmem %s1, 592
  %2169 = vst [vmem:[%s2168] sm:$0xff] %v2115
  %s2170 = scalar_lea.vmem %s1, 600
  %2171 = vst [vmem:[%s2170] sm:$0xff] %v2121
  %s2172 = scalar_lea.vmem %s1, 608
  %2173 = vst [vmem:[%s2172] sm:$0xff] %v2126
  %s2174 = scalar_lea.vmem %s1, 616
  %2175 = vst [vmem:[%s2174] sm:$0xff] %v2131
  %s2176 = scalar_lea.vmem %s1, 624
  %2177 = vst [vmem:[%s2176] sm:$0xff] %v2136
  %s2178 = scalar_lea.vmem %s1, 632
  %2179 = vst [vmem:[%s2178] sm:$0xff] %v2142
  %s2180 = scalar_lea.vmem %s1, 640
  %2181 = vst [vmem:[%s2180] sm:$0xff] %v2147
  %s2182 = scalar_lea.vmem %s1, 648
  %2183 = vst [vmem:[%s2182] sm:$0xff] %v2152
  %s2184 = scalar_lea.vmem %s1, 656
  %2185 = vst [vmem:[%s2184] sm:$0xff] %v2157
  %s2186 = scalar_lea.vmem %s1, 664
  %2187 = vst [vmem:[%s2186] sm:$0xff] %v2163
  // Predicated region
  $region6: #{_forward_impl.1} parent=0 // pred_check
    _
  $region7: #{_forward_impl.1} parent=0 // pred_check_branch
    %2189 = sbr.rel (0) target = $region9
  $region8: #{_forward_impl.1} parent=0 // pred_region
    _
  $region9: #{_forward_impl.1} parent=0 // pred_fallthru
    _
  // Predicated region
  $region10: #{_forward_impl.1} parent=0 // pred_check
    _
  $region11: #{_forward_impl.1} parent=0 // pred_check_branch
    %2191 = sbr.rel (0) target = $region13
  $region12: #{_forward_impl.1} parent=0 // pred_region
    _
  $region13: #{_forward_impl.1} parent=0 // pred_fallthru
    _

</llo_original>
